<compile_context>
chip_gen: v6e
topology: v6e:2x2x1
jax: 0.10.0
libtpu: 0.0.40
codegen_flags: <defaults>
</compile_context>

<pallas_src>
import functools

import jax
import jax.numpy as jnp
import numpy as np
from jax.experimental import pallas as pl
from jax.experimental.pallas import tpu as pltpu


def _full_spec(shape):
    """BlockSpec covering the whole array (single grid step)."""
    return pl.BlockSpec(shape, lambda *_: (0,) * len(shape))


# ----------------------------------------------------------------------------
# Fused forward kernel (everything VMEM-resident, single pallas_call)
# ----------------------------------------------------------------------------
def fused_cvae_kernel(
    x_ref, eps_ref, w_ref,           # inputs
    rec_ref, ml_ref,                 # outputs
    pre_ref, hseq_ref,               # VMEM scratch
    *, S, B, VOCAB, COND, H, L, wmap,
):
    f32 = jnp.float32
    G = 4 * H                        # 128: one vreg of gates

    def w(name):
        off, r, c = wmap[name]       # static offsets -> plain vector loads
        return w_ref[off:off + r, 0:c]

    def lstm_cell(gates, c):
        # Compact layout: gates[:, 0:H]=i, [H:2H]=f, [2H:3H]=g, [3H:4H]=o.
        # One full-vreg sigmoid + one H-lane tanh; static lane slices of the
        # *activated* vreg align each gate to c's lanes.
        sg = jax.nn.sigmoid(gates)                 # [B, 4H]
        g = jnp.tanh(gates[:, 2 * H:3 * H])        # [B, H]
        i = sg[:, 0 * H:1 * H]
        f = sg[:, 1 * H:2 * H]
        o = sg[:, 3 * H:4 * H]
        c_new = f * c + i * g
        h_new = o * jnp.tanh(c_new)
        return h_new, c_new

    x = x_ref[...]                   # [S*B, VOCAB+COND+1] time-major, ones col last
    eps = eps_ref[...]               # [B, L]

    # ---- Encoder -------------------------------------------------------------
    # Single fused input projection for ALL timesteps: [onehot | cond | 1] @ W
    # (embedding table, condition weights and bias are all folded into one matmul).
    pre_ref[...] = jnp.dot(x, w("enc_win"), preferred_element_type=f32)   # [S*B, 4H]

    enc_whh = w("enc_whh")           # [H, 4H], loaded once
    h = jnp.zeros((B, H), f32)
    c = jnp.zeros((B, H), f32)
    # TODO(synk): pin W_hh in the MXU (matmul_push_rhs/acc_lhs/pop) across steps.
    for t in range(S):               # unrolled; per step: load + 1 matmul + gate math
        gates = pre_ref[t * B:(t + 1) * B, :] + jnp.dot(
            h, enc_whh, preferred_element_type=f32)
        h, c = lstm_cell(gates, c)
    # Only the final hidden state is needed (== PyTorch hidden[0]).

    hid = jnp.maximum(
        jnp.dot(h, w("enc_fc0_w"), preferred_element_type=f32) + w("enc_fc0_b"),
        0.0)                                                           # [B, H]
    mean = (jnp.dot(hid, w("enc_mean_w"), preferred_element_type=f32)
            + w("enc_mean_b"))                                         # [B, L]
    logvar = (jnp.dot(hid, w("enc_logvar_w"), preferred_element_type=f32)
              + w("enc_logvar_b"))                                     # [B, L]
    ml_ref[...] = jnp.concatenate([mean, logvar], axis=1)              # [B, 2L]

    # ---- Reparameterization ---------------------------------------------------
    latent = mean + eps * jnp.exp(0.5 * logvar)                        # [B, L]

    # ---- Decoder --------------------------------------------------------------
    dh = (jnp.dot(latent, w("dec_rev_w"), preferred_element_type=f32)
          + w("dec_rev_b"))                                            # reverse_latent
    dh = jnp.maximum(
        jnp.dot(dh, w("dec_fc0_w"), preferred_element_type=f32) + w("dec_fc0_b"),
        0.0)                                                           # fc + ReLU, [B,H]

    # Hoist all loop-invariant adds: dh projection (constant over time),
    # condition projection for all timesteps, and bias (folded via ones col).
    cond1 = x[:, VOCAB:VOCAB + COND + 1]                               # [S*B, COND+1]
    pre_dh = jnp.dot(dh, w("dec_win_h"), preferred_element_type=f32)   # [B, 4H]
    pre_cd = jnp.dot(cond1, w("dec_win_c"), preferred_element_type=f32)  # [S*B, 4H]
    pre_ref[...] = pre_cd + jnp.concatenate([pre_dh] * S, axis=0)

    dec_whh = w("dec_whh")
    h = jnp.zeros((B, H), f32)
    c = jnp.zeros((B, H), f32)
    for t in range(S):               # unrolled
        gates = pre_ref[t * B:(t + 1) * B, :] + jnp.dot(
            h, dec_whh, preferred_element_type=f32)
        h, c = lstm_cell(gates, c)
        hseq_ref[t * B:(t + 1) * B, :] = h      # vst-slot store; no concat relayout

    # Output projection for all timesteps as one matmul; dec_out_w columns are
    # zero-padded to 128 so the store is lane-dense (wrapper slices [:, :OUT]).
    rec_ref[...] = (jnp.dot(hseq_ref[...], w("dec_out_w"),
                            preferred_element_type=f32) + w("dec_out_b"))


# ----------------------------------------------------------------------------
# Parameter construction / weight-slab packing
# ----------------------------------------------------------------------------
def init_params(key, *, vocab, emb, cond, hidden, latent, out_dim):
    keys = iter(jax.random.split(key, 24))

    def w(shape, scale=0.1):
        return scale * jax.random.normal(next(keys), shape, jnp.float32)

    return {
        # Encoder
        "emb": w((vocab, emb)),
        "enc_wih": w((emb + cond, 4 * hidden)),   # W_ih^T, gate order i|f|g|o
        "enc_whh": w((hidden, 4 * hidden)),       # W_hh^T
        "enc_b": w((4 * hidden,)),                # b_ih + b_hh
        "enc_fc0_w": w((hidden, hidden)),
        "enc_fc0_b": w((hidden,)),
        "enc_mean_w": w((hidden, latent)),
        "enc_mean_b": w((latent,)),
        "enc_logvar_w": w((hidden, latent)),
        "enc_logvar_b": w((latent,)),
        # Decoder
        "dec_rev_w": w((latent, hidden)),
        "dec_rev_b": w((hidden,)),
        "dec_fc0_w": w((hidden, hidden)),
        "dec_fc0_b": w((hidden,)),
        "dec_wih": w((hidden + cond, 4 * hidden)),
        "dec_whh": w((hidden, 4 * hidden)),
        "dec_b": w((4 * hidden,)),
        "dec_out_w": w((hidden, out_dim)),
        "dec_out_b": w((out_dim,)),
    }


def pack_weight_slab(p, *, emb_dim, hidden, out_dim):
    """Pack all weight pieces into ONE [R,128] f32 slab (a single input DMA).

    Row offsets are 8-aligned so in-kernel static slices are sublane-aligned
    loads. Returns (slab, {name: (row_offset, rows, cols)}).
    """
    pieces = [
        # Encoder: fused [onehot | cond | 1] -> gates (emb table & bias folded in).
        ("enc_win", jnp.concatenate([p["emb"] @ p["enc_wih"][:emb_dim],
                                     p["enc_wih"][emb_dim:],
                                     p["enc_b"][None, :]], axis=0)),
        ("enc_whh", p["enc_whh"]),
        ("enc_fc0_w", p["enc_fc0_w"]),
        ("enc_fc0_b", p["enc_fc0_b"][None, :]),
        ("enc_mean_w", p["enc_mean_w"]),
        ("enc_mean_b", p["enc_mean_b"][None, :]),
        ("enc_logvar_w", p["enc_logvar_w"]),
        ("enc_logvar_b", p["enc_logvar_b"][None, :]),
        # Decoder
        ("dec_rev_w", p["dec_rev_w"]),
        ("dec_rev_b", p["dec_rev_b"][None, :]),
        ("dec_fc0_w", p["dec_fc0_w"]),
        ("dec_fc0_b", p["dec_fc0_b"][None, :]),
        ("dec_win_h", p["dec_wih"][:hidden]),
        ("dec_win_c", jnp.concatenate([p["dec_wih"][hidden:],
                                       p["dec_b"][None, :]], axis=0)),
        ("dec_whh", p["dec_whh"]),
        # Output weights column-padded to 128 lanes -> lane-dense output store.
        ("dec_out_w", jnp.pad(p["dec_out_w"], ((0, 0), (0, 128 - out_dim)))),
        ("dec_out_b", jnp.pad(p["dec_out_b"][None, :], ((0, 0), (0, 128 - out_dim)))),
    ]
    wmap, blocks, off = {}, [], 0
    for name, arr in pieces:
        arr = jnp.asarray(arr, jnp.float32)
        r, c = arr.shape
        rp = -(-r // 8) * 8                       # round rows up to a sublane group
        blocks.append(jnp.zeros((rp, 128), jnp.float32).at[:r, :c].set(arr))
        wmap[name] = (off, r, c)
        off += rp
    return jnp.concatenate(blocks, axis=0), wmap


# ----------------------------------------------------------------------------
# Forward wrapper (single pallas_call, 3 input DMAs, 2 output DMAs)
# ----------------------------------------------------------------------------
def make_forward(wmap, slab_shape, *, vocab, cond_dim, hidden, latent, out_dim,
                 seq_len, batch):
    S, B, L, OUT = seq_len, batch, latent, out_dim
    assert 4 * hidden == 128, "compact gate layout assumes 4*hidden == 128 lanes"
    din = vocab + cond_dim + 1
    kernel = functools.partial(
        fused_cvae_kernel, S=S, B=B, VOCAB=vocab, COND=cond_dim, H=hidden, L=L,
        wmap=wmap)

    call = pl.pallas_call(
        kernel,
        out_shape=(
            jax.ShapeDtypeStruct((S * B, 128), jnp.float32),   # lane-dense reconst
            jax.ShapeDtypeStruct((B, 2 * L), jnp.float32),     # mean | logvar
        ),
        grid=(1,),
        in_specs=[
            _full_spec((S * B, din)),
            _full_spec((B, L)),
            _full_spec(slab_shape),
        ],
        out_specs=(
            _full_spec((S * B, 128)),
            _full_spec((B, 2 * L)),
        ),
        scratch_shapes=[
            pltpu.VMEM((S * B, 4 * hidden), jnp.float32),   # pre-activations
            pltpu.VMEM((S * B, hidden), jnp.float32),       # decoder hidden seq
        ],
    )

    def forward(w_slab, melody, condition, eps):
        # One-hot + condition + bias column, flattened time-major so the kernel
        # hoists every per-timestep input projection into one matmul.  These
        # tiny prep ops fuse into a single XLA fusion; the kernel then sees
        # just 3 input slabs (x_in, eps, weights).
        onehot = jax.nn.one_hot(melody, vocab, dtype=jnp.float32)       # [B,S,V]
        feat = jnp.concatenate(
            [onehot, condition, jnp.ones((B, S, 1), jnp.float32)], axis=-1)
        x_in = feat.transpose(1, 0, 2).reshape(S * B, din)
        rec_pad, ml = call(x_in, eps, w_slab)
        reconst = rec_pad[:, :OUT].reshape(S, B, OUT).transpose(1, 0, 2)  # [B,S,OUT]
        return reconst, ml[:, :L], ml[:, L:]

    return jax.jit(forward)


# ----------------------------------------------------------------------------
# Pure-JAX reference (mirrors the PyTorch module)
# ----------------------------------------------------------------------------
def reference_forward(params, melody, condition, eps, *, H):
    def lstm(seq, wih, whh, b):
        Bb, Ss, _ = seq.shape
        h = jnp.zeros((Bb, H), jnp.float32)
        c = jnp.zeros((Bb, H), jnp.float32)
        hs = []
        for t in range(Ss):
            gates = seq[:, t, :] @ wih + h @ whh + b
            i = jax.nn.sigmoid(gates[:, 0 * H:1 * H])
            f = jax.nn.sigmoid(gates[:, 1 * H:2 * H])
            g = jnp.tanh(gates[:, 2 * H:3 * H])
            o = jax.nn.sigmoid(gates[:, 3 * H:4 * H])
            c = f * c + i * g
            h = o * jnp.tanh(c)
            hs.append(h)
        return jnp.stack(hs, axis=1), h

    emb = params["emb"][melody]
    src = jnp.concatenate([emb, condition], axis=-1)
    _, h_enc = lstm(src, params["enc_wih"], params["enc_whh"], params["enc_b"])
    hid = jax.nn.relu(h_enc @ params["enc_fc0_w"] + params["enc_fc0_b"])
    mean = hid @ params["enc_mean_w"] + params["enc_mean_b"]
    logvar = hid @ params["enc_logvar_w"] + params["enc_logvar_b"]
    latent = mean + eps * jnp.exp(0.5 * logvar)
    dh = latent @ params["dec_rev_w"] + params["dec_rev_b"]
    dh = jax.nn.relu(dh @ params["dec_fc0_w"] + params["dec_fc0_b"])
    Ss = condition.shape[1]
    dec_in = jnp.concatenate(
        [jnp.repeat(dh[:, None, :], Ss, axis=1), condition], axis=-1)
    hseq, _ = lstm(dec_in, params["dec_wih"], params["dec_whh"], params["dec_b"])
    reconst = hseq @ params["dec_out_w"] + params["dec_out_b"]
    return reconst, mean, logvar


# ----------------------------------------------------------------------------
if __name__ == "__main__":
    B, S = 2, 8
    VOCAB, EMB, COND, HIDDEN, LATENT, OUT = 16, 8, 4, 32, 8, 16

    root = jax.random.PRNGKey(0)
    k_params, k_melody, k_cond, k_eps = jax.random.split(root, 4)

    params = init_params(
        k_params, vocab=VOCAB, emb=EMB, cond=COND,
        hidden=HIDDEN, latent=LATENT, out_dim=OUT)

    melody = jax.random.randint(k_melody, (B, S), 0, VOCAB, dtype=jnp.int32)
    condition = jax.random.normal(k_cond, (B, S, COND), jnp.float32)
    eps = jax.random.normal(k_eps, (B, LATENT), jnp.float32)

    w_slab, wmap = pack_weight_slab(params, emb_dim=EMB, hidden=HIDDEN, out_dim=OUT)
    fwd = make_forward(wmap, w_slab.shape, vocab=VOCAB, cond_dim=COND,
                       hidden=HIDDEN, latent=LATENT, out_dim=OUT,
                       seq_len=S, batch=B)

    reconst, mean, logvar = fwd(w_slab, melody, condition, eps)
    jax.block_until_ready((reconst, mean, logvar))

    assert reconst.shape == (B, S, OUT)
    assert mean.shape == (B, LATENT)
    assert logvar.shape == (B, LATENT)

    # Correctness check against the pure-JAX reference of the PyTorch module.
    r_ref, m_ref, lv_ref = reference_forward(params, melody, condition, eps, H=HIDDEN)
    np.testing.assert_allclose(np.asarray(mean), np.asarray(m_ref), rtol=2e-3, atol=2e-3)
    np.testing.assert_allclose(np.asarray(logvar), np.asarray(lv_ref), rtol=2e-3, atol=2e-3)
    np.testing.assert_allclose(np.asarray(reconst), np.asarray(r_ref), rtol=2e-3, atol=2e-3)

    print("KERNEL_OK")
</pallas_src>

<mosaic_0001>
module attributes {stable_mosaic.version = 11 : i64} {
  func.func @fused_cvae_kernel(%arg0: i32, %arg1: memref<16x21xf32, #tpu.memory_space<vmem>>, %arg2: memref<2x8xf32, #tpu.memory_space<vmem>>, %arg3: memref<344x128xf32, #tpu.memory_space<vmem>>, %arg4: memref<16x128xf32, #tpu.memory_space<vmem>>, %arg5: memref<2x16xf32, #tpu.memory_space<vmem>>, %arg6: memref<16x128xf32, #tpu.memory_space<vmem>>, %arg7: memref<16x32xf32, #tpu.memory_space<vmem>>) attributes {dimension_semantics = [#tpu.dimension_semantics<arbitrary>], iteration_bounds = array<i64: 1>, scalar_prefetch = 0 : i64, scratch_operands = 2 : i64, tpu.core_type = #tpu.core_type<tc>, window_params = [{pipeline_mode = #tpu.pipeline_mode<synchronous>, transform_indices = @transform_0, window_bounds = array<i64: 16, 21>}, {pipeline_mode = #tpu.pipeline_mode<synchronous>, transform_indices = @transform_1, window_bounds = array<i64: 2, 8>}, {pipeline_mode = #tpu.pipeline_mode<synchronous>, transform_indices = @transform_2, window_bounds = array<i64: 344, 128>}, {pipeline_mode = #tpu.pipeline_mode<synchronous>, transform_indices = @transform_3, window_bounds = array<i64: 16, 128>}, {pipeline_mode = #tpu.pipeline_mode<synchronous>, transform_indices = @transform_4, window_bounds = array<i64: 2, 16>}]} {
    %c0 = arith.constant 0 : index
    %c0_0 = arith.constant 0 : index
    %0 = vector.load %arg1[%c0, %c0_0] : memref<16x21xf32, #tpu.memory_space<vmem>>, vector<16x21xf32>
    %c0_1 = arith.constant 0 : index
    %c0_2 = arith.constant 0 : index
    %1 = vector.load %arg2[%c0_1, %c0_2] : memref<2x8xf32, #tpu.memory_space<vmem>>, vector<2x8xf32>
    %c0_3 = arith.constant 0 : index
    %c0_4 = arith.constant 0 : index
    %2 = vector.load %arg3[%c0_3, %c0_4] : memref<344x128xf32, #tpu.memory_space<vmem>>, vector<21x128xf32>
    %cst = arith.constant dense<0.000000e+00> : vector<16x128xf32>
    %3 = tpu.matmul %0, %2, %cst {dimension_numbers = #tpu.dot_dimension_numbers<[1], [0], [0], [1], [0, 0, 1, 1], [], []>} : vector<16x21xf32>, vector<21x128xf32>, vector<16x128xf32> -> vector<16x128xf32>
    %c0_5 = arith.constant 0 : index
    %c0_6 = arith.constant 0 : index
    %4 = vector.load %arg6[%c0_5, %c0_6] : memref<16x128xf32, #tpu.memory_space<vmem>>, vector<16x128xf32>
    tpu.vector_store %arg6[%c0_5, %c0_6], %3 {strides = array<i32>} : memref<16x128xf32, #tpu.memory_space<vmem>>, vector<16x128xf32>,
    %c24 = arith.constant 24 : index
    %c0_7 = arith.constant 0 : index
    %5 = vector.load %arg3[%c24, %c0_7] : memref<344x128xf32, #tpu.memory_space<vmem>>, vector<32x128xf32>
    %cst_8 = arith.constant 0.000000e+00 : f32
    %6 = vector.broadcast %cst_8 : f32 to vector<2x32xf32>
    %cst_9 = arith.constant 0.000000e+00 : f32
    %7 = vector.broadcast %cst_9 : f32 to vector<2x32xf32>
    %c0_10 = arith.constant 0 : index
    %c0_11 = arith.constant 0 : index
    %8 = vector.load %arg6[%c0_10, %c0_11] : memref<16x128xf32, #tpu.memory_space<vmem>>, vector<2x128xf32>
    %cst_12 = arith.constant dense<0.000000e+00> : vector<2x128xf32>
    %9 = tpu.matmul %6, %5, %cst_12 {dimension_numbers = #tpu.dot_dimension_numbers<[1], [0], [0], [1], [0, 0, 1, 1], [], []>} : vector<2x32xf32>, vector<32x128xf32>, vector<2x128xf32> -> vector<2x128xf32>
    %10 = arith.addf %8, %9 : vector<2x128xf32>
    %11 = arith.negf %10 : vector<2x128xf32>
    %12 = math.exp %11 : vector<2x128xf32>
    %cst_13 = arith.constant 1.000000e+00 : f32
    %13 = vector.broadcast %cst_13 : f32 to vector<2x128xf32>
    %14 = arith.addf %13, %12 : vector<2x128xf32>
    %15 = arith.divf %13, %14 : vector<2x128xf32>
    %16 = vector.extract_strided_slice %10 {offsets = [0, 64], sizes = [2, 32], strides = [1, 1]} : vector<2x128xf32> to vector<2x32xf32>
    %17 = math.tanh %16 : vector<2x32xf32>
    %18 = vector.extract_strided_slice %15 {offsets = [0, 0], sizes = [2, 32], strides = [1, 1]} : vector<2x128xf32> to vector<2x32xf32>
    %19 = vector.extract_strided_slice %15 {offsets = [0, 32], sizes = [2, 32], strides = [1, 1]} : vector<2x128xf32> to vector<2x32xf32>
    %20 = vector.extract_strided_slice %15 {offsets = [0, 96], sizes = [2, 32], strides = [1, 1]} : vector<2x128xf32> to vector<2x32xf32>
    %21 = arith.mulf %19, %7 : vector<2x32xf32>
    %22 = arith.mulf %18, %17 : vector<2x32xf32>
    %23 = arith.addf %21, %22 : vector<2x32xf32>
    %24 = math.tanh %23 : vector<2x32xf32>
    %25 = arith.mulf %20, %24 : vector<2x32xf32>
    %c2 = arith.constant 2 : index
    %c0_14 = arith.constant 0 : index
    %26 = vector.load %arg6[%c2, %c0_14] : memref<16x128xf32, #tpu.memory_space<vmem>>, vector<2x128xf32>
    %cst_15 = arith.constant dense<0.000000e+00> : vector<2x128xf32>
    %27 = tpu.matmul %25, %5, %cst_15 {dimension_numbers = #tpu.dot_dimension_numbers<[1], [0], [0], [1], [0, 0, 1, 1], [], []>} : vector<2x32xf32>, vector<32x128xf32>, vector<2x128xf32> -> vector<2x128xf32>
    %28 = arith.addf %26, %27 : vector<2x128xf32>
    %29 = arith.negf %28 : vector<2x128xf32>
    %30 = math.exp %29 : vector<2x128xf32>
    %cst_16 = arith.constant 1.000000e+00 : f32
    %31 = vector.broadcast %cst_16 : f32 to vector<2x128xf32>
    %32 = arith.addf %31, %30 : vector<2x128xf32>
    %33 = arith.divf %31, %32 : vector<2x128xf32>
    %34 = vector.extract_strided_slice %28 {offsets = [0, 64], sizes = [2, 32], strides = [1, 1]} : vector<2x128xf32> to vector<2x32xf32>
    %35 = math.tanh %34 : vector<2x32xf32>
    %36 = vector.extract_strided_slice %33 {offsets = [0, 0], sizes = [2, 32], strides = [1, 1]} : vector<2x128xf32> to vector<2x32xf32>
    %37 = vector.extract_strided_slice %33 {offsets = [0, 32], sizes = [2, 32], strides = [1, 1]} : vector<2x128xf32> to vector<2x32xf32>
    %38 = vector.extract_strided_slice %33 {offsets = [0, 96], sizes = [2, 32], strides = [1, 1]} : vector<2x128xf32> to vector<2x32xf32>
    %39 = arith.mulf %37, %23 : vector<2x32xf32>
    %40 = arith.mulf %36, %35 : vector<2x32xf32>
    %41 = arith.addf %39, %40 : vector<2x32xf32>
    %42 = math.tanh %41 : vector<2x32xf32>
    %43 = arith.mulf %38, %42 : vector<2x32xf32>
    %c4 = arith.constant 4 : index
    %c0_17 = arith.constant 0 : index
    %44 = vector.load %arg6[%c4, %c0_17] : memref<16x128xf32, #tpu.memory_space<vmem>>, vector<2x128xf32>
    %cst_18 = arith.constant dense<0.000000e+00> : vector<2x128xf32>
    %45 = tpu.matmul %43, %5, %cst_18 {dimension_numbers = #tpu.dot_dimension_numbers<[1], [0], [0], [1], [0, 0, 1, 1], [], []>} : vector<2x32xf32>, vector<32x128xf32>, vector<2x128xf32> -> vector<2x128xf32>
    %46 = arith.addf %44, %45 : vector<2x128xf32>
    %47 = arith.negf %46 : vector<2x128xf32>
    %48 = math.exp %47 : vector<2x128xf32>
    %cst_19 = arith.constant 1.000000e+00 : f32
    %49 = vector.broadcast %cst_19 : f32 to vector<2x128xf32>
    %50 = arith.addf %49, %48 : vector<2x128xf32>
    %51 = arith.divf %49, %50 : vector<2x128xf32>
    %52 = vector.extract_strided_slice %46 {offsets = [0, 64], sizes = [2, 32], strides = [1, 1]} : vector<2x128xf32> to vector<2x32xf32>
    %53 = math.tanh %52 : vector<2x32xf32>
    %54 = vector.extract_strided_slice %51 {offsets = [0, 0], sizes = [2, 32], strides = [1, 1]} : vector<2x128xf32> to vector<2x32xf32>
    %55 = vector.extract_strided_slice %51 {offsets = [0, 32], sizes = [2, 32], strides = [1, 1]} : vector<2x128xf32> to vector<2x32xf32>
    %56 = vector.extract_strided_slice %51 {offsets = [0, 96], sizes = [2, 32], strides = [1, 1]} : vector<2x128xf32> to vector<2x32xf32>
    %57 = arith.mulf %55, %41 : vector<2x32xf32>
    %58 = arith.mulf %54, %53 : vector<2x32xf32>
    %59 = arith.addf %57, %58 : vector<2x32xf32>
    %60 = math.tanh %59 : vector<2x32xf32>
    %61 = arith.mulf %56, %60 : vector<2x32xf32>
    %c6 = arith.constant 6 : index
    %c0_20 = arith.constant 0 : index
    %62 = vector.load %arg6[%c6, %c0_20] : memref<16x128xf32, #tpu.memory_space<vmem>>, vector<2x128xf32>
    %cst_21 = arith.constant dense<0.000000e+00> : vector<2x128xf32>
    %63 = tpu.matmul %61, %5, %cst_21 {dimension_numbers = #tpu.dot_dimension_numbers<[1], [0], [0], [1], [0, 0, 1, 1], [], []>} : vector<2x32xf32>, vector<32x128xf32>, vector<2x128xf32> -> vector<2x128xf32>
    %64 = arith.addf %62, %63 : vector<2x128xf32>
    %65 = arith.negf %64 : vector<2x128xf32>
    %66 = math.exp %65 : vector<2x128xf32>
    %cst_22 = arith.constant 1.000000e+00 : f32
    %67 = vector.broadcast %cst_22 : f32 to vector<2x128xf32>
    %68 = arith.addf %67, %66 : vector<2x128xf32>
    %69 = arith.divf %67, %68 : vector<2x128xf32>
    %70 = vector.extract_strided_slice %64 {offsets = [0, 64], sizes = [2, 32], strides = [1, 1]} : vector<2x128xf32> to vector<2x32xf32>
    %71 = math.tanh %70 : vector<2x32xf32>
    %72 = vector.extract_strided_slice %69 {offsets = [0, 0], sizes = [2, 32], strides = [1, 1]} : vector<2x128xf32> to vector<2x32xf32>
    %73 = vector.extract_strided_slice %69 {offsets = [0, 32], sizes = [2, 32], strides = [1, 1]} : vector<2x128xf32> to vector<2x32xf32>
    %74 = vector.extract_strided_slice %69 {offsets = [0, 96], sizes = [2, 32], strides = [1, 1]} : vector<2x128xf32> to vector<2x32xf32>
    %75 = arith.mulf %73, %59 : vector<2x32xf32>
    %76 = arith.mulf %72, %71 : vector<2x32xf32>
    %77 = arith.addf %75, %76 : vector<2x32xf32>
    %78 = math.tanh %77 : vector<2x32xf32>
    %79 = arith.mulf %74, %78 : vector<2x32xf32>
    %c8 = arith.constant 8 : index
    %c0_23 = arith.constant 0 : index
    %80 = vector.load %arg6[%c8, %c0_23] : memref<16x128xf32, #tpu.memory_space<vmem>>, vector<2x128xf32>
    %cst_24 = arith.constant dense<0.000000e+00> : vector<2x128xf32>
    %81 = tpu.matmul %79, %5, %cst_24 {dimension_numbers = #tpu.dot_dimension_numbers<[1], [0], [0], [1], [0, 0, 1, 1], [], []>} : vector<2x32xf32>, vector<32x128xf32>, vector<2x128xf32> -> vector<2x128xf32>
    %82 = arith.addf %80, %81 : vector<2x128xf32>
    %83 = arith.negf %82 : vector<2x128xf32>
    %84 = math.exp %83 : vector<2x128xf32>
    %cst_25 = arith.constant 1.000000e+00 : f32
    %85 = vector.broadcast %cst_25 : f32 to vector<2x128xf32>
    %86 = arith.addf %85, %84 : vector<2x128xf32>
    %87 = arith.divf %85, %86 : vector<2x128xf32>
    %88 = vector.extract_strided_slice %82 {offsets = [0, 64], sizes = [2, 32], strides = [1, 1]} : vector<2x128xf32> to vector<2x32xf32>
    %89 = math.tanh %88 : vector<2x32xf32>
    %90 = vector.extract_strided_slice %87 {offsets = [0, 0], sizes = [2, 32], strides = [1, 1]} : vector<2x128xf32> to vector<2x32xf32>
    %91 = vector.extract_strided_slice %87 {offsets = [0, 32], sizes = [2, 32], strides = [1, 1]} : vector<2x128xf32> to vector<2x32xf32>
    %92 = vector.extract_strided_slice %87 {offsets = [0, 96], sizes = [2, 32], strides = [1, 1]} : vector<2x128xf32> to vector<2x32xf32>
    %93 = arith.mulf %91, %77 : vector<2x32xf32>
    %94 = arith.mulf %90, %89 : vector<2x32xf32>
    %95 = arith.addf %93, %94 : vector<2x32xf32>
    %96 = math.tanh %95 : vector<2x32xf32>
    %97 = arith.mulf %92, %96 : vector<2x32xf32>
    %c10 = arith.constant 10 : index
    %c0_26 = arith.constant 0 : index
    %98 = vector.load %arg6[%c10, %c0_26] : memref<16x128xf32, #tpu.memory_space<vmem>>, vector<2x128xf32>
    %cst_27 = arith.constant dense<0.000000e+00> : vector<2x128xf32>
    %99 = tpu.matmul %97, %5, %cst_27 {dimension_numbers = #tpu.dot_dimension_numbers<[1], [0], [0], [1], [0, 0, 1, 1], [], []>} : vector<2x32xf32>, vector<32x128xf32>, vector<2x128xf32> -> vector<2x128xf32>
    %100 = arith.addf %98, %99 : vector<2x128xf32>
    %101 = arith.negf %100 : vector<2x128xf32>
    %102 = math.exp %101 : vector<2x128xf32>
    %cst_28 = arith.constant 1.000000e+00 : f32
    %103 = vector.broadcast %cst_28 : f32 to vector<2x128xf32>
    %104 = arith.addf %103, %102 : vector<2x128xf32>
    %105 = arith.divf %103, %104 : vector<2x128xf32>
    %106 = vector.extract_strided_slice %100 {offsets = [0, 64], sizes = [2, 32], strides = [1, 1]} : vector<2x128xf32> to vector<2x32xf32>
    %107 = math.tanh %106 : vector<2x32xf32>
    %108 = vector.extract_strided_slice %105 {offsets = [0, 0], sizes = [2, 32], strides = [1, 1]} : vector<2x128xf32> to vector<2x32xf32>
    %109 = vector.extract_strided_slice %105 {offsets = [0, 32], sizes = [2, 32], strides = [1, 1]} : vector<2x128xf32> to vector<2x32xf32>
    %110 = vector.extract_strided_slice %105 {offsets = [0, 96], sizes = [2, 32], strides = [1, 1]} : vector<2x128xf32> to vector<2x32xf32>
    %111 = arith.mulf %109, %95 : vector<2x32xf32>
    %112 = arith.mulf %108, %107 : vector<2x32xf32>
    %113 = arith.addf %111, %112 : vector<2x32xf32>
    %114 = math.tanh %113 : vector<2x32xf32>
    %115 = arith.mulf %110, %114 : vector<2x32xf32>
    %c12 = arith.constant 12 : index
    %c0_29 = arith.constant 0 : index
    %116 = vector.load %arg6[%c12, %c0_29] : memref<16x128xf32, #tpu.memory_space<vmem>>, vector<2x128xf32>
    %cst_30 = arith.constant dense<0.000000e+00> : vector<2x128xf32>
    %117 = tpu.matmul %115, %5, %cst_30 {dimension_numbers = #tpu.dot_dimension_numbers<[1], [0], [0], [1], [0, 0, 1, 1], [], []>} : vector<2x32xf32>, vector<32x128xf32>, vector<2x128xf32> -> vector<2x128xf32>
    %118 = arith.addf %116, %117 : vector<2x128xf32>
    %119 = arith.negf %118 : vector<2x128xf32>
    %120 = math.exp %119 : vector<2x128xf32>
    %cst_31 = arith.constant 1.000000e+00 : f32
    %121 = vector.broadcast %cst_31 : f32 to vector<2x128xf32>
    %122 = arith.addf %121, %120 : vector<2x128xf32>
    %123 = arith.divf %121, %122 : vector<2x128xf32>
    %124 = vector.extract_strided_slice %118 {offsets = [0, 64], sizes = [2, 32], strides = [1, 1]} : vector<2x128xf32> to vector<2x32xf32>
    %125 = math.tanh %124 : vector<2x32xf32>
    %126 = vector.extract_strided_slice %123 {offsets = [0, 0], sizes = [2, 32], strides = [1, 1]} : vector<2x128xf32> to vector<2x32xf32>
    %127 = vector.extract_strided_slice %123 {offsets = [0, 32], sizes = [2, 32], strides = [1, 1]} : vector<2x128xf32> to vector<2x32xf32>
    %128 = vector.extract_strided_slice %123 {offsets = [0, 96], sizes = [2, 32], strides = [1, 1]} : vector<2x128xf32> to vector<2x32xf32>
    %129 = arith.mulf %127, %113 : vector<2x32xf32>
    %130 = arith.mulf %126, %125 : vector<2x32xf32>
    %131 = arith.addf %129, %130 : vector<2x32xf32>
    %132 = math.tanh %131 : vector<2x32xf32>
    %133 = arith.mulf %128, %132 : vector<2x32xf32>
    %c14 = arith.constant 14 : index
    %c0_32 = arith.constant 0 : index
    %134 = vector.load %arg6[%c14, %c0_32] : memref<16x128xf32, #tpu.memory_space<vmem>>, vector<2x128xf32>
    %cst_33 = arith.constant dense<0.000000e+00> : vector<2x128xf32>
    %135 = tpu.matmul %133, %5, %cst_33 {dimension_numbers = #tpu.dot_dimension_numbers<[1], [0], [0], [1], [0, 0, 1, 1], [], []>} : vector<2x32xf32>, vector<32x128xf32>, vector<2x128xf32> -> vector<2x128xf32>
    %136 = arith.addf %134, %135 : vector<2x128xf32>
    %137 = arith.negf %136 : vector<2x128xf32>
    %138 = math.exp %137 : vector<2x128xf32>
    %cst_34 = arith.constant 1.000000e+00 : f32
    %139 = vector.broadcast %cst_34 : f32 to vector<2x128xf32>
    %140 = arith.addf %139, %138 : vector<2x128xf32>
    %141 = arith.divf %139, %140 : vector<2x128xf32>
    %142 = vector.extract_strided_slice %136 {offsets = [0, 64], sizes = [2, 32], strides = [1, 1]} : vector<2x128xf32> to vector<2x32xf32>
    %143 = math.tanh %142 : vector<2x32xf32>
    %144 = vector.extract_strided_slice %141 {offsets = [0, 0], sizes = [2, 32], strides = [1, 1]} : vector<2x128xf32> to vector<2x32xf32>
    %145 = vector.extract_strided_slice %141 {offsets = [0, 32], sizes = [2, 32], strides = [1, 1]} : vector<2x128xf32> to vector<2x32xf32>
    %146 = vector.extract_strided_slice %141 {offsets = [0, 96], sizes = [2, 32], strides = [1, 1]} : vector<2x128xf32> to vector<2x32xf32>
    %147 = arith.mulf %145, %131 : vector<2x32xf32>
    %148 = arith.mulf %144, %143 : vector<2x32xf32>
    %149 = arith.addf %147, %148 : vector<2x32xf32>
    %150 = math.tanh %149 : vector<2x32xf32>
    %151 = arith.mulf %146, %150 : vector<2x32xf32>
    %c56 = arith.constant 56 : index
    %c0_35 = arith.constant 0 : index
    %152 = vector.load %arg3[%c56, %c0_35] : memref<344x128xf32, #tpu.memory_space<vmem>>, vector<32x32xf32>
    %cst_36 = arith.constant dense<0.000000e+00> : vector<2x32xf32>
    %153 = tpu.matmul %151, %152, %cst_36 {dimension_numbers = #tpu.dot_dimension_numbers<[1], [0], [0], [1], [0, 0, 1, 1], [], []>} : vector<2x32xf32>, vector<32x32xf32>, vector<2x32xf32> -> vector<2x32xf32>
    %c88 = arith.constant 88 : index
    %c0_37 = arith.constant 0 : index
    %154 = vector.load %arg3[%c88, %c0_37] : memref<344x128xf32, #tpu.memory_space<vmem>>, vector<1x32xf32>
    %155 = vector.broadcast %154 : vector<1x32xf32> to vector<2x32xf32>
    %156 = arith.addf %153, %155 : vector<2x32xf32>
    %cst_38 = arith.constant 0.000000e+00 : f32
    %157 = vector.broadcast %cst_38 : f32 to vector<2x32xf32>
    %158 = arith.maximumf %156, %157 : vector<2x32xf32>
    %c96 = arith.constant 96 : index
    %c0_39 = arith.constant 0 : index
    %159 = vector.load %arg3[%c96, %c0_39] : memref<344x128xf32, #tpu.memory_space<vmem>>, vector<32x8xf32>
    %cst_40 = arith.constant dense<0.000000e+00> : vector<2x8xf32>
    %160 = tpu.matmul %158, %159, %cst_40 {dimension_numbers = #tpu.dot_dimension_numbers<[1], [0], [0], [1], [0, 0, 1, 1], [], []>} : vector<2x32xf32>, vector<32x8xf32>, vector<2x8xf32> -> vector<2x8xf32>
    %c128 = arith.constant 128 : index
    %c0_41 = arith.constant 0 : index
    %161 = vector.load %arg3[%c128, %c0_41] : memref<344x128xf32, #tpu.memory_space<vmem>>, vector<1x8xf32>
    %162 = vector.broadcast %161 : vector<1x8xf32> to vector<2x8xf32>
    %163 = arith.addf %160, %162 : vector<2x8xf32>
    %c136 = arith.constant 136 : index
    %c0_42 = arith.constant 0 : index
    %164 = vector.load %arg3[%c136, %c0_42] : memref<344x128xf32, #tpu.memory_space<vmem>>, vector<32x8xf32>
    %cst_43 = arith.constant dense<0.000000e+00> : vector<2x8xf32>
    %165 = tpu.matmul %158, %164, %cst_43 {dimension_numbers = #tpu.dot_dimension_numbers<[1], [0], [0], [1], [0, 0, 1, 1], [], []>} : vector<2x32xf32>, vector<32x8xf32>, vector<2x8xf32> -> vector<2x8xf32>
    %c168 = arith.constant 168 : index
    %c0_44 = arith.constant 0 : index
    %166 = vector.load %arg3[%c168, %c0_44] : memref<344x128xf32, #tpu.memory_space<vmem>>, vector<1x8xf32>
    %167 = vector.broadcast %166 : vector<1x8xf32> to vector<2x8xf32>
    %168 = arith.addf %165, %167 : vector<2x8xf32>
    %169 = tpu.concatenate %163, %168 in 1 : vector<2x8xf32>, vector<2x8xf32> -> vector<2x16xf32>
    %c0_45 = arith.constant 0 : index
    %c0_46 = arith.constant 0 : index
    %170 = vector.load %arg5[%c0_45, %c0_46] : memref<2x16xf32, #tpu.memory_space<vmem>>, vector<2x16xf32>
    tpu.vector_store %arg5[%c0_45, %c0_46], %169 {strides = array<i32>} : memref<2x16xf32, #tpu.memory_space<vmem>>, vector<2x16xf32>,
    %cst_47 = arith.constant 5.000000e-01 : f32
    %171 = vector.broadcast %cst_47 : f32 to vector<2x8xf32>
    %172 = arith.mulf %171, %168 : vector<2x8xf32>
    %173 = math.exp %172 : vector<2x8xf32>
    %174 = arith.mulf %1, %173 : vector<2x8xf32>
    %175 = arith.addf %163, %174 : vector<2x8xf32>
    %c176 = arith.constant 176 : index
    %c0_48 = arith.constant 0 : index
    %176 = vector.load %arg3[%c176, %c0_48] : memref<344x128xf32, #tpu.memory_space<vmem>>, vector<8x32xf32>
    %cst_49 = arith.constant dense<0.000000e+00> : vector<2x32xf32>
    %177 = tpu.matmul %175, %176, %cst_49 {dimension_numbers = #tpu.dot_dimension_numbers<[1], [0], [0], [1], [0, 0, 1, 1], [], []>} : vector<2x8xf32>, vector<8x32xf32>, vector<2x32xf32> -> vector<2x32xf32>
    %c184 = arith.constant 184 : index
    %c0_50 = arith.constant 0 : index
    %178 = vector.load %arg3[%c184, %c0_50] : memref<344x128xf32, #tpu.memory_space<vmem>>, vector<1x32xf32>
    %179 = vector.broadcast %178 : vector<1x32xf32> to vector<2x32xf32>
    %180 = arith.addf %177, %179 : vector<2x32xf32>
    %c192 = arith.constant 192 : index
    %c0_51 = arith.constant 0 : index
    %181 = vector.load %arg3[%c192, %c0_51] : memref<344x128xf32, #tpu.memory_space<vmem>>, vector<32x32xf32>
    %cst_52 = arith.constant dense<0.000000e+00> : vector<2x32xf32>
    %182 = tpu.matmul %180, %181, %cst_52 {dimension_numbers = #tpu.dot_dimension_numbers<[1], [0], [0], [1], [0, 0, 1, 1], [], []>} : vector<2x32xf32>, vector<32x32xf32>, vector<2x32xf32> -> vector<2x32xf32>
    %c224 = arith.constant 224 : index
    %c0_53 = arith.constant 0 : index
    %183 = vector.load %arg3[%c224, %c0_53] : memref<344x128xf32, #tpu.memory_space<vmem>>, vector<1x32xf32>
    %184 = vector.broadcast %183 : vector<1x32xf32> to vector<2x32xf32>
    %185 = arith.addf %182, %184 : vector<2x32xf32>
    %cst_54 = arith.constant 0.000000e+00 : f32
    %186 = vector.broadcast %cst_54 : f32 to vector<2x32xf32>
    %187 = arith.maximumf %185, %186 : vector<2x32xf32>
    %188 = vector.extract_strided_slice %0 {offsets = [0, 16], sizes = [16, 5], strides = [1, 1]} : vector<16x21xf32> to vector<16x5xf32>
    %c232 = arith.constant 232 : index
    %c0_55 = arith.constant 0 : index
    %189 = vector.load %arg3[%c232, %c0_55] : memref<344x128xf32, #tpu.memory_space<vmem>>, vector<32x128xf32>
    %cst_56 = arith.constant dense<0.000000e+00> : vector<2x128xf32>
    %190 = tpu.matmul %187, %189, %cst_56 {dimension_numbers = #tpu.dot_dimension_numbers<[1], [0], [0], [1], [0, 0, 1, 1], [], []>} : vector<2x32xf32>, vector<32x128xf32>, vector<2x128xf32> -> vector<2x128xf32>
    %c264 = arith.constant 264 : index
    %c0_57 = arith.constant 0 : index
    %191 = vector.load %arg3[%c264, %c0_57] : memref<344x128xf32, #tpu.memory_space<vmem>>, vector<5x128xf32>
    %cst_58 = arith.constant dense<0.000000e+00> : vector<16x128xf32>
    %192 = tpu.matmul %188, %191, %cst_58 {dimension_numbers = #tpu.dot_dimension_numbers<[1], [0], [0], [1], [0, 0, 1, 1], [], []>} : vector<16x5xf32>, vector<5x128xf32>, vector<16x128xf32> -> vector<16x128xf32>
    %193 = tpu.concatenate %190, %190, %190, %190, %190, %190, %190, %190 in 0 : vector<2x128xf32>, vector<2x128xf32>, vector<2x128xf32>, vector<2x128xf32>, vector<2x128xf32>, vector<2x128xf32>, vector<2x128xf32>, vector<2x128xf32> -> vector<16x128xf32>
    %194 = arith.addf %192, %193 : vector<16x128xf32>
    %c0_59 = arith.constant 0 : index
    %c0_60 = arith.constant 0 : index
    %195 = vector.load %arg6[%c0_59, %c0_60] : memref<16x128xf32, #tpu.memory_space<vmem>>, vector<16x128xf32>
    tpu.vector_store %arg6[%c0_59, %c0_60], %194 {strides = array<i32>} : memref<16x128xf32, #tpu.memory_space<vmem>>, vector<16x128xf32>,
    %c272 = arith.constant 272 : index
    %c0_61 = arith.constant 0 : index
    %196 = vector.load %arg3[%c272, %c0_61] : memref<344x128xf32, #tpu.memory_space<vmem>>, vector<32x128xf32>
    %cst_62 = arith.constant 0.000000e+00 : f32
    %197 = vector.broadcast %cst_62 : f32 to vector<2x32xf32>
    %cst_63 = arith.constant 0.000000e+00 : f32
    %198 = vector.broadcast %cst_63 : f32 to vector<2x32xf32>
    %c0_64 = arith.constant 0 : index
    %c0_65 = arith.constant 0 : index
    %199 = vector.load %arg6[%c0_64, %c0_65] : memref<16x128xf32, #tpu.memory_space<vmem>>, vector<2x128xf32>
    %cst_66 = arith.constant dense<0.000000e+00> : vector<2x128xf32>
    %200 = tpu.matmul %197, %196, %cst_66 {dimension_numbers = #tpu.dot_dimension_numbers<[1], [0], [0], [1], [0, 0, 1, 1], [], []>} : vector<2x32xf32>, vector<32x128xf32>, vector<2x128xf32> -> vector<2x128xf32>
    %201 = arith.addf %199, %200 : vector<2x128xf32>
    %202 = arith.negf %201 : vector<2x128xf32>
    %203 = math.exp %202 : vector<2x128xf32>
    %cst_67 = arith.constant 1.000000e+00 : f32
    %204 = vector.broadcast %cst_67 : f32 to vector<2x128xf32>
    %205 = arith.addf %204, %203 : vector<2x128xf32>
    %206 = arith.divf %204, %205 : vector<2x128xf32>
    %207 = vector.extract_strided_slice %201 {offsets = [0, 64], sizes = [2, 32], strides = [1, 1]} : vector<2x128xf32> to vector<2x32xf32>
    %208 = math.tanh %207 : vector<2x32xf32>
    %209 = vector.extract_strided_slice %206 {offsets = [0, 0], sizes = [2, 32], strides = [1, 1]} : vector<2x128xf32> to vector<2x32xf32>
    %210 = vector.extract_strided_slice %206 {offsets = [0, 32], sizes = [2, 32], strides = [1, 1]} : vector<2x128xf32> to vector<2x32xf32>
    %211 = vector.extract_strided_slice %206 {offsets = [0, 96], sizes = [2, 32], strides = [1, 1]} : vector<2x128xf32> to vector<2x32xf32>
    %212 = arith.mulf %210, %198 : vector<2x32xf32>
    %213 = arith.mulf %209, %208 : vector<2x32xf32>
    %214 = arith.addf %212, %213 : vector<2x32xf32>
    %215 = math.tanh %214 : vector<2x32xf32>
    %216 = arith.mulf %211, %215 : vector<2x32xf32>
    %c0_68 = arith.constant 0 : index
    %c0_69 = arith.constant 0 : index
    %217 = vector.load %arg7[%c0_68, %c0_69] : memref<16x32xf32, #tpu.memory_space<vmem>>, vector<2x32xf32>
    tpu.vector_store %arg7[%c0_68, %c0_69], %216 {strides = array<i32>} : memref<16x32xf32, #tpu.memory_space<vmem>>, vector<2x32xf32>,
    %c2_70 = arith.constant 2 : index
    %c0_71 = arith.constant 0 : index
    %218 = vector.load %arg6[%c2_70, %c0_71] : memref<16x128xf32, #tpu.memory_space<vmem>>, vector<2x128xf32>
    %cst_72 = arith.constant dense<0.000000e+00> : vector<2x128xf32>
    %219 = tpu.matmul %216, %196, %cst_72 {dimension_numbers = #tpu.dot_dimension_numbers<[1], [0], [0], [1], [0, 0, 1, 1], [], []>} : vector<2x32xf32>, vector<32x128xf32>, vector<2x128xf32> -> vector<2x128xf32>
    %220 = arith.addf %218, %219 : vector<2x128xf32>
    %221 = arith.negf %220 : vector<2x128xf32>
    %222 = math.exp %221 : vector<2x128xf32>
    %cst_73 = arith.constant 1.000000e+00 : f32
    %223 = vector.broadcast %cst_73 : f32 to vector<2x128xf32>
    %224 = arith.addf %223, %222 : vector<2x128xf32>
    %225 = arith.divf %223, %224 : vector<2x128xf32>
    %226 = vector.extract_strided_slice %220 {offsets = [0, 64], sizes = [2, 32], strides = [1, 1]} : vector<2x128xf32> to vector<2x32xf32>
    %227 = math.tanh %226 : vector<2x32xf32>
    %228 = vector.extract_strided_slice %225 {offsets = [0, 0], sizes = [2, 32], strides = [1, 1]} : vector<2x128xf32> to vector<2x32xf32>
    %229 = vector.extract_strided_slice %225 {offsets = [0, 32], sizes = [2, 32], strides = [1, 1]} : vector<2x128xf32> to vector<2x32xf32>
    %230 = vector.extract_strided_slice %225 {offsets = [0, 96], sizes = [2, 32], strides = [1, 1]} : vector<2x128xf32> to vector<2x32xf32>
    %231 = arith.mulf %229, %214 : vector<2x32xf32>
    %232 = arith.mulf %228, %227 : vector<2x32xf32>
    %233 = arith.addf %231, %232 : vector<2x32xf32>
    %234 = math.tanh %233 : vector<2x32xf32>
    %235 = arith.mulf %230, %234 : vector<2x32xf32>
    %c2_74 = arith.constant 2 : index
    %c0_75 = arith.constant 0 : index
    %236 = vector.load %arg7[%c2_74, %c0_75] : memref<16x32xf32, #tpu.memory_space<vmem>>, vector<2x32xf32>
    tpu.vector_store %arg7[%c2_74, %c0_75], %235 {strides = array<i32>} : memref<16x32xf32, #tpu.memory_space<vmem>>, vector<2x32xf32>,
    %c4_76 = arith.constant 4 : index
    %c0_77 = arith.constant 0 : index
    %237 = vector.load %arg6[%c4_76, %c0_77] : memref<16x128xf32, #tpu.memory_space<vmem>>, vector<2x128xf32>
    %cst_78 = arith.constant dense<0.000000e+00> : vector<2x128xf32>
    %238 = tpu.matmul %235, %196, %cst_78 {dimension_numbers = #tpu.dot_dimension_numbers<[1], [0], [0], [1], [0, 0, 1, 1], [], []>} : vector<2x32xf32>, vector<32x128xf32>, vector<2x128xf32> -> vector<2x128xf32>
    %239 = arith.addf %237, %238 : vector<2x128xf32>
    %240 = arith.negf %239 : vector<2x128xf32>
    %241 = math.exp %240 : vector<2x128xf32>
    %cst_79 = arith.constant 1.000000e+00 : f32
    %242 = vector.broadcast %cst_79 : f32 to vector<2x128xf32>
    %243 = arith.addf %242, %241 : vector<2x128xf32>
    %244 = arith.divf %242, %243 : vector<2x128xf32>
    %245 = vector.extract_strided_slice %239 {offsets = [0, 64], sizes = [2, 32], strides = [1, 1]} : vector<2x128xf32> to vector<2x32xf32>
    %246 = math.tanh %245 : vector<2x32xf32>
    %247 = vector.extract_strided_slice %244 {offsets = [0, 0], sizes = [2, 32], strides = [1, 1]} : vector<2x128xf32> to vector<2x32xf32>
    %248 = vector.extract_strided_slice %244 {offsets = [0, 32], sizes = [2, 32], strides = [1, 1]} : vector<2x128xf32> to vector<2x32xf32>
    %249 = vector.extract_strided_slice %244 {offsets = [0, 96], sizes = [2, 32], strides = [1, 1]} : vector<2x128xf32> to vector<2x32xf32>
    %250 = arith.mulf %248, %233 : vector<2x32xf32>
    %251 = arith.mulf %247, %246 : vector<2x32xf32>
    %252 = arith.addf %250, %251 : vector<2x32xf32>
    %253 = math.tanh %252 : vector<2x32xf32>
    %254 = arith.mulf %249, %253 : vector<2x32xf32>
    %c4_80 = arith.constant 4 : index
    %c0_81 = arith.constant 0 : index
    %255 = vector.load %arg7[%c4_80, %c0_81] : memref<16x32xf32, #tpu.memory_space<vmem>>, vector<2x32xf32>
    tpu.vector_store %arg7[%c4_80, %c0_81], %254 {strides = array<i32>} : memref<16x32xf32, #tpu.memory_space<vmem>>, vector<2x32xf32>,
    %c6_82 = arith.constant 6 : index
    %c0_83 = arith.constant 0 : index
    %256 = vector.load %arg6[%c6_82, %c0_83] : memref<16x128xf32, #tpu.memory_space<vmem>>, vector<2x128xf32>
    %cst_84 = arith.constant dense<0.000000e+00> : vector<2x128xf32>
    %257 = tpu.matmul %254, %196, %cst_84 {dimension_numbers = #tpu.dot_dimension_numbers<[1], [0], [0], [1], [0, 0, 1, 1], [], []>} : vector<2x32xf32>, vector<32x128xf32>, vector<2x128xf32> -> vector<2x128xf32>
    %258 = arith.addf %256, %257 : vector<2x128xf32>
    %259 = arith.negf %258 : vector<2x128xf32>
    %260 = math.exp %259 : vector<2x128xf32>
    %cst_85 = arith.constant 1.000000e+00 : f32
    %261 = vector.broadcast %cst_85 : f32 to vector<2x128xf32>
    %262 = arith.addf %261, %260 : vector<2x128xf32>
    %263 = arith.divf %261, %262 : vector<2x128xf32>
    %264 = vector.extract_strided_slice %258 {offsets = [0, 64], sizes = [2, 32], strides = [1, 1]} : vector<2x128xf32> to vector<2x32xf32>
    %265 = math.tanh %264 : vector<2x32xf32>
    %266 = vector.extract_strided_slice %263 {offsets = [0, 0], sizes = [2, 32], strides = [1, 1]} : vector<2x128xf32> to vector<2x32xf32>
    %267 = vector.extract_strided_slice %263 {offsets = [0, 32], sizes = [2, 32], strides = [1, 1]} : vector<2x128xf32> to vector<2x32xf32>
    %268 = vector.extract_strided_slice %263 {offsets = [0, 96], sizes = [2, 32], strides = [1, 1]} : vector<2x128xf32> to vector<2x32xf32>
    %269 = arith.mulf %267, %252 : vector<2x32xf32>
    %270 = arith.mulf %266, %265 : vector<2x32xf32>
    %271 = arith.addf %269, %270 : vector<2x32xf32>
    %272 = math.tanh %271 : vector<2x32xf32>
    %273 = arith.mulf %268, %272 : vector<2x32xf32>
    %c6_86 = arith.constant 6 : index
    %c0_87 = arith.constant 0 : index
    %274 = vector.load %arg7[%c6_86, %c0_87] : memref<16x32xf32, #tpu.memory_space<vmem>>, vector<2x32xf32>
    tpu.vector_store %arg7[%c6_86, %c0_87], %273 {strides = array<i32>} : memref<16x32xf32, #tpu.memory_space<vmem>>, vector<2x32xf32>,
    %c8_88 = arith.constant 8 : index
    %c0_89 = arith.constant 0 : index
    %275 = vector.load %arg6[%c8_88, %c0_89] : memref<16x128xf32, #tpu.memory_space<vmem>>, vector<2x128xf32>
    %cst_90 = arith.constant dense<0.000000e+00> : vector<2x128xf32>
    %276 = tpu.matmul %273, %196, %cst_90 {dimension_numbers = #tpu.dot_dimension_numbers<[1], [0], [0], [1], [0, 0, 1, 1], [], []>} : vector<2x32xf32>, vector<32x128xf32>, vector<2x128xf32> -> vector<2x128xf32>
    %277 = arith.addf %275, %276 : vector<2x128xf32>
    %278 = arith.negf %277 : vector<2x128xf32>
    %279 = math.exp %278 : vector<2x128xf32>
    %cst_91 = arith.constant 1.000000e+00 : f32
    %280 = vector.broadcast %cst_91 : f32 to vector<2x128xf32>
    %281 = arith.addf %280, %279 : vector<2x128xf32>
    %282 = arith.divf %280, %281 : vector<2x128xf32>
    %283 = vector.extract_strided_slice %277 {offsets = [0, 64], sizes = [2, 32], strides = [1, 1]} : vector<2x128xf32> to vector<2x32xf32>
    %284 = math.tanh %283 : vector<2x32xf32>
    %285 = vector.extract_strided_slice %282 {offsets = [0, 0], sizes = [2, 32], strides = [1, 1]} : vector<2x128xf32> to vector<2x32xf32>
    %286 = vector.extract_strided_slice %282 {offsets = [0, 32], sizes = [2, 32], strides = [1, 1]} : vector<2x128xf32> to vector<2x32xf32>
    %287 = vector.extract_strided_slice %282 {offsets = [0, 96], sizes = [2, 32], strides = [1, 1]} : vector<2x128xf32> to vector<2x32xf32>
    %288 = arith.mulf %286, %271 : vector<2x32xf32>
    %289 = arith.mulf %285, %284 : vector<2x32xf32>
    %290 = arith.addf %288, %289 : vector<2x32xf32>
    %291 = math.tanh %290 : vector<2x32xf32>
    %292 = arith.mulf %287, %291 : vector<2x32xf32>
    %c8_92 = arith.constant 8 : index
    %c0_93 = arith.constant 0 : index
    %293 = vector.load %arg7[%c8_92, %c0_93] : memref<16x32xf32, #tpu.memory_space<vmem>>, vector<2x32xf32>
    tpu.vector_store %arg7[%c8_92, %c0_93], %292 {strides = array<i32>} : memref<16x32xf32, #tpu.memory_space<vmem>>, vector<2x32xf32>,
    %c10_94 = arith.constant 10 : index
    %c0_95 = arith.constant 0 : index
    %294 = vector.load %arg6[%c10_94, %c0_95] : memref<16x128xf32, #tpu.memory_space<vmem>>, vector<2x128xf32>
    %cst_96 = arith.constant dense<0.000000e+00> : vector<2x128xf32>
    %295 = tpu.matmul %292, %196, %cst_96 {dimension_numbers = #tpu.dot_dimension_numbers<[1], [0], [0], [1], [0, 0, 1, 1], [], []>} : vector<2x32xf32>, vector<32x128xf32>, vector<2x128xf32> -> vector<2x128xf32>
    %296 = arith.addf %294, %295 : vector<2x128xf32>
    %297 = arith.negf %296 : vector<2x128xf32>
    %298 = math.exp %297 : vector<2x128xf32>
    %cst_97 = arith.constant 1.000000e+00 : f32
    %299 = vector.broadcast %cst_97 : f32 to vector<2x128xf32>
    %300 = arith.addf %299, %298 : vector<2x128xf32>
    %301 = arith.divf %299, %300 : vector<2x128xf32>
    %302 = vector.extract_strided_slice %296 {offsets = [0, 64], sizes = [2, 32], strides = [1, 1]} : vector<2x128xf32> to vector<2x32xf32>
    %303 = math.tanh %302 : vector<2x32xf32>
    %304 = vector.extract_strided_slice %301 {offsets = [0, 0], sizes = [2, 32], strides = [1, 1]} : vector<2x128xf32> to vector<2x32xf32>
    %305 = vector.extract_strided_slice %301 {offsets = [0, 32], sizes = [2, 32], strides = [1, 1]} : vector<2x128xf32> to vector<2x32xf32>
    %306 = vector.extract_strided_slice %301 {offsets = [0, 96], sizes = [2, 32], strides = [1, 1]} : vector<2x128xf32> to vector<2x32xf32>
    %307 = arith.mulf %305, %290 : vector<2x32xf32>
    %308 = arith.mulf %304, %303 : vector<2x32xf32>
    %309 = arith.addf %307, %308 : vector<2x32xf32>
    %310 = math.tanh %309 : vector<2x32xf32>
    %311 = arith.mulf %306, %310 : vector<2x32xf32>
    %c10_98 = arith.constant 10 : index
    %c0_99 = arith.constant 0 : index
    %312 = vector.load %arg7[%c10_98, %c0_99] : memref<16x32xf32, #tpu.memory_space<vmem>>, vector<2x32xf32>
    tpu.vector_store %arg7[%c10_98, %c0_99], %311 {strides = array<i32>} : memref<16x32xf32, #tpu.memory_space<vmem>>, vector<2x32xf32>,
    %c12_100 = arith.constant 12 : index
    %c0_101 = arith.constant 0 : index
    %313 = vector.load %arg6[%c12_100, %c0_101] : memref<16x128xf32, #tpu.memory_space<vmem>>, vector<2x128xf32>
    %cst_102 = arith.constant dense<0.000000e+00> : vector<2x128xf32>
    %314 = tpu.matmul %311, %196, %cst_102 {dimension_numbers = #tpu.dot_dimension_numbers<[1], [0], [0], [1], [0, 0, 1, 1], [], []>} : vector<2x32xf32>, vector<32x128xf32>, vector<2x128xf32> -> vector<2x128xf32>
    %315 = arith.addf %313, %314 : vector<2x128xf32>
    %316 = arith.negf %315 : vector<2x128xf32>
    %317 = math.exp %316 : vector<2x128xf32>
    %cst_103 = arith.constant 1.000000e+00 : f32
    %318 = vector.broadcast %cst_103 : f32 to vector<2x128xf32>
    %319 = arith.addf %318, %317 : vector<2x128xf32>
    %320 = arith.divf %318, %319 : vector<2x128xf32>
    %321 = vector.extract_strided_slice %315 {offsets = [0, 64], sizes = [2, 32], strides = [1, 1]} : vector<2x128xf32> to vector<2x32xf32>
    %322 = math.tanh %321 : vector<2x32xf32>
    %323 = vector.extract_strided_slice %320 {offsets = [0, 0], sizes = [2, 32], strides = [1, 1]} : vector<2x128xf32> to vector<2x32xf32>
    %324 = vector.extract_strided_slice %320 {offsets = [0, 32], sizes = [2, 32], strides = [1, 1]} : vector<2x128xf32> to vector<2x32xf32>
    %325 = vector.extract_strided_slice %320 {offsets = [0, 96], sizes = [2, 32], strides = [1, 1]} : vector<2x128xf32> to vector<2x32xf32>
    %326 = arith.mulf %324, %309 : vector<2x32xf32>
    %327 = arith.mulf %323, %322 : vector<2x32xf32>
    %328 = arith.addf %326, %327 : vector<2x32xf32>
    %329 = math.tanh %328 : vector<2x32xf32>
    %330 = arith.mulf %325, %329 : vector<2x32xf32>
    %c12_104 = arith.constant 12 : index
    %c0_105 = arith.constant 0 : index
    %331 = vector.load %arg7[%c12_104, %c0_105] : memref<16x32xf32, #tpu.memory_space<vmem>>, vector<2x32xf32>
    tpu.vector_store %arg7[%c12_104, %c0_105], %330 {strides = array<i32>} : memref<16x32xf32, #tpu.memory_space<vmem>>, vector<2x32xf32>,
    %c14_106 = arith.constant 14 : index
    %c0_107 = arith.constant 0 : index
    %332 = vector.load %arg6[%c14_106, %c0_107] : memref<16x128xf32, #tpu.memory_space<vmem>>, vector<2x128xf32>
    %cst_108 = arith.constant dense<0.000000e+00> : vector<2x128xf32>
    %333 = tpu.matmul %330, %196, %cst_108 {dimension_numbers = #tpu.dot_dimension_numbers<[1], [0], [0], [1], [0, 0, 1, 1], [], []>} : vector<2x32xf32>, vector<32x128xf32>, vector<2x128xf32> -> vector<2x128xf32>
    %334 = arith.addf %332, %333 : vector<2x128xf32>
    %335 = arith.negf %334 : vector<2x128xf32>
    %336 = math.exp %335 : vector<2x128xf32>
    %cst_109 = arith.constant 1.000000e+00 : f32
    %337 = vector.broadcast %cst_109 : f32 to vector<2x128xf32>
    %338 = arith.addf %337, %336 : vector<2x128xf32>
    %339 = arith.divf %337, %338 : vector<2x128xf32>
    %340 = vector.extract_strided_slice %334 {offsets = [0, 64], sizes = [2, 32], strides = [1, 1]} : vector<2x128xf32> to vector<2x32xf32>
    %341 = math.tanh %340 : vector<2x32xf32>
    %342 = vector.extract_strided_slice %339 {offsets = [0, 0], sizes = [2, 32], strides = [1, 1]} : vector<2x128xf32> to vector<2x32xf32>
    %343 = vector.extract_strided_slice %339 {offsets = [0, 32], sizes = [2, 32], strides = [1, 1]} : vector<2x128xf32> to vector<2x32xf32>
    %344 = vector.extract_strided_slice %339 {offsets = [0, 96], sizes = [2, 32], strides = [1, 1]} : vector<2x128xf32> to vector<2x32xf32>
    %345 = arith.mulf %343, %328 : vector<2x32xf32>
    %346 = arith.mulf %342, %341 : vector<2x32xf32>
    %347 = arith.addf %345, %346 : vector<2x32xf32>
    %348 = math.tanh %347 : vector<2x32xf32>
    %349 = arith.mulf %344, %348 : vector<2x32xf32>
    %c14_110 = arith.constant 14 : index
    %c0_111 = arith.constant 0 : index
    %350 = vector.load %arg7[%c14_110, %c0_111] : memref<16x32xf32, #tpu.memory_space<vmem>>, vector<2x32xf32>
    tpu.vector_store %arg7[%c14_110, %c0_111], %349 {strides = array<i32>} : memref<16x32xf32, #tpu.memory_space<vmem>>, vector<2x32xf32>,
    %c0_112 = arith.constant 0 : index
    %c0_113 = arith.constant 0 : index
    %351 = vector.load %arg7[%c0_112, %c0_113] : memref<16x32xf32, #tpu.memory_space<vmem>>, vector<16x32xf32>
    %c304 = arith.constant 304 : index
    %c0_114 = arith.constant 0 : index
    %352 = vector.load %arg3[%c304, %c0_114] : memref<344x128xf32, #tpu.memory_space<vmem>>, vector<32x128xf32>
    %cst_115 = arith.constant dense<0.000000e+00> : vector<16x128xf32>
    %353 = tpu.matmul %351, %352, %cst_115 {dimension_numbers = #tpu.dot_dimension_numbers<[1], [0], [0], [1], [0, 0, 1, 1], [], []>} : vector<16x32xf32>, vector<32x128xf32>, vector<16x128xf32> -> vector<16x128xf32>
    %c336 = arith.constant 336 : index
    %c0_116 = arith.constant 0 : index
    %354 = vector.load %arg3[%c336, %c0_116] : memref<344x128xf32, #tpu.memory_space<vmem>>, vector<1x128xf32>
    %355 = vector.broadcast %354 : vector<1x128xf32> to vector<16x128xf32>
    %356 = arith.addf %353, %355 : vector<16x128xf32>
    %c0_117 = arith.constant 0 : index
    %c0_118 = arith.constant 0 : index
    %357 = vector.load %arg4[%c0_117, %c0_118] : memref<16x128xf32, #tpu.memory_space<vmem>>, vector<16x128xf32>
    tpu.vector_store %arg4[%c0_117, %c0_118], %356 {strides = array<i32>} : memref<16x128xf32, #tpu.memory_space<vmem>>, vector<16x128xf32>,
    return
  }
  func.func @transform_0(%arg0: i32) -> (i32, i32) {
    %c0_i32 = arith.constant 0 : i32
    %c0_i32_0 = arith.constant 0 : i32
    %c0_i32_1 = arith.constant 0 : i32
    return %c0_i32, %c0_i32_0 : i32, i32
  }
  func.func @transform_1(%arg0: i32) -> (i32, i32) {
    %c0_i32 = arith.constant 0 : i32
    %c0_i32_0 = arith.constant 0 : i32
    %c0_i32_1 = arith.constant 0 : i32
    return %c0_i32, %c0_i32_0 : i32, i32
  }
  func.func @transform_2(%arg0: i32) -> (i32, i32) {
    %c0_i32 = arith.constant 0 : i32
    %c0_i32_0 = arith.constant 0 : i32
    %c0_i32_1 = arith.constant 0 : i32
    return %c0_i32, %c0_i32_0 : i32, i32
  }
  func.func @transform_3(%arg0: i32) -> (i32, i32) {
    %c0_i32 = arith.constant 0 : i32
    %c0_i32_0 = arith.constant 0 : i32
    %c0_i32_1 = arith.constant 0 : i32
    return %c0_i32, %c0_i32_0 : i32, i32
  }
  func.func @transform_4(%arg0: i32) -> (i32, i32) {
    %c0_i32 = arith.constant 0 : i32
    %c0_i32_0 = arith.constant 0 : i32
    %c0_i32_1 = arith.constant 0 : i32
    return %c0_i32, %c0_i32_0 : i32, i32
  }
}

</mosaic_0001>

<llo_original>
// kernel: forward.1
$region0: #{forward.1}
  #allocation0 [shape = 'u32[]', space=smem, size = 0x4, offset = 0x4, fixed_abs, tag = 'smem constant byte address 0x4 - core index']
  #allocation1 [shape = 'u32[144,128]{1,0:T(1,128)}', space=vmem, size = 0x12000, scoped, tag = 'internal scratch']
  #allocation2 [shape = 'f32[16,128]{1,0:T(8,128)}', space=vmem, size = 0x2000, scoped, tag = 'scratch operand']
  #allocation3 [shape = 'f32[16,32]{1,0:T(8,128)}', space=vmem, size = 0x2000, scoped, tag = 'scratch operand']
  %s0 = inlined_call_operand.vmem [shape: f32[16,21], index: 0, kind: input, shape index: {}]
  %s1 = inlined_call_operand.vmem [shape: f32[2,8], index: 1, kind: input, shape index: {}]
  %s2 = inlined_call_operand.hbm [shape: f32[344,128], index: 2, kind: input, shape index: {}]
  %s3 = inlined_call_operand.vmem [shape: f32[16,128], index: 3, kind: output, shape index: {0}]
  %s4 = inlined_call_operand.vmem [shape: f32[2,16], index: 4, kind: output, shape index: {1}]
  %5 = xla_tuple %s3, %s4
  %s6 = sld [smem:[#allocation0]]
  $region34: #{forward.1} parent=0
    _
  %s8 = ssub.s32 1, %s6
  %s9 = scalar_select 0, %s8, %s6
  $region1: #{forward.1} parent=0
    #allocation4 [shape = 'u8[176128]{0}', space=vmem, size = 0x2b000, scoped, tag = 'input window, operand 2, single buffered']
    #allocation5 [shape = 's32[1]{0}', space=sflag, size = 0x4, scoped, tag = 'scoped memory for forward.1']
    %10 = vsyncpa [#allocation5], 0
    // Predicated region
    $region2: #{forward.1} parent=1 // pred_check
      _
    $region3: #{forward.1} parent=1 // pred_check_branch
      %12 = sbr.rel (0) target = $region5
    $region4: #{forward.1} parent=1 // pred_region
      _
    $region5: #{forward.1} parent=1 // pred_fallthru
      _
    // Predicated region
    $region6: #{forward.1} parent=1 // pred_check
      _
    $region7: #{forward.1} parent=1 // pred_check_branch
      %14 = sbr.rel (0) target = $region9
    $region8: #{forward.1} parent=1 // pred_region
      _
    $region9: #{forward.1} parent=1 // pred_fallthru
      _
    // Predicated region
    $region10: #{forward.1} parent=1 // pred_check
      _
    $region11: #{forward.1} parent=1 // pred_check_branch
      %16 = sbr.rel (0) target = $region13
    $region12: #{forward.1} parent=1 // pred_region
      %s18 = ssub.s32 5504, 5504
      %19 = vsyncadd [#allocation5], %s18
      %s20 = sshll.u32 [#allocation4], 4
      %s21 = int_to_ptr.vmem [resolvable:$true] %s20
      %26 = dma.hbm_to_vmem [thread:$0]  %s2, 5504, %s21, [#allocation5], 128, 128, 8
    $region13: #{forward.1} parent=1 // pred_fallthru
      _
    // Predicated region
    $region14: #{forward.1} parent=1 // pred_check
      _
    $region15: #{forward.1} parent=1 // pred_check_branch
      %28 = sbr.rel (0) target = $region17
    $region16: #{forward.1} parent=1 // pred_region
      %29 = dma.done [#allocation5], 5504
    $region17: #{forward.1} parent=1 // pred_fallthru
      _
    %v30 = vld [vmem:[%s0] sm:$0xff]
    %v31 = vld [vmem:[%s0 + $0x8] sm:$0xff]
    %v32 = vld [vmem:[%s1] sm:$0x3]
    %v33 = vld [vmem:[#allocation4] sm:$0xff]
    %v34 = vld [vmem:[#allocation4 + $0x8] sm:$0xff]
    %v35 = vld [vmem:[#allocation4 + $0x10] sm:$0x1f]
    %vm36 = vcmask 171008
    %v38 = vsel %vm36, %v30, 0
    %v41 = vsel %vm36, %v31, 0
    %vm43 = vcmask 1044480
    %v45 = vsel %vm43, %v35, 0
    %47 = vmatprep.subr.mxu0 0.0
    %48 = vmatpush1.msra.mxu0 0.0
    %49 = vmatprep.subr.mxu0 0.0
    %50 = vmatpush1.msra.mxu0 0.0
    %51 = vmatprep.subr.mxu0 0.0
    %52 = vmatpush1.msra.mxu0 0.0
    %53 = vmatprep.subr.mxu0 0.0
    %54 = vmatpush1.msra.mxu0 0.0
    %55 = vmatprep.subr.mxu0 0.0
    %56 = vmatpush1.msra.mxu0 0.0
    %57 = vmatprep.subr.mxu0 0.0
    %58 = vmatpush1.msra.mxu0 0.0
    %59 = vmatprep.subr.mxu0 0.0
    %60 = vmatpush1.msra.mxu0 0.0
    %61 = vmatprep.subr.mxu0 0.0
    %62 = vmatpush1.msra.mxu0 0.0
    %63 = vmatprep.subr.mxu0 0.0
    %64 = vmatpush1.msra.mxu0 0.0
    %65 = vmatprep.subr.mxu0 0.0
    %66 = vmatpush1.msra.mxu0 0.0
    %67 = vmatprep.subr.mxu0 0.0
    %68 = vmatpush1.msra.mxu0 0.0
    %69 = vmatprep.subr.mxu0 0.0
    %70 = vmatpush1.msra.mxu0 0.0
    %71 = vmatprep.subr.mxu0 0.0
    %72 = vmatpush1.msra.mxu0 0.0
    %73 = vmatprep.subr.mxu0 0.0
    %74 = vmatpush1.msra.mxu0 %v45
    %75 = vmatprep.subr.mxu0 0.0
    %76 = vmatpush1.msra.mxu0 %v34
    %77 = vmatprep.subr.mxu0 0.0
    %78 = vmatpush1.msra.mxu0 %v33
    %79 = vmatprep.subr.mxu0 0.0
    %80 = vmatpush2.msra.mxu0 0.0
    %81 = vmatprep.subr.mxu0 0.0
    %82 = vmatpush2.msra.mxu0 0.0
    %83 = vmatprep.subr.mxu0 0.0
    %84 = vmatpush2.msra.mxu0 0.0
    %85 = vmatprep.subr.mxu0 0.0
    %86 = vmatpush2.msra.mxu0 0.0
    %87 = vmatprep.subr.mxu0 0.0
    %88 = vmatpush2.msra.mxu0 0.0
    %89 = vmatprep.subr.mxu0 0.0
    %90 = vmatpush2.msra.mxu0 0.0
    %91 = vmatprep.subr.mxu0 0.0
    %92 = vmatpush2.msra.mxu0 0.0
    %93 = vmatprep.subr.mxu0 0.0
    %94 = vmatpush2.msra.mxu0 0.0
    %95 = vmatprep.subr.mxu0 0.0
    %96 = vmatpush2.msra.mxu0 0.0
    %97 = vmatprep.subr.mxu0 0.0
    %98 = vmatpush2.msra.mxu0 0.0
    %99 = vmatprep.subr.mxu0 0.0
    %100 = vmatpush2.msra.mxu0 0.0
    %101 = vmatprep.subr.mxu0 0.0
    %102 = vmatpush2.msra.mxu0 0.0
    %103 = vmatprep.subr.mxu0 0.0
    %104 = vmatpush2.msra.mxu0 0.0
    %105 = vmatprep.subr.mxu0 0.0
    %106 = vmatpush2.msra.mxu0 0.0
    %107 = vmatprep.subr.mxu0 0.0
    %108 = vmatpush2.msra.mxu0 0.0
    %109 = vmatprep.subr.mxu0 0.0
    %110 = vmatpush2.msra.mxu0 0.0
    %111 = vmatprep.mubr.f32.mxu0 0.0
    %112 = vmatmul.mubr.f32.gmra.mxu0 %v38
    %v113 = vpop.f32.mrf.mxu0
    %v114 = vadd.f32 0.0, %v113
    %v115 = vpop.f32.mrf.mxu0
    %116 = vmatprep.mubr.f32.mxu0 0.0
    %117 = vmatmul.mubr.f32.gmra.mxu0 %v41
    %v118 = vpop.f32.mrf.mxu0
    %v119 = vadd.f32 0.0, %v118
    %v120 = vpop.f32.mrf.mxu0
    %121 = vdwg.mxu0
    %122 = vst [vmem:[#allocation2] sm:$0xff] %v114
    %123 = vst [vmem:[#allocation2 + $0x8] sm:$0xff] %v119
    %v124 = vld [vmem:[#allocation4 + $0x18] sm:$0xff]
    %v125 = vld [vmem:[#allocation4 + $0x20] sm:$0xff]
    %v126 = vld [vmem:[#allocation4 + $0x28] sm:$0xff]
    %v127 = vld [vmem:[#allocation4 + $0x30] sm:$0xff]
    %v128 = vld [vmem:[#allocation2] sm:$0x3]
    %vm129 = vcmask 261120
    %v131 = vsel %vm129, 0.0, 0
    %133 = vmatprep.subr.mxu0 0.0
    %134 = vmatpush1.msra.mxu0 0.0
    %135 = vmatprep.subr.mxu0 0.0
    %136 = vmatpush1.msra.mxu0 0.0
    %137 = vmatprep.subr.mxu0 0.0
    %138 = vmatpush1.msra.mxu0 0.0
    %139 = vmatprep.subr.mxu0 0.0
    %140 = vmatpush1.msra.mxu0 0.0
    %141 = vmatprep.subr.mxu0 0.0
    %142 = vmatpush1.msra.mxu0 0.0
    %143 = vmatprep.subr.mxu0 0.0
    %144 = vmatpush1.msra.mxu0 0.0
    %145 = vmatprep.subr.mxu0 0.0
    %146 = vmatpush1.msra.mxu0 0.0
    %147 = vmatprep.subr.mxu0 0.0
    %148 = vmatpush1.msra.mxu0 0.0
    %149 = vmatprep.subr.mxu0 0.0
    %150 = vmatpush1.msra.mxu0 0.0
    %151 = vmatprep.subr.mxu0 0.0
    %152 = vmatpush1.msra.mxu0 0.0
    %153 = vmatprep.subr.mxu0 0.0
    %154 = vmatpush1.msra.mxu0 0.0
    %155 = vmatprep.subr.mxu0 0.0
    %156 = vmatpush1.msra.mxu0 0.0
    %157 = vmatprep.subr.mxu0 0.0
    %158 = vmatpush1.msra.mxu0 %v127
    %159 = vmatprep.subr.mxu0 0.0
    %160 = vmatpush1.msra.mxu0 %v126
    %161 = vmatprep.subr.mxu0 0.0
    %162 = vmatpush1.msra.mxu0 %v125
    %163 = vmatprep.subr.mxu0 0.0
    %164 = vmatpush1.msra.mxu0 %v124
    %165 = vmatprep.subr.mxu0 0.0
    %166 = vmatpush2.msra.mxu0 0.0
    %167 = vmatprep.subr.mxu0 0.0
    %168 = vmatpush2.msra.mxu0 0.0
    %169 = vmatprep.subr.mxu0 0.0
    %170 = vmatpush2.msra.mxu0 0.0
    %171 = vmatprep.subr.mxu0 0.0
    %172 = vmatpush2.msra.mxu0 0.0
    %173 = vmatprep.subr.mxu0 0.0
    %174 = vmatpush2.msra.mxu0 0.0
    %175 = vmatprep.subr.mxu0 0.0
    %176 = vmatpush2.msra.mxu0 0.0
    %177 = vmatprep.subr.mxu0 0.0
    %178 = vmatpush2.msra.mxu0 0.0
    %179 = vmatprep.subr.mxu0 0.0
    %180 = vmatpush2.msra.mxu0 0.0
    %181 = vmatprep.subr.mxu0 0.0
    %182 = vmatpush2.msra.mxu0 0.0
    %183 = vmatprep.subr.mxu0 0.0
    %184 = vmatpush2.msra.mxu0 0.0
    %185 = vmatprep.subr.mxu0 0.0
    %186 = vmatpush2.msra.mxu0 0.0
    %187 = vmatprep.subr.mxu0 0.0
    %188 = vmatpush2.msra.mxu0 0.0
    %189 = vmatprep.subr.mxu0 0.0
    %190 = vmatpush2.msra.mxu0 0.0
    %191 = vmatprep.subr.mxu0 0.0
    %192 = vmatpush2.msra.mxu0 0.0
    %193 = vmatprep.subr.mxu0 0.0
    %194 = vmatpush2.msra.mxu0 0.0
    %195 = vmatprep.subr.mxu0 0.0
    %196 = vmatpush2.msra.mxu0 0.0
    %197 = vmatprep.mubr.f32.mxu0 0.0
    %198 = vmatmul.mubr.f32.gmra.mxu0 %v131
    %v199 = vpop.f32.mrf.mxu0
    %v200 = vadd.f32 0.0, %v199
    %v201 = vpop.f32.mrf.mxu0
    %202 = vdwg.mxu0
    %v203 = vadd.f32 %v128, %v200
    %v204 = vxor.u32 %v203, 2147483648
    %v205 = vmul.f32 %v204, 1.442695
    %v206 = vpow.pop %v205
    %v207 = vadd.f32 %v206, 1.0
    %v208 = vrcp.pop %v207
    %v209 = vmul.f32 1.0, %v208
    %v210 = vtanh.pop %v203
    %v211 = vmul.f32 %v209, 0.0
    %213 = vrot.lane.b32.xlu0 %v210, 64
    %v214 = vpop.permute.xlu0 %213
    %v216 = vmul.f32 %v209, %v214
    %218 = vrot.lane.b32.xlu0 %v216, 32
    %v219 = vpop.permute.xlu0 %218
    %v221 = vadd.f32 %v211, %v219
    %v222 = vtanh.pop %v221
    %224 = vrot.lane.b32.xlu0 %v222, 64
    %v225 = vpop.permute.xlu0 %224
    %v227 = vmul.f32 %v209, %v225
    %v228 = vld [vmem:[#allocation2 + $0x2] sm:$0x3]
    %230 = vrot.lane.b32.xlu0 %v227, 32
    %v231 = vpop.permute.xlu0 %230
    %v232 = vsel %vm129, %v231, 0
    %234 = vmatprep.subr.mxu0 0.0
    %235 = vmatpush1.msra.mxu0 0.0
    %236 = vmatprep.subr.mxu0 0.0
    %237 = vmatpush1.msra.mxu0 0.0
    %238 = vmatprep.subr.mxu0 0.0
    %239 = vmatpush1.msra.mxu0 0.0
    %240 = vmatprep.subr.mxu0 0.0
    %241 = vmatpush1.msra.mxu0 0.0
    %242 = vmatprep.subr.mxu0 0.0
    %243 = vmatpush1.msra.mxu0 0.0
    %244 = vmatprep.subr.mxu0 0.0
    %245 = vmatpush1.msra.mxu0 0.0
    %246 = vmatprep.subr.mxu0 0.0
    %247 = vmatpush1.msra.mxu0 0.0
    %248 = vmatprep.subr.mxu0 0.0
    %249 = vmatpush1.msra.mxu0 0.0
    %250 = vmatprep.subr.mxu0 0.0
    %251 = vmatpush1.msra.mxu0 0.0
    %252 = vmatprep.subr.mxu0 0.0
    %253 = vmatpush1.msra.mxu0 0.0
    %254 = vmatprep.subr.mxu0 0.0
    %255 = vmatpush1.msra.mxu0 0.0
    %256 = vmatprep.subr.mxu0 0.0
    %257 = vmatpush1.msra.mxu0 0.0
    %258 = vmatprep.subr.mxu0 0.0
    %259 = vmatpush1.msra.mxu0 %v127
    %260 = vmatprep.subr.mxu0 0.0
    %261 = vmatpush1.msra.mxu0 %v126
    %262 = vmatprep.subr.mxu0 0.0
    %263 = vmatpush1.msra.mxu0 %v125
    %264 = vmatprep.subr.mxu0 0.0
    %265 = vmatpush1.msra.mxu0 %v124
    %266 = vmatprep.subr.mxu0 0.0
    %267 = vmatpush2.msra.mxu0 0.0
    %268 = vmatprep.subr.mxu0 0.0
    %269 = vmatpush2.msra.mxu0 0.0
    %270 = vmatprep.subr.mxu0 0.0
    %271 = vmatpush2.msra.mxu0 0.0
    %272 = vmatprep.subr.mxu0 0.0
    %273 = vmatpush2.msra.mxu0 0.0
    %274 = vmatprep.subr.mxu0 0.0
    %275 = vmatpush2.msra.mxu0 0.0
    %276 = vmatprep.subr.mxu0 0.0
    %277 = vmatpush2.msra.mxu0 0.0
    %278 = vmatprep.subr.mxu0 0.0
    %279 = vmatpush2.msra.mxu0 0.0
    %280 = vmatprep.subr.mxu0 0.0
    %281 = vmatpush2.msra.mxu0 0.0
    %282 = vmatprep.subr.mxu0 0.0
    %283 = vmatpush2.msra.mxu0 0.0
    %284 = vmatprep.subr.mxu0 0.0
    %285 = vmatpush2.msra.mxu0 0.0
    %286 = vmatprep.subr.mxu0 0.0
    %287 = vmatpush2.msra.mxu0 0.0
    %288 = vmatprep.subr.mxu0 0.0
    %289 = vmatpush2.msra.mxu0 0.0
    %290 = vmatprep.subr.mxu0 0.0
    %291 = vmatpush2.msra.mxu0 0.0
    %292 = vmatprep.subr.mxu0 0.0
    %293 = vmatpush2.msra.mxu0 0.0
    %294 = vmatprep.subr.mxu0 0.0
    %295 = vmatpush2.msra.mxu0 0.0
    %296 = vmatprep.subr.mxu0 0.0
    %297 = vmatpush2.msra.mxu0 0.0
    %298 = vmatprep.mubr.f32.mxu0 0.0
    %299 = vmatmul.mubr.f32.gmra.mxu0 %v232
    %v300 = vpop.f32.mrf.mxu0
    %v301 = vadd.f32 0.0, %v300
    %v302 = vpop.f32.mrf.mxu0
    %303 = vdwg.mxu0
    %v304 = vadd.f32 %v228, %v301
    %v305 = vxor.u32 %v304, 2147483648
    %v306 = vmul.f32 %v305, 1.442695
    %v307 = vpow.pop %v306
    %v308 = vadd.f32 %v307, 1.0
    %v309 = vrcp.pop %v308
    %v310 = vmul.f32 1.0, %v309
    %v311 = vtanh.pop %v304
    %v312 = vmul.f32 %v310, %v221
    %314 = vrot.lane.b32.xlu0 %v311, 64
    %v315 = vpop.permute.xlu0 %314
    %v317 = vmul.f32 %v310, %v315
    %319 = vrot.lane.b32.xlu0 %v317, 32
    %v320 = vpop.permute.xlu0 %319
    %v322 = vadd.f32 %v312, %v320
    %v323 = vtanh.pop %v322
    %325 = vrot.lane.b32.xlu0 %v323, 64
    %v326 = vpop.permute.xlu0 %325
    %v328 = vmul.f32 %v310, %v326
    %v329 = vld [vmem:[#allocation2 + $0x4] sm:$0x3]
    %331 = vrot.lane.b32.xlu0 %v328, 32
    %v332 = vpop.permute.xlu0 %331
    %v333 = vsel %vm129, %v332, 0
    %335 = vmatprep.subr.mxu0 0.0
    %336 = vmatpush1.msra.mxu0 0.0
    %337 = vmatprep.subr.mxu0 0.0
    %338 = vmatpush1.msra.mxu0 0.0
    %339 = vmatprep.subr.mxu0 0.0
    %340 = vmatpush1.msra.mxu0 0.0
    %341 = vmatprep.subr.mxu0 0.0
    %342 = vmatpush1.msra.mxu0 0.0
    %343 = vmatprep.subr.mxu0 0.0
    %344 = vmatpush1.msra.mxu0 0.0
    %345 = vmatprep.subr.mxu0 0.0
    %346 = vmatpush1.msra.mxu0 0.0
    %347 = vmatprep.subr.mxu0 0.0
    %348 = vmatpush1.msra.mxu0 0.0
    %349 = vmatprep.subr.mxu0 0.0
    %350 = vmatpush1.msra.mxu0 0.0
    %351 = vmatprep.subr.mxu0 0.0
    %352 = vmatpush1.msra.mxu0 0.0
    %353 = vmatprep.subr.mxu0 0.0
    %354 = vmatpush1.msra.mxu0 0.0
    %355 = vmatprep.subr.mxu0 0.0
    %356 = vmatpush1.msra.mxu0 0.0
    %357 = vmatprep.subr.mxu0 0.0
    %358 = vmatpush1.msra.mxu0 0.0
    %359 = vmatprep.subr.mxu0 0.0
    %360 = vmatpush1.msra.mxu0 %v127
    %361 = vmatprep.subr.mxu0 0.0
    %362 = vmatpush1.msra.mxu0 %v126
    %363 = vmatprep.subr.mxu0 0.0
    %364 = vmatpush1.msra.mxu0 %v125
    %365 = vmatprep.subr.mxu0 0.0
    %366 = vmatpush1.msra.mxu0 %v124
    %367 = vmatprep.subr.mxu0 0.0
    %368 = vmatpush2.msra.mxu0 0.0
    %369 = vmatprep.subr.mxu0 0.0
    %370 = vmatpush2.msra.mxu0 0.0
    %371 = vmatprep.subr.mxu0 0.0
    %372 = vmatpush2.msra.mxu0 0.0
    %373 = vmatprep.subr.mxu0 0.0
    %374 = vmatpush2.msra.mxu0 0.0
    %375 = vmatprep.subr.mxu0 0.0
    %376 = vmatpush2.msra.mxu0 0.0
    %377 = vmatprep.subr.mxu0 0.0
    %378 = vmatpush2.msra.mxu0 0.0
    %379 = vmatprep.subr.mxu0 0.0
    %380 = vmatpush2.msra.mxu0 0.0
    %381 = vmatprep.subr.mxu0 0.0
    %382 = vmatpush2.msra.mxu0 0.0
    %383 = vmatprep.subr.mxu0 0.0
    %384 = vmatpush2.msra.mxu0 0.0
    %385 = vmatprep.subr.mxu0 0.0
    %386 = vmatpush2.msra.mxu0 0.0
    %387 = vmatprep.subr.mxu0 0.0
    %388 = vmatpush2.msra.mxu0 0.0
    %389 = vmatprep.subr.mxu0 0.0
    %390 = vmatpush2.msra.mxu0 0.0
    %391 = vmatprep.subr.mxu0 0.0
    %392 = vmatpush2.msra.mxu0 0.0
    %393 = vmatprep.subr.mxu0 0.0
    %394 = vmatpush2.msra.mxu0 0.0
    %395 = vmatprep.subr.mxu0 0.0
    %396 = vmatpush2.msra.mxu0 0.0
    %397 = vmatprep.subr.mxu0 0.0
    %398 = vmatpush2.msra.mxu0 0.0
    %399 = vmatprep.mubr.f32.mxu0 0.0
    %400 = vmatmul.mubr.f32.gmra.mxu0 %v333
    %v401 = vpop.f32.mrf.mxu0
    %v402 = vadd.f32 0.0, %v401
    %v403 = vpop.f32.mrf.mxu0
    %404 = vdwg.mxu0
    %v405 = vadd.f32 %v329, %v402
    %v406 = vxor.u32 %v405, 2147483648
    %v407 = vmul.f32 %v406, 1.442695
    %v408 = vpow.pop %v407
    %v409 = vadd.f32 %v408, 1.0
    %v410 = vrcp.pop %v409
    %v411 = vmul.f32 1.0, %v410
    %v412 = vtanh.pop %v405
    %v413 = vmul.f32 %v411, %v322
    %415 = vrot.lane.b32.xlu0 %v412, 64
    %v416 = vpop.permute.xlu0 %415
    %v418 = vmul.f32 %v411, %v416
    %420 = vrot.lane.b32.xlu0 %v418, 32
    %v421 = vpop.permute.xlu0 %420
    %v423 = vadd.f32 %v413, %v421
    %v424 = vtanh.pop %v423
    %426 = vrot.lane.b32.xlu0 %v424, 64
    %v427 = vpop.permute.xlu0 %426
    %v429 = vmul.f32 %v411, %v427
    %v430 = vld [vmem:[#allocation2 + $0x6] sm:$0x3]
    %432 = vrot.lane.b32.xlu0 %v429, 32
    %v433 = vpop.permute.xlu0 %432
    %v434 = vsel %vm129, %v433, 0
    %436 = vmatprep.subr.mxu0 0.0
    %437 = vmatpush1.msra.mxu0 0.0
    %438 = vmatprep.subr.mxu0 0.0
    %439 = vmatpush1.msra.mxu0 0.0
    %440 = vmatprep.subr.mxu0 0.0
    %441 = vmatpush1.msra.mxu0 0.0
    %442 = vmatprep.subr.mxu0 0.0
    %443 = vmatpush1.msra.mxu0 0.0
    %444 = vmatprep.subr.mxu0 0.0
    %445 = vmatpush1.msra.mxu0 0.0
    %446 = vmatprep.subr.mxu0 0.0
    %447 = vmatpush1.msra.mxu0 0.0
    %448 = vmatprep.subr.mxu0 0.0
    %449 = vmatpush1.msra.mxu0 0.0
    %450 = vmatprep.subr.mxu0 0.0
    %451 = vmatpush1.msra.mxu0 0.0
    %452 = vmatprep.subr.mxu0 0.0
    %453 = vmatpush1.msra.mxu0 0.0
    %454 = vmatprep.subr.mxu0 0.0
    %455 = vmatpush1.msra.mxu0 0.0
    %456 = vmatprep.subr.mxu0 0.0
    %457 = vmatpush1.msra.mxu0 0.0
    %458 = vmatprep.subr.mxu0 0.0
    %459 = vmatpush1.msra.mxu0 0.0
    %460 = vmatprep.subr.mxu0 0.0
    %461 = vmatpush1.msra.mxu0 %v127
    %462 = vmatprep.subr.mxu0 0.0
    %463 = vmatpush1.msra.mxu0 %v126
    %464 = vmatprep.subr.mxu0 0.0
    %465 = vmatpush1.msra.mxu0 %v125
    %466 = vmatprep.subr.mxu0 0.0
    %467 = vmatpush1.msra.mxu0 %v124
    %468 = vmatprep.subr.mxu0 0.0
    %469 = vmatpush2.msra.mxu0 0.0
    %470 = vmatprep.subr.mxu0 0.0
    %471 = vmatpush2.msra.mxu0 0.0
    %472 = vmatprep.subr.mxu0 0.0
    %473 = vmatpush2.msra.mxu0 0.0
    %474 = vmatprep.subr.mxu0 0.0
    %475 = vmatpush2.msra.mxu0 0.0
    %476 = vmatprep.subr.mxu0 0.0
    %477 = vmatpush2.msra.mxu0 0.0
    %478 = vmatprep.subr.mxu0 0.0
    %479 = vmatpush2.msra.mxu0 0.0
    %480 = vmatprep.subr.mxu0 0.0
    %481 = vmatpush2.msra.mxu0 0.0
    %482 = vmatprep.subr.mxu0 0.0
    %483 = vmatpush2.msra.mxu0 0.0
    %484 = vmatprep.subr.mxu0 0.0
    %485 = vmatpush2.msra.mxu0 0.0
    %486 = vmatprep.subr.mxu0 0.0
    %487 = vmatpush2.msra.mxu0 0.0
    %488 = vmatprep.subr.mxu0 0.0
    %489 = vmatpush2.msra.mxu0 0.0
    %490 = vmatprep.subr.mxu0 0.0
    %491 = vmatpush2.msra.mxu0 0.0
    %492 = vmatprep.subr.mxu0 0.0
    %493 = vmatpush2.msra.mxu0 0.0
    %494 = vmatprep.subr.mxu0 0.0
    %495 = vmatpush2.msra.mxu0 0.0
    %496 = vmatprep.subr.mxu0 0.0
    %497 = vmatpush2.msra.mxu0 0.0
    %498 = vmatprep.subr.mxu0 0.0
    %499 = vmatpush2.msra.mxu0 0.0
    %500 = vmatprep.mubr.f32.mxu0 0.0
    %501 = vmatmul.mubr.f32.gmra.mxu0 %v434
    %v502 = vpop.f32.mrf.mxu0
    %v503 = vadd.f32 0.0, %v502
    %v504 = vpop.f32.mrf.mxu0
    %505 = vdwg.mxu0
    %v506 = vadd.f32 %v430, %v503
    %v507 = vxor.u32 %v506, 2147483648
    %v508 = vmul.f32 %v507, 1.442695
    %v509 = vpow.pop %v508
    %v510 = vadd.f32 %v509, 1.0
    %v511 = vrcp.pop %v510
    %v512 = vmul.f32 1.0, %v511
    %v513 = vtanh.pop %v506
    %v514 = vmul.f32 %v512, %v423
    %516 = vrot.lane.b32.xlu0 %v513, 64
    %v517 = vpop.permute.xlu0 %516
    %v519 = vmul.f32 %v512, %v517
    %521 = vrot.lane.b32.xlu0 %v519, 32
    %v522 = vpop.permute.xlu0 %521
    %v524 = vadd.f32 %v514, %v522
    %v525 = vtanh.pop %v524
    %527 = vrot.lane.b32.xlu0 %v525, 64
    %v528 = vpop.permute.xlu0 %527
    %v530 = vmul.f32 %v512, %v528
    %v531 = vld [vmem:[#allocation2 + $0x8] sm:$0x3]
    %533 = vrot.lane.b32.xlu0 %v530, 32
    %v534 = vpop.permute.xlu0 %533
    %v535 = vsel %vm129, %v534, 0
    %537 = vmatprep.subr.mxu0 0.0
    %538 = vmatpush1.msra.mxu0 0.0
    %539 = vmatprep.subr.mxu0 0.0
    %540 = vmatpush1.msra.mxu0 0.0
    %541 = vmatprep.subr.mxu0 0.0
    %542 = vmatpush1.msra.mxu0 0.0
    %543 = vmatprep.subr.mxu0 0.0
    %544 = vmatpush1.msra.mxu0 0.0
    %545 = vmatprep.subr.mxu0 0.0
    %546 = vmatpush1.msra.mxu0 0.0
    %547 = vmatprep.subr.mxu0 0.0
    %548 = vmatpush1.msra.mxu0 0.0
    %549 = vmatprep.subr.mxu0 0.0
    %550 = vmatpush1.msra.mxu0 0.0
    %551 = vmatprep.subr.mxu0 0.0
    %552 = vmatpush1.msra.mxu0 0.0
    %553 = vmatprep.subr.mxu0 0.0
    %554 = vmatpush1.msra.mxu0 0.0
    %555 = vmatprep.subr.mxu0 0.0
    %556 = vmatpush1.msra.mxu0 0.0
    %557 = vmatprep.subr.mxu0 0.0
    %558 = vmatpush1.msra.mxu0 0.0
    %559 = vmatprep.subr.mxu0 0.0
    %560 = vmatpush1.msra.mxu0 0.0
    %561 = vmatprep.subr.mxu0 0.0
    %562 = vmatpush1.msra.mxu0 %v127
    %563 = vmatprep.subr.mxu0 0.0
    %564 = vmatpush1.msra.mxu0 %v126
    %565 = vmatprep.subr.mxu0 0.0
    %566 = vmatpush1.msra.mxu0 %v125
    %567 = vmatprep.subr.mxu0 0.0
    %568 = vmatpush1.msra.mxu0 %v124
    %569 = vmatprep.subr.mxu0 0.0
    %570 = vmatpush2.msra.mxu0 0.0
    %571 = vmatprep.subr.mxu0 0.0
    %572 = vmatpush2.msra.mxu0 0.0
    %573 = vmatprep.subr.mxu0 0.0
    %574 = vmatpush2.msra.mxu0 0.0
    %575 = vmatprep.subr.mxu0 0.0
    %576 = vmatpush2.msra.mxu0 0.0
    %577 = vmatprep.subr.mxu0 0.0
    %578 = vmatpush2.msra.mxu0 0.0
    %579 = vmatprep.subr.mxu0 0.0
    %580 = vmatpush2.msra.mxu0 0.0
    %581 = vmatprep.subr.mxu0 0.0
    %582 = vmatpush2.msra.mxu0 0.0
    %583 = vmatprep.subr.mxu0 0.0
    %584 = vmatpush2.msra.mxu0 0.0
    %585 = vmatprep.subr.mxu0 0.0
    %586 = vmatpush2.msra.mxu0 0.0
    %587 = vmatprep.subr.mxu0 0.0
    %588 = vmatpush2.msra.mxu0 0.0
    %589 = vmatprep.subr.mxu0 0.0
    %590 = vmatpush2.msra.mxu0 0.0
    %591 = vmatprep.subr.mxu0 0.0
    %592 = vmatpush2.msra.mxu0 0.0
    %593 = vmatprep.subr.mxu0 0.0
    %594 = vmatpush2.msra.mxu0 0.0
    %595 = vmatprep.subr.mxu0 0.0
    %596 = vmatpush2.msra.mxu0 0.0
    %597 = vmatprep.subr.mxu0 0.0
    %598 = vmatpush2.msra.mxu0 0.0
    %599 = vmatprep.subr.mxu0 0.0
    %600 = vmatpush2.msra.mxu0 0.0
    %601 = vmatprep.mubr.f32.mxu0 0.0
    %602 = vmatmul.mubr.f32.gmra.mxu0 %v535
    %v603 = vpop.f32.mrf.mxu0
    %v604 = vadd.f32 0.0, %v603
    %v605 = vpop.f32.mrf.mxu0
    %606 = vdwg.mxu0
    %v607 = vadd.f32 %v531, %v604
    %v608 = vxor.u32 %v607, 2147483648
    %v609 = vmul.f32 %v608, 1.442695
    %v610 = vpow.pop %v609
    %v611 = vadd.f32 %v610, 1.0
    %v612 = vrcp.pop %v611
    %v613 = vmul.f32 1.0, %v612
    %v614 = vtanh.pop %v607
    %v615 = vmul.f32 %v613, %v524
    %617 = vrot.lane.b32.xlu0 %v614, 64
    %v618 = vpop.permute.xlu0 %617
    %v620 = vmul.f32 %v613, %v618
    %622 = vrot.lane.b32.xlu0 %v620, 32
    %v623 = vpop.permute.xlu0 %622
    %v625 = vadd.f32 %v615, %v623
    %v626 = vtanh.pop %v625
    %628 = vrot.lane.b32.xlu0 %v626, 64
    %v629 = vpop.permute.xlu0 %628
    %v631 = vmul.f32 %v613, %v629
    %v632 = vld [vmem:[#allocation2 + $0xa] sm:$0x3]
    %634 = vrot.lane.b32.xlu0 %v631, 32
    %v635 = vpop.permute.xlu0 %634
    %v636 = vsel %vm129, %v635, 0
    %638 = vmatprep.subr.mxu0 0.0
    %639 = vmatpush1.msra.mxu0 0.0
    %640 = vmatprep.subr.mxu0 0.0
    %641 = vmatpush1.msra.mxu0 0.0
    %642 = vmatprep.subr.mxu0 0.0
    %643 = vmatpush1.msra.mxu0 0.0
    %644 = vmatprep.subr.mxu0 0.0
    %645 = vmatpush1.msra.mxu0 0.0
    %646 = vmatprep.subr.mxu0 0.0
    %647 = vmatpush1.msra.mxu0 0.0
    %648 = vmatprep.subr.mxu0 0.0
    %649 = vmatpush1.msra.mxu0 0.0
    %650 = vmatprep.subr.mxu0 0.0
    %651 = vmatpush1.msra.mxu0 0.0
    %652 = vmatprep.subr.mxu0 0.0
    %653 = vmatpush1.msra.mxu0 0.0
    %654 = vmatprep.subr.mxu0 0.0
    %655 = vmatpush1.msra.mxu0 0.0
    %656 = vmatprep.subr.mxu0 0.0
    %657 = vmatpush1.msra.mxu0 0.0
    %658 = vmatprep.subr.mxu0 0.0
    %659 = vmatpush1.msra.mxu0 0.0
    %660 = vmatprep.subr.mxu0 0.0
    %661 = vmatpush1.msra.mxu0 0.0
    %662 = vmatprep.subr.mxu0 0.0
    %663 = vmatpush1.msra.mxu0 %v127
    %664 = vmatprep.subr.mxu0 0.0
    %665 = vmatpush1.msra.mxu0 %v126
    %666 = vmatprep.subr.mxu0 0.0
    %667 = vmatpush1.msra.mxu0 %v125
    %668 = vmatprep.subr.mxu0 0.0
    %669 = vmatpush1.msra.mxu0 %v124
    %670 = vmatprep.subr.mxu0 0.0
    %671 = vmatpush2.msra.mxu0 0.0
    %672 = vmatprep.subr.mxu0 0.0
    %673 = vmatpush2.msra.mxu0 0.0
    %674 = vmatprep.subr.mxu0 0.0
    %675 = vmatpush2.msra.mxu0 0.0
    %676 = vmatprep.subr.mxu0 0.0
    %677 = vmatpush2.msra.mxu0 0.0
    %678 = vmatprep.subr.mxu0 0.0
    %679 = vmatpush2.msra.mxu0 0.0
    %680 = vmatprep.subr.mxu0 0.0
    %681 = vmatpush2.msra.mxu0 0.0
    %682 = vmatprep.subr.mxu0 0.0
    %683 = vmatpush2.msra.mxu0 0.0
    %684 = vmatprep.subr.mxu0 0.0
    %685 = vmatpush2.msra.mxu0 0.0
    %686 = vmatprep.subr.mxu0 0.0
    %687 = vmatpush2.msra.mxu0 0.0
    %688 = vmatprep.subr.mxu0 0.0
    %689 = vmatpush2.msra.mxu0 0.0
    %690 = vmatprep.subr.mxu0 0.0
    %691 = vmatpush2.msra.mxu0 0.0
    %692 = vmatprep.subr.mxu0 0.0
    %693 = vmatpush2.msra.mxu0 0.0
    %694 = vmatprep.subr.mxu0 0.0
    %695 = vmatpush2.msra.mxu0 0.0
    %696 = vmatprep.subr.mxu0 0.0
    %697 = vmatpush2.msra.mxu0 0.0
    %698 = vmatprep.subr.mxu0 0.0
    %699 = vmatpush2.msra.mxu0 0.0
    %700 = vmatprep.subr.mxu0 0.0
    %701 = vmatpush2.msra.mxu0 0.0
    %702 = vmatprep.mubr.f32.mxu0 0.0
    %703 = vmatmul.mubr.f32.gmra.mxu0 %v636
    %v704 = vpop.f32.mrf.mxu0
    %v705 = vadd.f32 0.0, %v704
    %v706 = vpop.f32.mrf.mxu0
    %707 = vdwg.mxu0
    %v708 = vadd.f32 %v632, %v705
    %v709 = vxor.u32 %v708, 2147483648
    %v710 = vmul.f32 %v709, 1.442695
    %v711 = vpow.pop %v710
    %v712 = vadd.f32 %v711, 1.0
    %v713 = vrcp.pop %v712
    %v714 = vmul.f32 1.0, %v713
    %v715 = vtanh.pop %v708
    %v716 = vmul.f32 %v714, %v625
    %718 = vrot.lane.b32.xlu0 %v715, 64
    %v719 = vpop.permute.xlu0 %718
    %v721 = vmul.f32 %v714, %v719
    %723 = vrot.lane.b32.xlu0 %v721, 32
    %v724 = vpop.permute.xlu0 %723
    %v726 = vadd.f32 %v716, %v724
    %v727 = vtanh.pop %v726
    %729 = vrot.lane.b32.xlu0 %v727, 64
    %v730 = vpop.permute.xlu0 %729
    %v732 = vmul.f32 %v714, %v730
    %v733 = vld [vmem:[#allocation2 + $0xc] sm:$0x3]
    %735 = vrot.lane.b32.xlu0 %v732, 32
    %v736 = vpop.permute.xlu0 %735
    %v737 = vsel %vm129, %v736, 0
    %739 = vmatprep.subr.mxu0 0.0
    %740 = vmatpush1.msra.mxu0 0.0
    %741 = vmatprep.subr.mxu0 0.0
    %742 = vmatpush1.msra.mxu0 0.0
    %743 = vmatprep.subr.mxu0 0.0
    %744 = vmatpush1.msra.mxu0 0.0
    %745 = vmatprep.subr.mxu0 0.0
    %746 = vmatpush1.msra.mxu0 0.0
    %747 = vmatprep.subr.mxu0 0.0
    %748 = vmatpush1.msra.mxu0 0.0
    %749 = vmatprep.subr.mxu0 0.0
    %750 = vmatpush1.msra.mxu0 0.0
    %751 = vmatprep.subr.mxu0 0.0
    %752 = vmatpush1.msra.mxu0 0.0
    %753 = vmatprep.subr.mxu0 0.0
    %754 = vmatpush1.msra.mxu0 0.0
    %755 = vmatprep.subr.mxu0 0.0
    %756 = vmatpush1.msra.mxu0 0.0
    %757 = vmatprep.subr.mxu0 0.0
    %758 = vmatpush1.msra.mxu0 0.0
    %759 = vmatprep.subr.mxu0 0.0
    %760 = vmatpush1.msra.mxu0 0.0
    %761 = vmatprep.subr.mxu0 0.0
    %762 = vmatpush1.msra.mxu0 0.0
    %763 = vmatprep.subr.mxu0 0.0
    %764 = vmatpush1.msra.mxu0 %v127
    %765 = vmatprep.subr.mxu0 0.0
    %766 = vmatpush1.msra.mxu0 %v126
    %767 = vmatprep.subr.mxu0 0.0
    %768 = vmatpush1.msra.mxu0 %v125
    %769 = vmatprep.subr.mxu0 0.0
    %770 = vmatpush1.msra.mxu0 %v124
    %771 = vmatprep.subr.mxu0 0.0
    %772 = vmatpush2.msra.mxu0 0.0
    %773 = vmatprep.subr.mxu0 0.0
    %774 = vmatpush2.msra.mxu0 0.0
    %775 = vmatprep.subr.mxu0 0.0
    %776 = vmatpush2.msra.mxu0 0.0
    %777 = vmatprep.subr.mxu0 0.0
    %778 = vmatpush2.msra.mxu0 0.0
    %779 = vmatprep.subr.mxu0 0.0
    %780 = vmatpush2.msra.mxu0 0.0
    %781 = vmatprep.subr.mxu0 0.0
    %782 = vmatpush2.msra.mxu0 0.0
    %783 = vmatprep.subr.mxu0 0.0
    %784 = vmatpush2.msra.mxu0 0.0
    %785 = vmatprep.subr.mxu0 0.0
    %786 = vmatpush2.msra.mxu0 0.0
    %787 = vmatprep.subr.mxu0 0.0
    %788 = vmatpush2.msra.mxu0 0.0
    %789 = vmatprep.subr.mxu0 0.0
    %790 = vmatpush2.msra.mxu0 0.0
    %791 = vmatprep.subr.mxu0 0.0
    %792 = vmatpush2.msra.mxu0 0.0
    %793 = vmatprep.subr.mxu0 0.0
    %794 = vmatpush2.msra.mxu0 0.0
    %795 = vmatprep.subr.mxu0 0.0
    %796 = vmatpush2.msra.mxu0 0.0
    %797 = vmatprep.subr.mxu0 0.0
    %798 = vmatpush2.msra.mxu0 0.0
    %799 = vmatprep.subr.mxu0 0.0
    %800 = vmatpush2.msra.mxu0 0.0
    %801 = vmatprep.subr.mxu0 0.0
    %802 = vmatpush2.msra.mxu0 0.0
    %803 = vmatprep.mubr.f32.mxu0 0.0
    %804 = vmatmul.mubr.f32.gmra.mxu0 %v737
    %v805 = vpop.f32.mrf.mxu0
    %v806 = vadd.f32 0.0, %v805
    %v807 = vpop.f32.mrf.mxu0
    %808 = vdwg.mxu0
    %v809 = vadd.f32 %v733, %v806
    %v810 = vxor.u32 %v809, 2147483648
    %v811 = vmul.f32 %v810, 1.442695
    %v812 = vpow.pop %v811
    %v813 = vadd.f32 %v812, 1.0
    %v814 = vrcp.pop %v813
    %v815 = vmul.f32 1.0, %v814
    %v816 = vtanh.pop %v809
    %v817 = vmul.f32 %v815, %v726
    %819 = vrot.lane.b32.xlu0 %v816, 64
    %v820 = vpop.permute.xlu0 %819
    %v822 = vmul.f32 %v815, %v820
    %824 = vrot.lane.b32.xlu0 %v822, 32
    %v825 = vpop.permute.xlu0 %824
    %v827 = vadd.f32 %v817, %v825
    %v828 = vtanh.pop %v827
    %830 = vrot.lane.b32.xlu0 %v828, 64
    %v831 = vpop.permute.xlu0 %830
    %v833 = vmul.f32 %v815, %v831
    %v834 = vld [vmem:[#allocation2 + $0xe] sm:$0x3]
    %836 = vrot.lane.b32.xlu0 %v833, 32
    %v837 = vpop.permute.xlu0 %836
    %v838 = vsel %vm129, %v837, 0
    %840 = vmatprep.subr.mxu0 0.0
    %841 = vmatpush1.msra.mxu0 0.0
    %842 = vmatprep.subr.mxu0 0.0
    %843 = vmatpush1.msra.mxu0 0.0
    %844 = vmatprep.subr.mxu0 0.0
    %845 = vmatpush1.msra.mxu0 0.0
    %846 = vmatprep.subr.mxu0 0.0
    %847 = vmatpush1.msra.mxu0 0.0
    %848 = vmatprep.subr.mxu0 0.0
    %849 = vmatpush1.msra.mxu0 0.0
    %850 = vmatprep.subr.mxu0 0.0
    %851 = vmatpush1.msra.mxu0 0.0
    %852 = vmatprep.subr.mxu0 0.0
    %853 = vmatpush1.msra.mxu0 0.0
    %854 = vmatprep.subr.mxu0 0.0
    %855 = vmatpush1.msra.mxu0 0.0
    %856 = vmatprep.subr.mxu0 0.0
    %857 = vmatpush1.msra.mxu0 0.0
    %858 = vmatprep.subr.mxu0 0.0
    %859 = vmatpush1.msra.mxu0 0.0
    %860 = vmatprep.subr.mxu0 0.0
    %861 = vmatpush1.msra.mxu0 0.0
    %862 = vmatprep.subr.mxu0 0.0
    %863 = vmatpush1.msra.mxu0 0.0
    %864 = vmatprep.subr.mxu0 0.0
    %865 = vmatpush1.msra.mxu0 %v127
    %866 = vmatprep.subr.mxu0 0.0
    %867 = vmatpush1.msra.mxu0 %v126
    %868 = vmatprep.subr.mxu0 0.0
    %869 = vmatpush1.msra.mxu0 %v125
    %870 = vmatprep.subr.mxu0 0.0
    %871 = vmatpush1.msra.mxu0 %v124
    %872 = vmatprep.subr.mxu0 0.0
    %873 = vmatpush2.msra.mxu0 0.0
    %874 = vmatprep.subr.mxu0 0.0
    %875 = vmatpush2.msra.mxu0 0.0
    %876 = vmatprep.subr.mxu0 0.0
    %877 = vmatpush2.msra.mxu0 0.0
    %878 = vmatprep.subr.mxu0 0.0
    %879 = vmatpush2.msra.mxu0 0.0
    %880 = vmatprep.subr.mxu0 0.0
    %881 = vmatpush2.msra.mxu0 0.0
    %882 = vmatprep.subr.mxu0 0.0
    %883 = vmatpush2.msra.mxu0 0.0
    %884 = vmatprep.subr.mxu0 0.0
    %885 = vmatpush2.msra.mxu0 0.0
    %886 = vmatprep.subr.mxu0 0.0
    %887 = vmatpush2.msra.mxu0 0.0
    %888 = vmatprep.subr.mxu0 0.0
    %889 = vmatpush2.msra.mxu0 0.0
    %890 = vmatprep.subr.mxu0 0.0
    %891 = vmatpush2.msra.mxu0 0.0
    %892 = vmatprep.subr.mxu0 0.0
    %893 = vmatpush2.msra.mxu0 0.0
    %894 = vmatprep.subr.mxu0 0.0
    %895 = vmatpush2.msra.mxu0 0.0
    %896 = vmatprep.subr.mxu0 0.0
    %897 = vmatpush2.msra.mxu0 0.0
    %898 = vmatprep.subr.mxu0 0.0
    %899 = vmatpush2.msra.mxu0 0.0
    %900 = vmatprep.subr.mxu0 0.0
    %901 = vmatpush2.msra.mxu0 0.0
    %902 = vmatprep.subr.mxu0 0.0
    %903 = vmatpush2.msra.mxu0 0.0
    %904 = vmatprep.mubr.f32.mxu0 0.0
    %905 = vmatmul.mubr.f32.gmra.mxu0 %v838
    %v906 = vpop.f32.mrf.mxu0
    %v907 = vadd.f32 0.0, %v906
    %v908 = vpop.f32.mrf.mxu0
    %909 = vdwg.mxu0
    %v910 = vadd.f32 %v834, %v907
    %v911 = vxor.u32 %v910, 2147483648
    %v912 = vmul.f32 %v911, 1.442695
    %v913 = vpow.pop %v912
    %v914 = vadd.f32 %v913, 1.0
    %v915 = vrcp.pop %v914
    %v916 = vmul.f32 1.0, %v915
    %v917 = vtanh.pop %v910
    %v918 = vmul.f32 %v916, %v827
    %920 = vrot.lane.b32.xlu0 %v917, 64
    %v921 = vpop.permute.xlu0 %920
    %v923 = vmul.f32 %v916, %v921
    %925 = vrot.lane.b32.xlu0 %v923, 32
    %v926 = vpop.permute.xlu0 %925
    %v928 = vadd.f32 %v918, %v926
    %v929 = vtanh.pop %v928
    %931 = vrot.lane.b32.xlu0 %v929, 64
    %v932 = vpop.permute.xlu0 %931
    %v934 = vmul.f32 %v916, %v932
    %v935 = vld [vmem:[#allocation4 + $0x38] sm:$0xff]
    %v936 = vld [vmem:[#allocation4 + $0x40] sm:$0xff]
    %v937 = vld [vmem:[#allocation4 + $0x48] sm:$0xff]
    %v938 = vld [vmem:[#allocation4 + $0x50] sm:$0xff]
    %v939 = vld [vmem:[#allocation4 + $0x58] sm:$0x1]
    %v940 = vlaneseq
    %v941 = vshrl.u32 %v940, 7
    %v942 = vsub.s32 0, %v941
    %v943 = vrot.slane %v939, %v942
    %945 = vrot.lane.b32.xlu0 %v934, 32
    %v946 = vpop.permute.xlu0 %945
    %v947 = vsel %vm129, %v946, 0
    %949 = vmatprep.subr.mxu0 0.0
    %950 = vmatpush1.msra.mxu0 0.0
    %951 = vmatprep.subr.mxu0 0.0
    %952 = vmatpush1.msra.mxu0 0.0
    %953 = vmatprep.subr.mxu0 0.0
    %954 = vmatpush1.msra.mxu0 0.0
    %955 = vmatprep.subr.mxu0 0.0
    %956 = vmatpush1.msra.mxu0 0.0
    %957 = vmatprep.subr.mxu0 0.0
    %958 = vmatpush1.msra.mxu0 0.0
    %959 = vmatprep.subr.mxu0 0.0
    %960 = vmatpush1.msra.mxu0 0.0
    %961 = vmatprep.subr.mxu0 0.0
    %962 = vmatpush1.msra.mxu0 0.0
    %963 = vmatprep.subr.mxu0 0.0
    %964 = vmatpush1.msra.mxu0 0.0
    %965 = vmatprep.subr.mxu0 0.0
    %966 = vmatpush1.msra.mxu0 0.0
    %967 = vmatprep.subr.mxu0 0.0
    %968 = vmatpush1.msra.mxu0 0.0
    %969 = vmatprep.subr.mxu0 0.0
    %970 = vmatpush1.msra.mxu0 0.0
    %971 = vmatprep.subr.mxu0 0.0
    %972 = vmatpush1.msra.mxu0 0.0
    %973 = vmatprep.subr.mxu0 0.0
    %974 = vmatpush1.msra.mxu0 %v938
    %975 = vmatprep.subr.mxu0 0.0
    %976 = vmatpush1.msra.mxu0 %v937
    %977 = vmatprep.subr.mxu0 0.0
    %978 = vmatpush1.msra.mxu0 %v936
    %979 = vmatprep.subr.mxu0 0.0
    %980 = vmatpush1.msra.mxu0 %v935
    %981 = vmatprep.subr.mxu0 0.0
    %982 = vmatpush2.msra.mxu0 0.0
    %983 = vmatprep.subr.mxu0 0.0
    %984 = vmatpush2.msra.mxu0 0.0
    %985 = vmatprep.subr.mxu0 0.0
    %986 = vmatpush2.msra.mxu0 0.0
    %987 = vmatprep.subr.mxu0 0.0
    %988 = vmatpush2.msra.mxu0 0.0
    %989 = vmatprep.subr.mxu0 0.0
    %990 = vmatpush2.msra.mxu0 0.0
    %991 = vmatprep.subr.mxu0 0.0
    %992 = vmatpush2.msra.mxu0 0.0
    %993 = vmatprep.subr.mxu0 0.0
    %994 = vmatpush2.msra.mxu0 0.0
    %995 = vmatprep.subr.mxu0 0.0
    %996 = vmatpush2.msra.mxu0 0.0
    %997 = vmatprep.subr.mxu0 0.0
    %998 = vmatpush2.msra.mxu0 0.0
    %999 = vmatprep.subr.mxu0 0.0
    %1000 = vmatpush2.msra.mxu0 0.0
    %1001 = vmatprep.subr.mxu0 0.0
    %1002 = vmatpush2.msra.mxu0 0.0
    %1003 = vmatprep.subr.mxu0 0.0
    %1004 = vmatpush2.msra.mxu0 0.0
    %1005 = vmatprep.subr.mxu0 0.0
    %1006 = vmatpush2.msra.mxu0 0.0
    %1007 = vmatprep.subr.mxu0 0.0
    %1008 = vmatpush2.msra.mxu0 0.0
    %1009 = vmatprep.subr.mxu0 0.0
    %1010 = vmatpush2.msra.mxu0 0.0
    %1011 = vmatprep.subr.mxu0 0.0
    %1012 = vmatpush2.msra.mxu0 0.0
    %1013 = vmatprep.mubr.f32.mxu0 0.0
    %1014 = vmatmul.mubr.f32.gmra.mxu0 %v947
    %v1015 = vpop.f32.mrf.mxu0
    %v1016 = vadd.f32 %v943, %v1015
    %v1017 = vpop.f32.mrf.mxu0
    %1018 = vdwg.mxu0
    %v1019 = vmax.f32 %v1016, 0.0
    %v1020 = vld [vmem:[#allocation4 + $0x60] sm:$0xff]
    %v1021 = vld [vmem:[#allocation4 + $0x68] sm:$0xff]
    %v1022 = vld [vmem:[#allocation4 + $0x70] sm:$0xff]
    %v1023 = vld [vmem:[#allocation4 + $0x78] sm:$0xff]
    %v1024 = vld [vmem:[#allocation4 + $0x80] sm:$0x1]
    %v1025 = vlaneseq
    %v1026 = vshrl.u32 %v1025, 7
    %v1027 = vsub.s32 0, %v1026
    %v1028 = vrot.slane %v1024, %v1027
    %v1030 = vsel %vm129, %v1019, 0
    %1032 = vmatprep.subr.mxu0 0.0
    %1033 = vmatpush1.msra.mxu0 0.0
    %1034 = vmatprep.subr.mxu0 0.0
    %1035 = vmatpush1.msra.mxu0 0.0
    %1036 = vmatprep.subr.mxu0 0.0
    %1037 = vmatpush1.msra.mxu0 0.0
    %1038 = vmatprep.subr.mxu0 0.0
    %1039 = vmatpush1.msra.mxu0 0.0
    %1040 = vmatprep.subr.mxu0 0.0
    %1041 = vmatpush1.msra.mxu0 0.0
    %1042 = vmatprep.subr.mxu0 0.0
    %1043 = vmatpush1.msra.mxu0 0.0
    %1044 = vmatprep.subr.mxu0 0.0
    %1045 = vmatpush1.msra.mxu0 0.0
    %1046 = vmatprep.subr.mxu0 0.0
    %1047 = vmatpush1.msra.mxu0 0.0
    %1048 = vmatprep.subr.mxu0 0.0
    %1049 = vmatpush1.msra.mxu0 0.0
    %1050 = vmatprep.subr.mxu0 0.0
    %1051 = vmatpush1.msra.mxu0 0.0
    %1052 = vmatprep.subr.mxu0 0.0
    %1053 = vmatpush1.msra.mxu0 0.0
    %1054 = vmatprep.subr.mxu0 0.0
    %1055 = vmatpush1.msra.mxu0 0.0
    %1056 = vmatprep.subr.mxu0 0.0
    %1057 = vmatpush1.msra.mxu0 %v1023
    %1058 = vmatprep.subr.mxu0 0.0
    %1059 = vmatpush1.msra.mxu0 %v1022
    %1060 = vmatprep.subr.mxu0 0.0
    %1061 = vmatpush1.msra.mxu0 %v1021
    %1062 = vmatprep.subr.mxu0 0.0
    %1063 = vmatpush1.msra.mxu0 %v1020
    %1064 = vmatprep.subr.mxu0 0.0
    %1065 = vmatpush2.msra.mxu0 0.0
    %1066 = vmatprep.subr.mxu0 0.0
    %1067 = vmatpush2.msra.mxu0 0.0
    %1068 = vmatprep.subr.mxu0 0.0
    %1069 = vmatpush2.msra.mxu0 0.0
    %1070 = vmatprep.subr.mxu0 0.0
    %1071 = vmatpush2.msra.mxu0 0.0
    %1072 = vmatprep.subr.mxu0 0.0
    %1073 = vmatpush2.msra.mxu0 0.0
    %1074 = vmatprep.subr.mxu0 0.0
    %1075 = vmatpush2.msra.mxu0 0.0
    %1076 = vmatprep.subr.mxu0 0.0
    %1077 = vmatpush2.msra.mxu0 0.0
    %1078 = vmatprep.subr.mxu0 0.0
    %1079 = vmatpush2.msra.mxu0 0.0
    %1080 = vmatprep.subr.mxu0 0.0
    %1081 = vmatpush2.msra.mxu0 0.0
    %1082 = vmatprep.subr.mxu0 0.0
    %1083 = vmatpush2.msra.mxu0 0.0
    %1084 = vmatprep.subr.mxu0 0.0
    %1085 = vmatpush2.msra.mxu0 0.0
    %1086 = vmatprep.subr.mxu0 0.0
    %1087 = vmatpush2.msra.mxu0 0.0
    %1088 = vmatprep.subr.mxu0 0.0
    %1089 = vmatpush2.msra.mxu0 0.0
    %1090 = vmatprep.subr.mxu0 0.0
    %1091 = vmatpush2.msra.mxu0 0.0
    %1092 = vmatprep.subr.mxu0 0.0
    %1093 = vmatpush2.msra.mxu0 0.0
    %1094 = vmatprep.subr.mxu0 0.0
    %1095 = vmatpush2.msra.mxu0 0.0
    %1096 = vmatprep.mubr.f32.mxu0 0.0
    %1097 = vmatmul.mubr.f32.gmra.mxu0 %v1030
    %v1098 = vpop.f32.mrf.mxu0
    %v1099 = vadd.f32 %v1028, %v1098
    %v1100 = vpop.f32.mrf.mxu0
    %1101 = vdwg.mxu0
    %v1102 = vld [vmem:[#allocation4 + $0x88] sm:$0xff]
    %v1103 = vld [vmem:[#allocation4 + $0x90] sm:$0xff]
    %v1104 = vld [vmem:[#allocation4 + $0x98] sm:$0xff]
    %v1105 = vld [vmem:[#allocation4 + $0xa0] sm:$0xff]
    %v1106 = vld [vmem:[#allocation4 + $0xa8] sm:$0x1]
    %v1107 = vlaneseq
    %v1108 = vshrl.u32 %v1107, 7
    %v1109 = vsub.s32 0, %v1108
    %v1110 = vrot.slane %v1106, %v1109
    %1111 = vmatprep.subr.mxu0 0.0
    %1112 = vmatpush1.msra.mxu0 0.0
    %1113 = vmatprep.subr.mxu0 0.0
    %1114 = vmatpush1.msra.mxu0 0.0
    %1115 = vmatprep.subr.mxu0 0.0
    %1116 = vmatpush1.msra.mxu0 0.0
    %1117 = vmatprep.subr.mxu0 0.0
    %1118 = vmatpush1.msra.mxu0 0.0
    %1119 = vmatprep.subr.mxu0 0.0
    %1120 = vmatpush1.msra.mxu0 0.0
    %1121 = vmatprep.subr.mxu0 0.0
    %1122 = vmatpush1.msra.mxu0 0.0
    %1123 = vmatprep.subr.mxu0 0.0
    %1124 = vmatpush1.msra.mxu0 0.0
    %1125 = vmatprep.subr.mxu0 0.0
    %1126 = vmatpush1.msra.mxu0 0.0
    %1127 = vmatprep.subr.mxu0 0.0
    %1128 = vmatpush1.msra.mxu0 0.0
    %1129 = vmatprep.subr.mxu0 0.0
    %1130 = vmatpush1.msra.mxu0 0.0
    %1131 = vmatprep.subr.mxu0 0.0
    %1132 = vmatpush1.msra.mxu0 0.0
    %1133 = vmatprep.subr.mxu0 0.0
    %1134 = vmatpush1.msra.mxu0 0.0
    %1135 = vmatprep.subr.mxu0 0.0
    %1136 = vmatpush1.msra.mxu0 %v1105
    %1137 = vmatprep.subr.mxu0 0.0
    %1138 = vmatpush1.msra.mxu0 %v1104
    %1139 = vmatprep.subr.mxu0 0.0
    %1140 = vmatpush1.msra.mxu0 %v1103
    %1141 = vmatprep.subr.mxu0 0.0
    %1142 = vmatpush1.msra.mxu0 %v1102
    %1143 = vmatprep.subr.mxu0 0.0
    %1144 = vmatpush2.msra.mxu0 0.0
    %1145 = vmatprep.subr.mxu0 0.0
    %1146 = vmatpush2.msra.mxu0 0.0
    %1147 = vmatprep.subr.mxu0 0.0
    %1148 = vmatpush2.msra.mxu0 0.0
    %1149 = vmatprep.subr.mxu0 0.0
    %1150 = vmatpush2.msra.mxu0 0.0
    %1151 = vmatprep.subr.mxu0 0.0
    %1152 = vmatpush2.msra.mxu0 0.0
    %1153 = vmatprep.subr.mxu0 0.0
    %1154 = vmatpush2.msra.mxu0 0.0
    %1155 = vmatprep.subr.mxu0 0.0
    %1156 = vmatpush2.msra.mxu0 0.0
    %1157 = vmatprep.subr.mxu0 0.0
    %1158 = vmatpush2.msra.mxu0 0.0
    %1159 = vmatprep.subr.mxu0 0.0
    %1160 = vmatpush2.msra.mxu0 0.0
    %1161 = vmatprep.subr.mxu0 0.0
    %1162 = vmatpush2.msra.mxu0 0.0
    %1163 = vmatprep.subr.mxu0 0.0
    %1164 = vmatpush2.msra.mxu0 0.0
    %1165 = vmatprep.subr.mxu0 0.0
    %1166 = vmatpush2.msra.mxu0 0.0
    %1167 = vmatprep.subr.mxu0 0.0
    %1168 = vmatpush2.msra.mxu0 0.0
    %1169 = vmatprep.subr.mxu0 0.0
    %1170 = vmatpush2.msra.mxu0 0.0
    %1171 = vmatprep.subr.mxu0 0.0
    %1172 = vmatpush2.msra.mxu0 0.0
    %1173 = vmatprep.subr.mxu0 0.0
    %1174 = vmatpush2.msra.mxu0 0.0
    %1175 = vmatprep.mubr.f32.mxu0 0.0
    %1176 = vmatmul.mubr.f32.gmra.mxu0 %v1030
    %v1177 = vpop.f32.mrf.mxu0
    %v1178 = vadd.f32 %v1110, %v1177
    %v1179 = vpop.f32.mrf.mxu0
    %1180 = vdwg.mxu0
    %1182 = vrot.lane.b32.xlu0 %v1178, 8
    %v1183 = vpop.permute.xlu0 %1182
    %vm1185 = vcmask 64512
    %v1186 = vsel %vm1185, %v1099, %v1183
    %vm1187 = vcmask 123904
    %1188 = vst.msk [vmem:[%s4] sm:$0x3] %vm1187, %v1186
    %v1189 = vmul.f32 %v1178, 0.5
    %v1190 = vmul.f32 %v1189, 1.442695
    %v1191 = vpow.pop %v1190
    %v1192 = vmul.f32 %v32, %v1191
    %v1193 = vadd.f32 %v1099, %v1192
    %v1194 = vld [vmem:[#allocation4 + $0xb0] sm:$0xff]
    %v1195 = vld [vmem:[#allocation4 + $0xb8] sm:$0x1]
    %v1196 = vlaneseq
    %v1197 = vshrl.u32 %v1196, 7
    %v1198 = vsub.s32 0, %v1197
    %v1199 = vrot.slane %v1195, %v1198
    %v1201 = vsel %vm1185, %v1193, 0
    %1203 = vmatprep.subr.mxu0 0.0
    %1204 = vmatpush1.msra.mxu0 0.0
    %1205 = vmatprep.subr.mxu0 0.0
    %1206 = vmatpush1.msra.mxu0 0.0
    %1207 = vmatprep.subr.mxu0 0.0
    %1208 = vmatpush1.msra.mxu0 0.0
    %1209 = vmatprep.subr.mxu0 0.0
    %1210 = vmatpush1.msra.mxu0 0.0
    %1211 = vmatprep.subr.mxu0 0.0
    %1212 = vmatpush1.msra.mxu0 0.0
    %1213 = vmatprep.subr.mxu0 0.0
    %1214 = vmatpush1.msra.mxu0 0.0
    %1215 = vmatprep.subr.mxu0 0.0
    %1216 = vmatpush1.msra.mxu0 0.0
    %1217 = vmatprep.subr.mxu0 0.0
    %1218 = vmatpush1.msra.mxu0 0.0
    %1219 = vmatprep.subr.mxu0 0.0
    %1220 = vmatpush1.msra.mxu0 0.0
    %1221 = vmatprep.subr.mxu0 0.0
    %1222 = vmatpush1.msra.mxu0 0.0
    %1223 = vmatprep.subr.mxu0 0.0
    %1224 = vmatpush1.msra.mxu0 0.0
    %1225 = vmatprep.subr.mxu0 0.0
    %1226 = vmatpush1.msra.mxu0 0.0
    %1227 = vmatprep.subr.mxu0 0.0
    %1228 = vmatpush1.msra.mxu0 0.0
    %1229 = vmatprep.subr.mxu0 0.0
    %1230 = vmatpush1.msra.mxu0 0.0
    %1231 = vmatprep.subr.mxu0 0.0
    %1232 = vmatpush1.msra.mxu0 0.0
    %1233 = vmatprep.subr.mxu0 0.0
    %1234 = vmatpush1.msra.mxu0 %v1194
    %1235 = vmatprep.subr.mxu0 0.0
    %1236 = vmatpush2.msra.mxu0 0.0
    %1237 = vmatprep.subr.mxu0 0.0
    %1238 = vmatpush2.msra.mxu0 0.0
    %1239 = vmatprep.subr.mxu0 0.0
    %1240 = vmatpush2.msra.mxu0 0.0
    %1241 = vmatprep.subr.mxu0 0.0
    %1242 = vmatpush2.msra.mxu0 0.0
    %1243 = vmatprep.subr.mxu0 0.0
    %1244 = vmatpush2.msra.mxu0 0.0
    %1245 = vmatprep.subr.mxu0 0.0
    %1246 = vmatpush2.msra.mxu0 0.0
    %1247 = vmatprep.subr.mxu0 0.0
    %1248 = vmatpush2.msra.mxu0 0.0
    %1249 = vmatprep.subr.mxu0 0.0
    %1250 = vmatpush2.msra.mxu0 0.0
    %1251 = vmatprep.subr.mxu0 0.0
    %1252 = vmatpush2.msra.mxu0 0.0
    %1253 = vmatprep.subr.mxu0 0.0
    %1254 = vmatpush2.msra.mxu0 0.0
    %1255 = vmatprep.subr.mxu0 0.0
    %1256 = vmatpush2.msra.mxu0 0.0
    %1257 = vmatprep.subr.mxu0 0.0
    %1258 = vmatpush2.msra.mxu0 0.0
    %1259 = vmatprep.subr.mxu0 0.0
    %1260 = vmatpush2.msra.mxu0 0.0
    %1261 = vmatprep.subr.mxu0 0.0
    %1262 = vmatpush2.msra.mxu0 0.0
    %1263 = vmatprep.subr.mxu0 0.0
    %1264 = vmatpush2.msra.mxu0 0.0
    %1265 = vmatprep.subr.mxu0 0.0
    %1266 = vmatpush2.msra.mxu0 0.0
    %1267 = vmatprep.mubr.f32.mxu0 0.0
    %1268 = vmatmul.mubr.f32.gmra.mxu0 %v1201
    %v1269 = vpop.f32.mrf.mxu0
    %v1270 = vadd.f32 %v1199, %v1269
    %v1271 = vpop.f32.mrf.mxu0
    %1272 = vdwg.mxu0
    %v1273 = vld [vmem:[#allocation4 + $0xc0] sm:$0xff]
    %v1274 = vld [vmem:[#allocation4 + $0xc8] sm:$0xff]
    %v1275 = vld [vmem:[#allocation4 + $0xd0] sm:$0xff]
    %v1276 = vld [vmem:[#allocation4 + $0xd8] sm:$0xff]
    %v1277 = vld [vmem:[#allocation4 + $0xe0] sm:$0x1]
    %v1278 = vlaneseq
    %v1279 = vshrl.u32 %v1278, 7
    %v1280 = vsub.s32 0, %v1279
    %v1281 = vrot.slane %v1277, %v1280
    %v1283 = vsel %vm129, %v1270, 0
    %1285 = vmatprep.subr.mxu0 0.0
    %1286 = vmatpush1.msra.mxu0 0.0
    %1287 = vmatprep.subr.mxu0 0.0
    %1288 = vmatpush1.msra.mxu0 0.0
    %1289 = vmatprep.subr.mxu0 0.0
    %1290 = vmatpush1.msra.mxu0 0.0
    %1291 = vmatprep.subr.mxu0 0.0
    %1292 = vmatpush1.msra.mxu0 0.0
    %1293 = vmatprep.subr.mxu0 0.0
    %1294 = vmatpush1.msra.mxu0 0.0
    %1295 = vmatprep.subr.mxu0 0.0
    %1296 = vmatpush1.msra.mxu0 0.0
    %1297 = vmatprep.subr.mxu0 0.0
    %1298 = vmatpush1.msra.mxu0 0.0
    %1299 = vmatprep.subr.mxu0 0.0
    %1300 = vmatpush1.msra.mxu0 0.0
    %1301 = vmatprep.subr.mxu0 0.0
    %1302 = vmatpush1.msra.mxu0 0.0
    %1303 = vmatprep.subr.mxu0 0.0
    %1304 = vmatpush1.msra.mxu0 0.0
    %1305 = vmatprep.subr.mxu0 0.0
    %1306 = vmatpush1.msra.mxu0 0.0
    %1307 = vmatprep.subr.mxu0 0.0
    %1308 = vmatpush1.msra.mxu0 0.0
    %1309 = vmatprep.subr.mxu0 0.0
    %1310 = vmatpush1.msra.mxu0 %v1276
    %1311 = vmatprep.subr.mxu0 0.0
    %1312 = vmatpush1.msra.mxu0 %v1275
    %1313 = vmatprep.subr.mxu0 0.0
    %1314 = vmatpush1.msra.mxu0 %v1274
    %1315 = vmatprep.subr.mxu0 0.0
    %1316 = vmatpush1.msra.mxu0 %v1273
    %1317 = vmatprep.subr.mxu0 0.0
    %1318 = vmatpush2.msra.mxu0 0.0
    %1319 = vmatprep.subr.mxu0 0.0
    %1320 = vmatpush2.msra.mxu0 0.0
    %1321 = vmatprep.subr.mxu0 0.0
    %1322 = vmatpush2.msra.mxu0 0.0
    %1323 = vmatprep.subr.mxu0 0.0
    %1324 = vmatpush2.msra.mxu0 0.0
    %1325 = vmatprep.subr.mxu0 0.0
    %1326 = vmatpush2.msra.mxu0 0.0
    %1327 = vmatprep.subr.mxu0 0.0
    %1328 = vmatpush2.msra.mxu0 0.0
    %1329 = vmatprep.subr.mxu0 0.0
    %1330 = vmatpush2.msra.mxu0 0.0
    %1331 = vmatprep.subr.mxu0 0.0
    %1332 = vmatpush2.msra.mxu0 0.0
    %1333 = vmatprep.subr.mxu0 0.0
    %1334 = vmatpush2.msra.mxu0 0.0
    %1335 = vmatprep.subr.mxu0 0.0
    %1336 = vmatpush2.msra.mxu0 0.0
    %1337 = vmatprep.subr.mxu0 0.0
    %1338 = vmatpush2.msra.mxu0 0.0
    %1339 = vmatprep.subr.mxu0 0.0
    %1340 = vmatpush2.msra.mxu0 0.0
    %1341 = vmatprep.subr.mxu0 0.0
    %1342 = vmatpush2.msra.mxu0 0.0
    %1343 = vmatprep.subr.mxu0 0.0
    %1344 = vmatpush2.msra.mxu0 0.0
    %1345 = vmatprep.subr.mxu0 0.0
    %1346 = vmatpush2.msra.mxu0 0.0
    %1347 = vmatprep.subr.mxu0 0.0
    %1348 = vmatpush2.msra.mxu0 0.0
    %1349 = vmatprep.mubr.f32.mxu0 0.0
    %1350 = vmatmul.mubr.f32.gmra.mxu0 %v1283
    %v1351 = vpop.f32.mrf.mxu0
    %v1352 = vadd.f32 %v1281, %v1351
    %v1353 = vpop.f32.mrf.mxu0
    %1354 = vdwg.mxu0
    %v1355 = vmax.f32 %v1352, 0.0
    %v1356 = vld [vmem:[#allocation4 + $0xe8] sm:$0xff]
    %v1357 = vld [vmem:[#allocation4 + $0xf0] sm:$0xff]
    %v1358 = vld [vmem:[#allocation4 + $0xf8] sm:$0xff]
    %v1359 = vld [vmem:[#allocation4 + $0x100] sm:$0xff]
    %v1361 = vsel %vm129, %v1355, 0
    %1363 = vmatprep.subr.mxu0 0.0
    %1364 = vmatpush1.msra.mxu0 0.0
    %1365 = vmatprep.subr.mxu0 0.0
    %1366 = vmatpush1.msra.mxu0 0.0
    %1367 = vmatprep.subr.mxu0 0.0
    %1368 = vmatpush1.msra.mxu0 0.0
    %1369 = vmatprep.subr.mxu0 0.0
    %1370 = vmatpush1.msra.mxu0 0.0
    %1371 = vmatprep.subr.mxu0 0.0
    %1372 = vmatpush1.msra.mxu0 0.0
    %1373 = vmatprep.subr.mxu0 0.0
    %1374 = vmatpush1.msra.mxu0 0.0
    %1375 = vmatprep.subr.mxu0 0.0
    %1376 = vmatpush1.msra.mxu0 0.0
    %1377 = vmatprep.subr.mxu0 0.0
    %1378 = vmatpush1.msra.mxu0 0.0
    %1379 = vmatprep.subr.mxu0 0.0
    %1380 = vmatpush1.msra.mxu0 0.0
    %1381 = vmatprep.subr.mxu0 0.0
    %1382 = vmatpush1.msra.mxu0 0.0
    %1383 = vmatprep.subr.mxu0 0.0
    %1384 = vmatpush1.msra.mxu0 0.0
    %1385 = vmatprep.subr.mxu0 0.0
    %1386 = vmatpush1.msra.mxu0 0.0
    %1387 = vmatprep.subr.mxu0 0.0
    %1388 = vmatpush1.msra.mxu0 %v1359
    %1389 = vmatprep.subr.mxu0 0.0
    %1390 = vmatpush1.msra.mxu0 %v1358
    %1391 = vmatprep.subr.mxu0 0.0
    %1392 = vmatpush1.msra.mxu0 %v1357
    %1393 = vmatprep.subr.mxu0 0.0
    %1394 = vmatpush1.msra.mxu0 %v1356
    %1395 = vmatprep.subr.mxu0 0.0
    %1396 = vmatpush2.msra.mxu0 0.0
    %1397 = vmatprep.subr.mxu0 0.0
    %1398 = vmatpush2.msra.mxu0 0.0
    %1399 = vmatprep.subr.mxu0 0.0
    %1400 = vmatpush2.msra.mxu0 0.0
    %1401 = vmatprep.subr.mxu0 0.0
    %1402 = vmatpush2.msra.mxu0 0.0
    %1403 = vmatprep.subr.mxu0 0.0
    %1404 = vmatpush2.msra.mxu0 0.0
    %1405 = vmatprep.subr.mxu0 0.0
    %1406 = vmatpush2.msra.mxu0 0.0
    %1407 = vmatprep.subr.mxu0 0.0
    %1408 = vmatpush2.msra.mxu0 0.0
    %1409 = vmatprep.subr.mxu0 0.0
    %1410 = vmatpush2.msra.mxu0 0.0
    %1411 = vmatprep.subr.mxu0 0.0
    %1412 = vmatpush2.msra.mxu0 0.0
    %1413 = vmatprep.subr.mxu0 0.0
    %1414 = vmatpush2.msra.mxu0 0.0
    %1415 = vmatprep.subr.mxu0 0.0
    %1416 = vmatpush2.msra.mxu0 0.0
    %1417 = vmatprep.subr.mxu0 0.0
    %1418 = vmatpush2.msra.mxu0 0.0
    %1419 = vmatprep.subr.mxu0 0.0
    %1420 = vmatpush2.msra.mxu0 0.0
    %1421 = vmatprep.subr.mxu0 0.0
    %1422 = vmatpush2.msra.mxu0 0.0
    %1423 = vmatprep.subr.mxu0 0.0
    %1424 = vmatpush2.msra.mxu0 0.0
    %1425 = vmatprep.subr.mxu0 0.0
    %1426 = vmatpush2.msra.mxu0 0.0
    %1427 = vmatprep.mubr.f32.mxu0 0.0
    %1428 = vmatmul.mubr.f32.gmra.mxu0 %v1361
    %v1429 = vpop.f32.mrf.mxu0
    %v1430 = vadd.f32 0.0, %v1429
    %v1431 = vpop.f32.mrf.mxu0
    %1432 = vdwg.mxu0
    %v1433 = vld [vmem:[#allocation4 + $0x108] sm:$0x1f]
    %v1435 = vrot.slane %v1430, 6
    %v1437 = vrot.slane %v1430, 4
    %v1439 = vrot.slane %v1430, 2
    %vm1441 = vcmask 1041408
    %v1442 = vsel %vm1441, %v1430, %v1435
    %vm1443 = vcmask 1043456
    %v1444 = vsel %vm1443, %v1442, %v1437
    %vm1445 = vcmask 1045504
    %v1446 = vsel %vm1445, %v1444, %v1439
    %1447 = vrot.lane.b32.xlu0 %v30, 112
    %v1448 = vpop.permute.xlu0 %1447
    %1449 = vrot.lane.b32.xlu0 %v31, 112
    %v1450 = vpop.permute.xlu0 %1449
    %vm1451 = vcmask 39936
    %v1452 = vsel %vm1451, %v1448, 0
    %v1454 = vsel %vm1451, %v1450, 0
    %v1457 = vsel %vm43, %v1433, 0
    %1459 = vmatprep.subr.mxu0 0.0
    %1460 = vmatpush1.msra.mxu0 0.0
    %1461 = vmatprep.subr.mxu0 0.0
    %1462 = vmatpush1.msra.mxu0 0.0
    %1463 = vmatprep.subr.mxu0 0.0
    %1464 = vmatpush1.msra.mxu0 0.0
    %1465 = vmatprep.subr.mxu0 0.0
    %1466 = vmatpush1.msra.mxu0 0.0
    %1467 = vmatprep.subr.mxu0 0.0
    %1468 = vmatpush1.msra.mxu0 0.0
    %1469 = vmatprep.subr.mxu0 0.0
    %1470 = vmatpush1.msra.mxu0 0.0
    %1471 = vmatprep.subr.mxu0 0.0
    %1472 = vmatpush1.msra.mxu0 0.0
    %1473 = vmatprep.subr.mxu0 0.0
    %1474 = vmatpush1.msra.mxu0 0.0
    %1475 = vmatprep.subr.mxu0 0.0
    %1476 = vmatpush1.msra.mxu0 0.0
    %1477 = vmatprep.subr.mxu0 0.0
    %1478 = vmatpush1.msra.mxu0 0.0
    %1479 = vmatprep.subr.mxu0 0.0
    %1480 = vmatpush1.msra.mxu0 0.0
    %1481 = vmatprep.subr.mxu0 0.0
    %1482 = vmatpush1.msra.mxu0 0.0
    %1483 = vmatprep.subr.mxu0 0.0
    %1484 = vmatpush1.msra.mxu0 0.0
    %1485 = vmatprep.subr.mxu0 0.0
    %1486 = vmatpush1.msra.mxu0 0.0
    %1487 = vmatprep.subr.mxu0 0.0
    %1488 = vmatpush1.msra.mxu0 0.0
    %1489 = vmatprep.subr.mxu0 0.0
    %1490 = vmatpush1.msra.mxu0 %v1457
    %1491 = vmatprep.subr.mxu0 0.0
    %1492 = vmatpush2.msra.mxu0 0.0
    %1493 = vmatprep.subr.mxu0 0.0
    %1494 = vmatpush2.msra.mxu0 0.0
    %1495 = vmatprep.subr.mxu0 0.0
    %1496 = vmatpush2.msra.mxu0 0.0
    %1497 = vmatprep.subr.mxu0 0.0
    %1498 = vmatpush2.msra.mxu0 0.0
    %1499 = vmatprep.subr.mxu0 0.0
    %1500 = vmatpush2.msra.mxu0 0.0
    %1501 = vmatprep.subr.mxu0 0.0
    %1502 = vmatpush2.msra.mxu0 0.0
    %1503 = vmatprep.subr.mxu0 0.0
    %1504 = vmatpush2.msra.mxu0 0.0
    %1505 = vmatprep.subr.mxu0 0.0
    %1506 = vmatpush2.msra.mxu0 0.0
    %1507 = vmatprep.subr.mxu0 0.0
    %1508 = vmatpush2.msra.mxu0 0.0
    %1509 = vmatprep.subr.mxu0 0.0
    %1510 = vmatpush2.msra.mxu0 0.0
    %1511 = vmatprep.subr.mxu0 0.0
    %1512 = vmatpush2.msra.mxu0 0.0
    %1513 = vmatprep.subr.mxu0 0.0
    %1514 = vmatpush2.msra.mxu0 0.0
    %1515 = vmatprep.subr.mxu0 0.0
    %1516 = vmatpush2.msra.mxu0 0.0
    %1517 = vmatprep.subr.mxu0 0.0
    %1518 = vmatpush2.msra.mxu0 0.0
    %1519 = vmatprep.subr.mxu0 0.0
    %1520 = vmatpush2.msra.mxu0 0.0
    %1521 = vmatprep.subr.mxu0 0.0
    %1522 = vmatpush2.msra.mxu0 0.0
    %1523 = vmatprep.mubr.f32.mxu0 0.0
    %1524 = vmatmul.mubr.f32.gmra.mxu0 %v1452
    %v1525 = vpop.f32.mrf.mxu0
    %v1526 = vadd.f32 %v1446, %v1525
    %v1527 = vpop.f32.mrf.mxu0
    %1528 = vmatprep.mubr.f32.mxu0 0.0
    %1529 = vmatmul.mubr.f32.gmra.mxu0 %v1454
    %v1530 = vpop.f32.mrf.mxu0
    %v1531 = vadd.f32 %v1446, %v1530
    %v1532 = vpop.f32.mrf.mxu0
    %1533 = vdwg.mxu0
    %1534 = vst [vmem:[#allocation2] sm:$0xff] %v1526
    %1535 = vst [vmem:[#allocation2 + $0x8] sm:$0xff] %v1531
    %v1536 = vld [vmem:[#allocation4 + $0x110] sm:$0xff]
    %v1537 = vld [vmem:[#allocation4 + $0x118] sm:$0xff]
    %v1538 = vld [vmem:[#allocation4 + $0x120] sm:$0xff]
    %v1539 = vld [vmem:[#allocation4 + $0x128] sm:$0xff]
    %v1540 = vld [vmem:[#allocation2] sm:$0x3]
    %1541 = vmatprep.subr.mxu0 0.0
    %1542 = vmatpush1.msra.mxu0 0.0
    %1543 = vmatprep.subr.mxu0 0.0
    %1544 = vmatpush1.msra.mxu0 0.0
    %1545 = vmatprep.subr.mxu0 0.0
    %1546 = vmatpush1.msra.mxu0 0.0
    %1547 = vmatprep.subr.mxu0 0.0
    %1548 = vmatpush1.msra.mxu0 0.0
    %1549 = vmatprep.subr.mxu0 0.0
    %1550 = vmatpush1.msra.mxu0 0.0
    %1551 = vmatprep.subr.mxu0 0.0
    %1552 = vmatpush1.msra.mxu0 0.0
    %1553 = vmatprep.subr.mxu0 0.0
    %1554 = vmatpush1.msra.mxu0 0.0
    %1555 = vmatprep.subr.mxu0 0.0
    %1556 = vmatpush1.msra.mxu0 0.0
    %1557 = vmatprep.subr.mxu0 0.0
    %1558 = vmatpush1.msra.mxu0 0.0
    %1559 = vmatprep.subr.mxu0 0.0
    %1560 = vmatpush1.msra.mxu0 0.0
    %1561 = vmatprep.subr.mxu0 0.0
    %1562 = vmatpush1.msra.mxu0 0.0
    %1563 = vmatprep.subr.mxu0 0.0
    %1564 = vmatpush1.msra.mxu0 0.0
    %1565 = vmatprep.subr.mxu0 0.0
    %1566 = vmatpush1.msra.mxu0 %v1539
    %1567 = vmatprep.subr.mxu0 0.0
    %1568 = vmatpush1.msra.mxu0 %v1538
    %1569 = vmatprep.subr.mxu0 0.0
    %1570 = vmatpush1.msra.mxu0 %v1537
    %1571 = vmatprep.subr.mxu0 0.0
    %1572 = vmatpush1.msra.mxu0 %v1536
    %1573 = vmatprep.subr.mxu0 0.0
    %1574 = vmatpush2.msra.mxu0 0.0
    %1575 = vmatprep.subr.mxu0 0.0
    %1576 = vmatpush2.msra.mxu0 0.0
    %1577 = vmatprep.subr.mxu0 0.0
    %1578 = vmatpush2.msra.mxu0 0.0
    %1579 = vmatprep.subr.mxu0 0.0
    %1580 = vmatpush2.msra.mxu0 0.0
    %1581 = vmatprep.subr.mxu0 0.0
    %1582 = vmatpush2.msra.mxu0 0.0
    %1583 = vmatprep.subr.mxu0 0.0
    %1584 = vmatpush2.msra.mxu0 0.0
    %1585 = vmatprep.subr.mxu0 0.0
    %1586 = vmatpush2.msra.mxu0 0.0
    %1587 = vmatprep.subr.mxu0 0.0
    %1588 = vmatpush2.msra.mxu0 0.0
    %1589 = vmatprep.subr.mxu0 0.0
    %1590 = vmatpush2.msra.mxu0 0.0
    %1591 = vmatprep.subr.mxu0 0.0
    %1592 = vmatpush2.msra.mxu0 0.0
    %1593 = vmatprep.subr.mxu0 0.0
    %1594 = vmatpush2.msra.mxu0 0.0
    %1595 = vmatprep.subr.mxu0 0.0
    %1596 = vmatpush2.msra.mxu0 0.0
    %1597 = vmatprep.subr.mxu0 0.0
    %1598 = vmatpush2.msra.mxu0 0.0
    %1599 = vmatprep.subr.mxu0 0.0
    %1600 = vmatpush2.msra.mxu0 0.0
    %1601 = vmatprep.subr.mxu0 0.0
    %1602 = vmatpush2.msra.mxu0 0.0
    %1603 = vmatprep.subr.mxu0 0.0
    %1604 = vmatpush2.msra.mxu0 0.0
    %1605 = vmatprep.mubr.f32.mxu0 0.0
    %1606 = vmatmul.mubr.f32.gmra.mxu0 %v131
    %v1607 = vpop.f32.mrf.mxu0
    %v1608 = vadd.f32 0.0, %v1607
    %v1609 = vpop.f32.mrf.mxu0
    %1610 = vdwg.mxu0
    %v1611 = vadd.f32 %v1540, %v1608
    %v1612 = vxor.u32 %v1611, 2147483648
    %v1613 = vmul.f32 %v1612, 1.442695
    %v1614 = vpow.pop %v1613
    %v1615 = vadd.f32 %v1614, 1.0
    %v1616 = vrcp.pop %v1615
    %v1617 = vmul.f32 1.0, %v1616
    %v1618 = vtanh.pop %v1611
    %v1619 = vmul.f32 %v1617, 0.0
    %1621 = vrot.lane.b32.xlu0 %v1618, 64
    %v1622 = vpop.permute.xlu0 %1621
    %v1624 = vmul.f32 %v1617, %v1622
    %1626 = vrot.lane.b32.xlu0 %v1624, 32
    %v1627 = vpop.permute.xlu0 %1626
    %v1629 = vadd.f32 %v1619, %v1627
    %v1630 = vtanh.pop %v1629
    %1632 = vrot.lane.b32.xlu0 %v1630, 64
    %v1633 = vpop.permute.xlu0 %1632
    %v1635 = vmul.f32 %v1617, %v1633
    %1637 = vrot.lane.b32.xlu0 %v1635, 32
    %v1638 = vpop.permute.xlu0 %1637
    %vm1640 = vcmask 254976
    %1641 = vst.msk [vmem:[#allocation3] sm:$0x3] %vm1640, %v1638
    %v1642 = vld [vmem:[#allocation2 + $0x2] sm:$0x3]
    %v1643 = vsel %vm129, %v1638, 0
    %1645 = vmatprep.subr.mxu0 0.0
    %1646 = vmatpush1.msra.mxu0 0.0
    %1647 = vmatprep.subr.mxu0 0.0
    %1648 = vmatpush1.msra.mxu0 0.0
    %1649 = vmatprep.subr.mxu0 0.0
    %1650 = vmatpush1.msra.mxu0 0.0
    %1651 = vmatprep.subr.mxu0 0.0
    %1652 = vmatpush1.msra.mxu0 0.0
    %1653 = vmatprep.subr.mxu0 0.0
    %1654 = vmatpush1.msra.mxu0 0.0
    %1655 = vmatprep.subr.mxu0 0.0
    %1656 = vmatpush1.msra.mxu0 0.0
    %1657 = vmatprep.subr.mxu0 0.0
    %1658 = vmatpush1.msra.mxu0 0.0
    %1659 = vmatprep.subr.mxu0 0.0
    %1660 = vmatpush1.msra.mxu0 0.0
    %1661 = vmatprep.subr.mxu0 0.0
    %1662 = vmatpush1.msra.mxu0 0.0
    %1663 = vmatprep.subr.mxu0 0.0
    %1664 = vmatpush1.msra.mxu0 0.0
    %1665 = vmatprep.subr.mxu0 0.0
    %1666 = vmatpush1.msra.mxu0 0.0
    %1667 = vmatprep.subr.mxu0 0.0
    %1668 = vmatpush1.msra.mxu0 0.0
    %1669 = vmatprep.subr.mxu0 0.0
    %1670 = vmatpush1.msra.mxu0 %v1539
    %1671 = vmatprep.subr.mxu0 0.0
    %1672 = vmatpush1.msra.mxu0 %v1538
    %1673 = vmatprep.subr.mxu0 0.0
    %1674 = vmatpush1.msra.mxu0 %v1537
    %1675 = vmatprep.subr.mxu0 0.0
    %1676 = vmatpush1.msra.mxu0 %v1536
    %1677 = vmatprep.subr.mxu0 0.0
    %1678 = vmatpush2.msra.mxu0 0.0
    %1679 = vmatprep.subr.mxu0 0.0
    %1680 = vmatpush2.msra.mxu0 0.0
    %1681 = vmatprep.subr.mxu0 0.0
    %1682 = vmatpush2.msra.mxu0 0.0
    %1683 = vmatprep.subr.mxu0 0.0
    %1684 = vmatpush2.msra.mxu0 0.0
    %1685 = vmatprep.subr.mxu0 0.0
    %1686 = vmatpush2.msra.mxu0 0.0
    %1687 = vmatprep.subr.mxu0 0.0
    %1688 = vmatpush2.msra.mxu0 0.0
    %1689 = vmatprep.subr.mxu0 0.0
    %1690 = vmatpush2.msra.mxu0 0.0
    %1691 = vmatprep.subr.mxu0 0.0
    %1692 = vmatpush2.msra.mxu0 0.0
    %1693 = vmatprep.subr.mxu0 0.0
    %1694 = vmatpush2.msra.mxu0 0.0
    %1695 = vmatprep.subr.mxu0 0.0
    %1696 = vmatpush2.msra.mxu0 0.0
    %1697 = vmatprep.subr.mxu0 0.0
    %1698 = vmatpush2.msra.mxu0 0.0
    %1699 = vmatprep.subr.mxu0 0.0
    %1700 = vmatpush2.msra.mxu0 0.0
    %1701 = vmatprep.subr.mxu0 0.0
    %1702 = vmatpush2.msra.mxu0 0.0
    %1703 = vmatprep.subr.mxu0 0.0
    %1704 = vmatpush2.msra.mxu0 0.0
    %1705 = vmatprep.subr.mxu0 0.0
    %1706 = vmatpush2.msra.mxu0 0.0
    %1707 = vmatprep.subr.mxu0 0.0
    %1708 = vmatpush2.msra.mxu0 0.0
    %1709 = vmatprep.mubr.f32.mxu0 0.0
    %1710 = vmatmul.mubr.f32.gmra.mxu0 %v1643
    %v1711 = vpop.f32.mrf.mxu0
    %v1712 = vadd.f32 0.0, %v1711
    %v1713 = vpop.f32.mrf.mxu0
    %1714 = vdwg.mxu0
    %v1715 = vadd.f32 %v1642, %v1712
    %v1716 = vxor.u32 %v1715, 2147483648
    %v1717 = vmul.f32 %v1716, 1.442695
    %v1718 = vpow.pop %v1717
    %v1719 = vadd.f32 %v1718, 1.0
    %v1720 = vrcp.pop %v1719
    %v1721 = vmul.f32 1.0, %v1720
    %v1722 = vtanh.pop %v1715
    %v1723 = vmul.f32 %v1721, %v1629
    %1725 = vrot.lane.b32.xlu0 %v1722, 64
    %v1726 = vpop.permute.xlu0 %1725
    %v1728 = vmul.f32 %v1721, %v1726
    %1730 = vrot.lane.b32.xlu0 %v1728, 32
    %v1731 = vpop.permute.xlu0 %1730
    %v1733 = vadd.f32 %v1723, %v1731
    %v1734 = vtanh.pop %v1733
    %1736 = vrot.lane.b32.xlu0 %v1734, 64
    %v1737 = vpop.permute.xlu0 %1736
    %v1739 = vmul.f32 %v1721, %v1737
    %1741 = vrot.lane.b32.xlu0 %v1739, 32
    %v1742 = vpop.permute.xlu0 %1741
    %1744 = vst.msk [vmem:[#allocation3 + $0x2] sm:$0x3] %vm1640, %v1742
    %v1745 = vld [vmem:[#allocation2 + $0x4] sm:$0x3]
    %v1746 = vsel %vm129, %v1742, 0
    %1748 = vmatprep.subr.mxu0 0.0
    %1749 = vmatpush1.msra.mxu0 0.0
    %1750 = vmatprep.subr.mxu0 0.0
    %1751 = vmatpush1.msra.mxu0 0.0
    %1752 = vmatprep.subr.mxu0 0.0
    %1753 = vmatpush1.msra.mxu0 0.0
    %1754 = vmatprep.subr.mxu0 0.0
    %1755 = vmatpush1.msra.mxu0 0.0
    %1756 = vmatprep.subr.mxu0 0.0
    %1757 = vmatpush1.msra.mxu0 0.0
    %1758 = vmatprep.subr.mxu0 0.0
    %1759 = vmatpush1.msra.mxu0 0.0
    %1760 = vmatprep.subr.mxu0 0.0
    %1761 = vmatpush1.msra.mxu0 0.0
    %1762 = vmatprep.subr.mxu0 0.0
    %1763 = vmatpush1.msra.mxu0 0.0
    %1764 = vmatprep.subr.mxu0 0.0
    %1765 = vmatpush1.msra.mxu0 0.0
    %1766 = vmatprep.subr.mxu0 0.0
    %1767 = vmatpush1.msra.mxu0 0.0
    %1768 = vmatprep.subr.mxu0 0.0
    %1769 = vmatpush1.msra.mxu0 0.0
    %1770 = vmatprep.subr.mxu0 0.0
    %1771 = vmatpush1.msra.mxu0 0.0
    %1772 = vmatprep.subr.mxu0 0.0
    %1773 = vmatpush1.msra.mxu0 %v1539
    %1774 = vmatprep.subr.mxu0 0.0
    %1775 = vmatpush1.msra.mxu0 %v1538
    %1776 = vmatprep.subr.mxu0 0.0
    %1777 = vmatpush1.msra.mxu0 %v1537
    %1778 = vmatprep.subr.mxu0 0.0
    %1779 = vmatpush1.msra.mxu0 %v1536
    %1780 = vmatprep.subr.mxu0 0.0
    %1781 = vmatpush2.msra.mxu0 0.0
    %1782 = vmatprep.subr.mxu0 0.0
    %1783 = vmatpush2.msra.mxu0 0.0
    %1784 = vmatprep.subr.mxu0 0.0
    %1785 = vmatpush2.msra.mxu0 0.0
    %1786 = vmatprep.subr.mxu0 0.0
    %1787 = vmatpush2.msra.mxu0 0.0
    %1788 = vmatprep.subr.mxu0 0.0
    %1789 = vmatpush2.msra.mxu0 0.0
    %1790 = vmatprep.subr.mxu0 0.0
    %1791 = vmatpush2.msra.mxu0 0.0
    %1792 = vmatprep.subr.mxu0 0.0
    %1793 = vmatpush2.msra.mxu0 0.0
    %1794 = vmatprep.subr.mxu0 0.0
    %1795 = vmatpush2.msra.mxu0 0.0
    %1796 = vmatprep.subr.mxu0 0.0
    %1797 = vmatpush2.msra.mxu0 0.0
    %1798 = vmatprep.subr.mxu0 0.0
    %1799 = vmatpush2.msra.mxu0 0.0
    %1800 = vmatprep.subr.mxu0 0.0
    %1801 = vmatpush2.msra.mxu0 0.0
    %1802 = vmatprep.subr.mxu0 0.0
    %1803 = vmatpush2.msra.mxu0 0.0
    %1804 = vmatprep.subr.mxu0 0.0
    %1805 = vmatpush2.msra.mxu0 0.0
    %1806 = vmatprep.subr.mxu0 0.0
    %1807 = vmatpush2.msra.mxu0 0.0
    %1808 = vmatprep.subr.mxu0 0.0
    %1809 = vmatpush2.msra.mxu0 0.0
    %1810 = vmatprep.subr.mxu0 0.0
    %1811 = vmatpush2.msra.mxu0 0.0
    %1812 = vmatprep.mubr.f32.mxu0 0.0
    %1813 = vmatmul.mubr.f32.gmra.mxu0 %v1746
    %v1814 = vpop.f32.mrf.mxu0
    %v1815 = vadd.f32 0.0, %v1814
    %v1816 = vpop.f32.mrf.mxu0
    %1817 = vdwg.mxu0
    %v1818 = vadd.f32 %v1745, %v1815
    %v1819 = vxor.u32 %v1818, 2147483648
    %v1820 = vmul.f32 %v1819, 1.442695
    %v1821 = vpow.pop %v1820
    %v1822 = vadd.f32 %v1821, 1.0
    %v1823 = vrcp.pop %v1822
    %v1824 = vmul.f32 1.0, %v1823
    %v1825 = vtanh.pop %v1818
    %v1826 = vmul.f32 %v1824, %v1733
    %1828 = vrot.lane.b32.xlu0 %v1825, 64
    %v1829 = vpop.permute.xlu0 %1828
    %v1831 = vmul.f32 %v1824, %v1829
    %1833 = vrot.lane.b32.xlu0 %v1831, 32
    %v1834 = vpop.permute.xlu0 %1833
    %v1836 = vadd.f32 %v1826, %v1834
    %v1837 = vtanh.pop %v1836
    %1839 = vrot.lane.b32.xlu0 %v1837, 64
    %v1840 = vpop.permute.xlu0 %1839
    %v1842 = vmul.f32 %v1824, %v1840
    %1844 = vrot.lane.b32.xlu0 %v1842, 32
    %v1845 = vpop.permute.xlu0 %1844
    %1847 = vst.msk [vmem:[#allocation3 + $0x4] sm:$0x3] %vm1640, %v1845
    %v1848 = vld [vmem:[#allocation2 + $0x6] sm:$0x3]
    %v1849 = vsel %vm129, %v1845, 0
    %1851 = vmatprep.subr.mxu0 0.0
    %1852 = vmatpush1.msra.mxu0 0.0
    %1853 = vmatprep.subr.mxu0 0.0
    %1854 = vmatpush1.msra.mxu0 0.0
    %1855 = vmatprep.subr.mxu0 0.0
    %1856 = vmatpush1.msra.mxu0 0.0
    %1857 = vmatprep.subr.mxu0 0.0
    %1858 = vmatpush1.msra.mxu0 0.0
    %1859 = vmatprep.subr.mxu0 0.0
    %1860 = vmatpush1.msra.mxu0 0.0
    %1861 = vmatprep.subr.mxu0 0.0
    %1862 = vmatpush1.msra.mxu0 0.0
    %1863 = vmatprep.subr.mxu0 0.0
    %1864 = vmatpush1.msra.mxu0 0.0
    %1865 = vmatprep.subr.mxu0 0.0
    %1866 = vmatpush1.msra.mxu0 0.0
    %1867 = vmatprep.subr.mxu0 0.0
    %1868 = vmatpush1.msra.mxu0 0.0
    %1869 = vmatprep.subr.mxu0 0.0
    %1870 = vmatpush1.msra.mxu0 0.0
    %1871 = vmatprep.subr.mxu0 0.0
    %1872 = vmatpush1.msra.mxu0 0.0
    %1873 = vmatprep.subr.mxu0 0.0
    %1874 = vmatpush1.msra.mxu0 0.0
    %1875 = vmatprep.subr.mxu0 0.0
    %1876 = vmatpush1.msra.mxu0 %v1539
    %1877 = vmatprep.subr.mxu0 0.0
    %1878 = vmatpush1.msra.mxu0 %v1538
    %1879 = vmatprep.subr.mxu0 0.0
    %1880 = vmatpush1.msra.mxu0 %v1537
    %1881 = vmatprep.subr.mxu0 0.0
    %1882 = vmatpush1.msra.mxu0 %v1536
    %1883 = vmatprep.subr.mxu0 0.0
    %1884 = vmatpush2.msra.mxu0 0.0
    %1885 = vmatprep.subr.mxu0 0.0
    %1886 = vmatpush2.msra.mxu0 0.0
    %1887 = vmatprep.subr.mxu0 0.0
    %1888 = vmatpush2.msra.mxu0 0.0
    %1889 = vmatprep.subr.mxu0 0.0
    %1890 = vmatpush2.msra.mxu0 0.0
    %1891 = vmatprep.subr.mxu0 0.0
    %1892 = vmatpush2.msra.mxu0 0.0
    %1893 = vmatprep.subr.mxu0 0.0
    %1894 = vmatpush2.msra.mxu0 0.0
    %1895 = vmatprep.subr.mxu0 0.0
    %1896 = vmatpush2.msra.mxu0 0.0
    %1897 = vmatprep.subr.mxu0 0.0
    %1898 = vmatpush2.msra.mxu0 0.0
    %1899 = vmatprep.subr.mxu0 0.0
    %1900 = vmatpush2.msra.mxu0 0.0
    %1901 = vmatprep.subr.mxu0 0.0
    %1902 = vmatpush2.msra.mxu0 0.0
    %1903 = vmatprep.subr.mxu0 0.0
    %1904 = vmatpush2.msra.mxu0 0.0
    %1905 = vmatprep.subr.mxu0 0.0
    %1906 = vmatpush2.msra.mxu0 0.0
    %1907 = vmatprep.subr.mxu0 0.0
    %1908 = vmatpush2.msra.mxu0 0.0
    %1909 = vmatprep.subr.mxu0 0.0
    %1910 = vmatpush2.msra.mxu0 0.0
    %1911 = vmatprep.subr.mxu0 0.0
    %1912 = vmatpush2.msra.mxu0 0.0
    %1913 = vmatprep.subr.mxu0 0.0
    %1914 = vmatpush2.msra.mxu0 0.0
    %1915 = vmatprep.mubr.f32.mxu0 0.0
    %1916 = vmatmul.mubr.f32.gmra.mxu0 %v1849
    %v1917 = vpop.f32.mrf.mxu0
    %v1918 = vadd.f32 0.0, %v1917
    %v1919 = vpop.f32.mrf.mxu0
    %1920 = vdwg.mxu0
    %v1921 = vadd.f32 %v1848, %v1918
    %v1922 = vxor.u32 %v1921, 2147483648
    %v1923 = vmul.f32 %v1922, 1.442695
    %v1924 = vpow.pop %v1923
    %v1925 = vadd.f32 %v1924, 1.0
    %v1926 = vrcp.pop %v1925
    %v1927 = vmul.f32 1.0, %v1926
    %v1928 = vtanh.pop %v1921
    %v1929 = vmul.f32 %v1927, %v1836
    %1931 = vrot.lane.b32.xlu0 %v1928, 64
    %v1932 = vpop.permute.xlu0 %1931
    %v1934 = vmul.f32 %v1927, %v1932
    %1936 = vrot.lane.b32.xlu0 %v1934, 32
    %v1937 = vpop.permute.xlu0 %1936
    %v1939 = vadd.f32 %v1929, %v1937
    %v1940 = vtanh.pop %v1939
    %1942 = vrot.lane.b32.xlu0 %v1940, 64
    %v1943 = vpop.permute.xlu0 %1942
    %v1945 = vmul.f32 %v1927, %v1943
    %1947 = vrot.lane.b32.xlu0 %v1945, 32
    %v1948 = vpop.permute.xlu0 %1947
    %1950 = vst.msk [vmem:[#allocation3 + $0x6] sm:$0x3] %vm1640, %v1948
    %v1951 = vld [vmem:[#allocation2 + $0x8] sm:$0x3]
    %v1952 = vsel %vm129, %v1948, 0
    %1954 = vmatprep.subr.mxu0 0.0
    %1955 = vmatpush1.msra.mxu0 0.0
    %1956 = vmatprep.subr.mxu0 0.0
    %1957 = vmatpush1.msra.mxu0 0.0
    %1958 = vmatprep.subr.mxu0 0.0
    %1959 = vmatpush1.msra.mxu0 0.0
    %1960 = vmatprep.subr.mxu0 0.0
    %1961 = vmatpush1.msra.mxu0 0.0
    %1962 = vmatprep.subr.mxu0 0.0
    %1963 = vmatpush1.msra.mxu0 0.0
    %1964 = vmatprep.subr.mxu0 0.0
    %1965 = vmatpush1.msra.mxu0 0.0
    %1966 = vmatprep.subr.mxu0 0.0
    %1967 = vmatpush1.msra.mxu0 0.0
    %1968 = vmatprep.subr.mxu0 0.0
    %1969 = vmatpush1.msra.mxu0 0.0
    %1970 = vmatprep.subr.mxu0 0.0
    %1971 = vmatpush1.msra.mxu0 0.0
    %1972 = vmatprep.subr.mxu0 0.0
    %1973 = vmatpush1.msra.mxu0 0.0
    %1974 = vmatprep.subr.mxu0 0.0
    %1975 = vmatpush1.msra.mxu0 0.0
    %1976 = vmatprep.subr.mxu0 0.0
    %1977 = vmatpush1.msra.mxu0 0.0
    %1978 = vmatprep.subr.mxu0 0.0
    %1979 = vmatpush1.msra.mxu0 %v1539
    %1980 = vmatprep.subr.mxu0 0.0
    %1981 = vmatpush1.msra.mxu0 %v1538
    %1982 = vmatprep.subr.mxu0 0.0
    %1983 = vmatpush1.msra.mxu0 %v1537
    %1984 = vmatprep.subr.mxu0 0.0
    %1985 = vmatpush1.msra.mxu0 %v1536
    %1986 = vmatprep.subr.mxu0 0.0
    %1987 = vmatpush2.msra.mxu0 0.0
    %1988 = vmatprep.subr.mxu0 0.0
    %1989 = vmatpush2.msra.mxu0 0.0
    %1990 = vmatprep.subr.mxu0 0.0
    %1991 = vmatpush2.msra.mxu0 0.0
    %1992 = vmatprep.subr.mxu0 0.0
    %1993 = vmatpush2.msra.mxu0 0.0
    %1994 = vmatprep.subr.mxu0 0.0
    %1995 = vmatpush2.msra.mxu0 0.0
    %1996 = vmatprep.subr.mxu0 0.0
    %1997 = vmatpush2.msra.mxu0 0.0
    %1998 = vmatprep.subr.mxu0 0.0
    %1999 = vmatpush2.msra.mxu0 0.0
    %2000 = vmatprep.subr.mxu0 0.0
    %2001 = vmatpush2.msra.mxu0 0.0
    %2002 = vmatprep.subr.mxu0 0.0
    %2003 = vmatpush2.msra.mxu0 0.0
    %2004 = vmatprep.subr.mxu0 0.0
    %2005 = vmatpush2.msra.mxu0 0.0
    %2006 = vmatprep.subr.mxu0 0.0
    %2007 = vmatpush2.msra.mxu0 0.0
    %2008 = vmatprep.subr.mxu0 0.0
    %2009 = vmatpush2.msra.mxu0 0.0
    %2010 = vmatprep.subr.mxu0 0.0
    %2011 = vmatpush2.msra.mxu0 0.0
    %2012 = vmatprep.subr.mxu0 0.0
    %2013 = vmatpush2.msra.mxu0 0.0
    %2014 = vmatprep.subr.mxu0 0.0
    %2015 = vmatpush2.msra.mxu0 0.0
    %2016 = vmatprep.subr.mxu0 0.0
    %2017 = vmatpush2.msra.mxu0 0.0
    %2018 = vmatprep.mubr.f32.mxu0 0.0
    %2019 = vmatmul.mubr.f32.gmra.mxu0 %v1952
    %v2020 = vpop.f32.mrf.mxu0
    %v2021 = vadd.f32 0.0, %v2020
    %v2022 = vpop.f32.mrf.mxu0
    %2023 = vdwg.mxu0
    %v2024 = vadd.f32 %v1951, %v2021
    %v2025 = vxor.u32 %v2024, 2147483648
    %v2026 = vmul.f32 %v2025, 1.442695
    %v2027 = vpow.pop %v2026
    %v2028 = vadd.f32 %v2027, 1.0
    %v2029 = vrcp.pop %v2028
    %v2030 = vmul.f32 1.0, %v2029
    %v2031 = vtanh.pop %v2024
    %v2032 = vmul.f32 %v2030, %v1939
    %2034 = vrot.lane.b32.xlu0 %v2031, 64
    %v2035 = vpop.permute.xlu0 %2034
    %v2037 = vmul.f32 %v2030, %v2035
    %2039 = vrot.lane.b32.xlu0 %v2037, 32
    %v2040 = vpop.permute.xlu0 %2039
    %v2042 = vadd.f32 %v2032, %v2040
    %v2043 = vtanh.pop %v2042
    %2045 = vrot.lane.b32.xlu0 %v2043, 64
    %v2046 = vpop.permute.xlu0 %2045
    %v2048 = vmul.f32 %v2030, %v2046
    %2050 = vrot.lane.b32.xlu0 %v2048, 32
    %v2051 = vpop.permute.xlu0 %2050
    %2053 = vst.msk [vmem:[#allocation3 + $0x8] sm:$0x3] %vm1640, %v2051
    %v2054 = vld [vmem:[#allocation2 + $0xa] sm:$0x3]
    %v2055 = vsel %vm129, %v2051, 0
    %2057 = vmatprep.subr.mxu0 0.0
    %2058 = vmatpush1.msra.mxu0 0.0
    %2059 = vmatprep.subr.mxu0 0.0
    %2060 = vmatpush1.msra.mxu0 0.0
    %2061 = vmatprep.subr.mxu0 0.0
    %2062 = vmatpush1.msra.mxu0 0.0
    %2063 = vmatprep.subr.mxu0 0.0
    %2064 = vmatpush1.msra.mxu0 0.0
    %2065 = vmatprep.subr.mxu0 0.0
    %2066 = vmatpush1.msra.mxu0 0.0
    %2067 = vmatprep.subr.mxu0 0.0
    %2068 = vmatpush1.msra.mxu0 0.0
    %2069 = vmatprep.subr.mxu0 0.0
    %2070 = vmatpush1.msra.mxu0 0.0
    %2071 = vmatprep.subr.mxu0 0.0
    %2072 = vmatpush1.msra.mxu0 0.0
    %2073 = vmatprep.subr.mxu0 0.0
    %2074 = vmatpush1.msra.mxu0 0.0
    %2075 = vmatprep.subr.mxu0 0.0
    %2076 = vmatpush1.msra.mxu0 0.0
    %2077 = vmatprep.subr.mxu0 0.0
    %2078 = vmatpush1.msra.mxu0 0.0
    %2079 = vmatprep.subr.mxu0 0.0
    %2080 = vmatpush1.msra.mxu0 0.0
    %2081 = vmatprep.subr.mxu0 0.0
    %2082 = vmatpush1.msra.mxu0 %v1539
    %2083 = vmatprep.subr.mxu0 0.0
    %2084 = vmatpush1.msra.mxu0 %v1538
    %2085 = vmatprep.subr.mxu0 0.0
    %2086 = vmatpush1.msra.mxu0 %v1537
    %2087 = vmatprep.subr.mxu0 0.0
    %2088 = vmatpush1.msra.mxu0 %v1536
    %2089 = vmatprep.subr.mxu0 0.0
    %2090 = vmatpush2.msra.mxu0 0.0
    %2091 = vmatprep.subr.mxu0 0.0
    %2092 = vmatpush2.msra.mxu0 0.0
    %2093 = vmatprep.subr.mxu0 0.0
    %2094 = vmatpush2.msra.mxu0 0.0
    %2095 = vmatprep.subr.mxu0 0.0
    %2096 = vmatpush2.msra.mxu0 0.0
    %2097 = vmatprep.subr.mxu0 0.0
    %2098 = vmatpush2.msra.mxu0 0.0
    %2099 = vmatprep.subr.mxu0 0.0
    %2100 = vmatpush2.msra.mxu0 0.0
    %2101 = vmatprep.subr.mxu0 0.0
    %2102 = vmatpush2.msra.mxu0 0.0
    %2103 = vmatprep.subr.mxu0 0.0
    %2104 = vmatpush2.msra.mxu0 0.0
    %2105 = vmatprep.subr.mxu0 0.0
    %2106 = vmatpush2.msra.mxu0 0.0
    %2107 = vmatprep.subr.mxu0 0.0
    %2108 = vmatpush2.msra.mxu0 0.0
    %2109 = vmatprep.subr.mxu0 0.0
    %2110 = vmatpush2.msra.mxu0 0.0
    %2111 = vmatprep.subr.mxu0 0.0
    %2112 = vmatpush2.msra.mxu0 0.0
    %2113 = vmatprep.subr.mxu0 0.0
    %2114 = vmatpush2.msra.mxu0 0.0
    %2115 = vmatprep.subr.mxu0 0.0
    %2116 = vmatpush2.msra.mxu0 0.0
    %2117 = vmatprep.subr.mxu0 0.0
    %2118 = vmatpush2.msra.mxu0 0.0
    %2119 = vmatprep.subr.mxu0 0.0
    %2120 = vmatpush2.msra.mxu0 0.0
    %2121 = vmatprep.mubr.f32.mxu0 0.0
    %2122 = vmatmul.mubr.f32.gmra.mxu0 %v2055
    %v2123 = vpop.f32.mrf.mxu0
    %v2124 = vadd.f32 0.0, %v2123
    %v2125 = vpop.f32.mrf.mxu0
    %2126 = vdwg.mxu0
    %v2127 = vadd.f32 %v2054, %v2124
    %v2128 = vxor.u32 %v2127, 2147483648
    %v2129 = vmul.f32 %v2128, 1.442695
    %v2130 = vpow.pop %v2129
    %v2131 = vadd.f32 %v2130, 1.0
    %v2132 = vrcp.pop %v2131
    %v2133 = vmul.f32 1.0, %v2132
    %v2134 = vtanh.pop %v2127
    %v2135 = vmul.f32 %v2133, %v2042
    %2137 = vrot.lane.b32.xlu0 %v2134, 64
    %v2138 = vpop.permute.xlu0 %2137
    %v2140 = vmul.f32 %v2133, %v2138
    %2142 = vrot.lane.b32.xlu0 %v2140, 32
    %v2143 = vpop.permute.xlu0 %2142
    %v2145 = vadd.f32 %v2135, %v2143
    %v2146 = vtanh.pop %v2145
    %2148 = vrot.lane.b32.xlu0 %v2146, 64
    %v2149 = vpop.permute.xlu0 %2148
    %v2151 = vmul.f32 %v2133, %v2149
    %2153 = vrot.lane.b32.xlu0 %v2151, 32
    %v2154 = vpop.permute.xlu0 %2153
    %2156 = vst.msk [vmem:[#allocation3 + $0xa] sm:$0x3] %vm1640, %v2154
    %v2157 = vld [vmem:[#allocation2 + $0xc] sm:$0x3]
    %v2158 = vsel %vm129, %v2154, 0
    %2160 = vmatprep.subr.mxu0 0.0
    %2161 = vmatpush1.msra.mxu0 0.0
    %2162 = vmatprep.subr.mxu0 0.0
    %2163 = vmatpush1.msra.mxu0 0.0
    %2164 = vmatprep.subr.mxu0 0.0
    %2165 = vmatpush1.msra.mxu0 0.0
    %2166 = vmatprep.subr.mxu0 0.0
    %2167 = vmatpush1.msra.mxu0 0.0
    %2168 = vmatprep.subr.mxu0 0.0
    %2169 = vmatpush1.msra.mxu0 0.0
    %2170 = vmatprep.subr.mxu0 0.0
    %2171 = vmatpush1.msra.mxu0 0.0
    %2172 = vmatprep.subr.mxu0 0.0
    %2173 = vmatpush1.msra.mxu0 0.0
    %2174 = vmatprep.subr.mxu0 0.0
    %2175 = vmatpush1.msra.mxu0 0.0
    %2176 = vmatprep.subr.mxu0 0.0
    %2177 = vmatpush1.msra.mxu0 0.0
    %2178 = vmatprep.subr.mxu0 0.0
    %2179 = vmatpush1.msra.mxu0 0.0
    %2180 = vmatprep.subr.mxu0 0.0
    %2181 = vmatpush1.msra.mxu0 0.0
    %2182 = vmatprep.subr.mxu0 0.0
    %2183 = vmatpush1.msra.mxu0 0.0
    %2184 = vmatprep.subr.mxu0 0.0
    %2185 = vmatpush1.msra.mxu0 %v1539
    %2186 = vmatprep.subr.mxu0 0.0
    %2187 = vmatpush1.msra.mxu0 %v1538
    %2188 = vmatprep.subr.mxu0 0.0
    %2189 = vmatpush1.msra.mxu0 %v1537
    %2190 = vmatprep.subr.mxu0 0.0
    %2191 = vmatpush1.msra.mxu0 %v1536
    %2192 = vmatprep.subr.mxu0 0.0
    %2193 = vmatpush2.msra.mxu0 0.0
    %2194 = vmatprep.subr.mxu0 0.0
    %2195 = vmatpush2.msra.mxu0 0.0
    %2196 = vmatprep.subr.mxu0 0.0
    %2197 = vmatpush2.msra.mxu0 0.0
    %2198 = vmatprep.subr.mxu0 0.0
    %2199 = vmatpush2.msra.mxu0 0.0
    %2200 = vmatprep.subr.mxu0 0.0
    %2201 = vmatpush2.msra.mxu0 0.0
    %2202 = vmatprep.subr.mxu0 0.0
    %2203 = vmatpush2.msra.mxu0 0.0
    %2204 = vmatprep.subr.mxu0 0.0
    %2205 = vmatpush2.msra.mxu0 0.0
    %2206 = vmatprep.subr.mxu0 0.0
    %2207 = vmatpush2.msra.mxu0 0.0
    %2208 = vmatprep.subr.mxu0 0.0
    %2209 = vmatpush2.msra.mxu0 0.0
    %2210 = vmatprep.subr.mxu0 0.0
    %2211 = vmatpush2.msra.mxu0 0.0
    %2212 = vmatprep.subr.mxu0 0.0
    %2213 = vmatpush2.msra.mxu0 0.0
    %2214 = vmatprep.subr.mxu0 0.0
    %2215 = vmatpush2.msra.mxu0 0.0
    %2216 = vmatprep.subr.mxu0 0.0
    %2217 = vmatpush2.msra.mxu0 0.0
    %2218 = vmatprep.subr.mxu0 0.0
    %2219 = vmatpush2.msra.mxu0 0.0
    %2220 = vmatprep.subr.mxu0 0.0
    %2221 = vmatpush2.msra.mxu0 0.0
    %2222 = vmatprep.subr.mxu0 0.0
    %2223 = vmatpush2.msra.mxu0 0.0
    %2224 = vmatprep.mubr.f32.mxu0 0.0
    %2225 = vmatmul.mubr.f32.gmra.mxu0 %v2158
    %v2226 = vpop.f32.mrf.mxu0
    %v2227 = vadd.f32 0.0, %v2226
    %v2228 = vpop.f32.mrf.mxu0
    %2229 = vdwg.mxu0
    %v2230 = vadd.f32 %v2157, %v2227
    %v2231 = vxor.u32 %v2230, 2147483648
    %v2232 = vmul.f32 %v2231, 1.442695
    %v2233 = vpow.pop %v2232
    %v2234 = vadd.f32 %v2233, 1.0
    %v2235 = vrcp.pop %v2234
    %v2236 = vmul.f32 1.0, %v2235
    %v2237 = vtanh.pop %v2230
    %v2238 = vmul.f32 %v2236, %v2145
    %2240 = vrot.lane.b32.xlu0 %v2237, 64
    %v2241 = vpop.permute.xlu0 %2240
    %v2243 = vmul.f32 %v2236, %v2241
    %2245 = vrot.lane.b32.xlu0 %v2243, 32
    %v2246 = vpop.permute.xlu0 %2245
    %v2248 = vadd.f32 %v2238, %v2246
    %v2249 = vtanh.pop %v2248
    %2251 = vrot.lane.b32.xlu0 %v2249, 64
    %v2252 = vpop.permute.xlu0 %2251
    %v2254 = vmul.f32 %v2236, %v2252
    %2256 = vrot.lane.b32.xlu0 %v2254, 32
    %v2257 = vpop.permute.xlu0 %2256
    %2259 = vst.msk [vmem:[#allocation3 + $0xc] sm:$0x3] %vm1640, %v2257
    %v2260 = vld [vmem:[#allocation2 + $0xe] sm:$0x3]
    %v2261 = vsel %vm129, %v2257, 0
    %2263 = vmatprep.subr.mxu0 0.0
    %2264 = vmatpush1.msra.mxu0 0.0
    %2265 = vmatprep.subr.mxu0 0.0
    %2266 = vmatpush1.msra.mxu0 0.0
    %2267 = vmatprep.subr.mxu0 0.0
    %2268 = vmatpush1.msra.mxu0 0.0
    %2269 = vmatprep.subr.mxu0 0.0
    %2270 = vmatpush1.msra.mxu0 0.0
    %2271 = vmatprep.subr.mxu0 0.0
    %2272 = vmatpush1.msra.mxu0 0.0
    %2273 = vmatprep.subr.mxu0 0.0
    %2274 = vmatpush1.msra.mxu0 0.0
    %2275 = vmatprep.subr.mxu0 0.0
    %2276 = vmatpush1.msra.mxu0 0.0
    %2277 = vmatprep.subr.mxu0 0.0
    %2278 = vmatpush1.msra.mxu0 0.0
    %2279 = vmatprep.subr.mxu0 0.0
    %2280 = vmatpush1.msra.mxu0 0.0
    %2281 = vmatprep.subr.mxu0 0.0
    %2282 = vmatpush1.msra.mxu0 0.0
    %2283 = vmatprep.subr.mxu0 0.0
    %2284 = vmatpush1.msra.mxu0 0.0
    %2285 = vmatprep.subr.mxu0 0.0
    %2286 = vmatpush1.msra.mxu0 0.0
    %2287 = vmatprep.subr.mxu0 0.0
    %2288 = vmatpush1.msra.mxu0 %v1539
    %2289 = vmatprep.subr.mxu0 0.0
    %2290 = vmatpush1.msra.mxu0 %v1538
    %2291 = vmatprep.subr.mxu0 0.0
    %2292 = vmatpush1.msra.mxu0 %v1537
    %2293 = vmatprep.subr.mxu0 0.0
    %2294 = vmatpush1.msra.mxu0 %v1536
    %2295 = vmatprep.subr.mxu0 0.0
    %2296 = vmatpush2.msra.mxu0 0.0
    %2297 = vmatprep.subr.mxu0 0.0
    %2298 = vmatpush2.msra.mxu0 0.0
    %2299 = vmatprep.subr.mxu0 0.0
    %2300 = vmatpush2.msra.mxu0 0.0
    %2301 = vmatprep.subr.mxu0 0.0
    %2302 = vmatpush2.msra.mxu0 0.0
    %2303 = vmatprep.subr.mxu0 0.0
    %2304 = vmatpush2.msra.mxu0 0.0
    %2305 = vmatprep.subr.mxu0 0.0
    %2306 = vmatpush2.msra.mxu0 0.0
    %2307 = vmatprep.subr.mxu0 0.0
    %2308 = vmatpush2.msra.mxu0 0.0
    %2309 = vmatprep.subr.mxu0 0.0
    %2310 = vmatpush2.msra.mxu0 0.0
    %2311 = vmatprep.subr.mxu0 0.0
    %2312 = vmatpush2.msra.mxu0 0.0
    %2313 = vmatprep.subr.mxu0 0.0
    %2314 = vmatpush2.msra.mxu0 0.0
    %2315 = vmatprep.subr.mxu0 0.0
    %2316 = vmatpush2.msra.mxu0 0.0
    %2317 = vmatprep.subr.mxu0 0.0
    %2318 = vmatpush2.msra.mxu0 0.0
    %2319 = vmatprep.subr.mxu0 0.0
    %2320 = vmatpush2.msra.mxu0 0.0
    %2321 = vmatprep.subr.mxu0 0.0
    %2322 = vmatpush2.msra.mxu0 0.0
    %2323 = vmatprep.subr.mxu0 0.0
    %2324 = vmatpush2.msra.mxu0 0.0
    %2325 = vmatprep.subr.mxu0 0.0
    %2326 = vmatpush2.msra.mxu0 0.0
    %2327 = vmatprep.mubr.f32.mxu0 0.0
    %2328 = vmatmul.mubr.f32.gmra.mxu0 %v2261
    %v2329 = vpop.f32.mrf.mxu0
    %v2330 = vadd.f32 0.0, %v2329
    %v2331 = vpop.f32.mrf.mxu0
    %2332 = vdwg.mxu0
    %v2333 = vadd.f32 %v2260, %v2330
    %v2334 = vxor.u32 %v2333, 2147483648
    %v2335 = vmul.f32 %v2334, 1.442695
    %v2336 = vpow.pop %v2335
    %v2337 = vadd.f32 %v2336, 1.0
    %v2338 = vrcp.pop %v2337
    %v2339 = vmul.f32 1.0, %v2338
    %v2340 = vtanh.pop %v2333
    %v2341 = vmul.f32 %v2339, %v2248
    %2343 = vrot.lane.b32.xlu0 %v2340, 64
    %v2344 = vpop.permute.xlu0 %2343
    %v2346 = vmul.f32 %v2339, %v2344
    %2348 = vrot.lane.b32.xlu0 %v2346, 32
    %v2349 = vpop.permute.xlu0 %2348
    %v2351 = vadd.f32 %v2341, %v2349
    %v2352 = vtanh.pop %v2351
    %2354 = vrot.lane.b32.xlu0 %v2352, 64
    %v2355 = vpop.permute.xlu0 %2354
    %v2357 = vmul.f32 %v2339, %v2355
    %2359 = vrot.lane.b32.xlu0 %v2357, 32
    %v2360 = vpop.permute.xlu0 %2359
    %2362 = vst.msk [vmem:[#allocation3 + $0xe] sm:$0x3] %vm1640, %v2360
    %v2363 = vld [vmem:[#allocation3] sm:$0xff]
    %v2364 = vld [vmem:[#allocation3 + $0x8] sm:$0xff]
    %v2365 = vld [vmem:[#allocation4 + $0x130] sm:$0xff]
    %v2366 = vld [vmem:[#allocation4 + $0x138] sm:$0xff]
    %v2367 = vld [vmem:[#allocation4 + $0x140] sm:$0xff]
    %v2368 = vld [vmem:[#allocation4 + $0x148] sm:$0xff]
    %v2369 = vld [vmem:[#allocation4 + $0x150] sm:$0x1]
    %v2370 = vlaneseq
    %v2371 = vshrl.u32 %v2370, 7
    %v2372 = vsub.s32 0, %v2371
    %v2373 = vrot.slane %v2369, %v2372
    %v2375 = vsel %vm129, %v2363, 0
    %v2378 = vsel %vm129, %v2364, 0
    %2380 = vmatprep.subr.mxu0 0.0
    %2381 = vmatpush1.msra.mxu0 0.0
    %2382 = vmatprep.subr.mxu0 0.0
    %2383 = vmatpush1.msra.mxu0 0.0
    %2384 = vmatprep.subr.mxu0 0.0
    %2385 = vmatpush1.msra.mxu0 0.0
    %2386 = vmatprep.subr.mxu0 0.0
    %2387 = vmatpush1.msra.mxu0 0.0
    %2388 = vmatprep.subr.mxu0 0.0
    %2389 = vmatpush1.msra.mxu0 0.0
    %2390 = vmatprep.subr.mxu0 0.0
    %2391 = vmatpush1.msra.mxu0 0.0
    %2392 = vmatprep.subr.mxu0 0.0
    %2393 = vmatpush1.msra.mxu0 0.0
    %2394 = vmatprep.subr.mxu0 0.0
    %2395 = vmatpush1.msra.mxu0 0.0
    %2396 = vmatprep.subr.mxu0 0.0
    %2397 = vmatpush1.msra.mxu0 0.0
    %2398 = vmatprep.subr.mxu0 0.0
    %2399 = vmatpush1.msra.mxu0 0.0
    %2400 = vmatprep.subr.mxu0 0.0
    %2401 = vmatpush1.msra.mxu0 0.0
    %2402 = vmatprep.subr.mxu0 0.0
    %2403 = vmatpush1.msra.mxu0 0.0
    %2404 = vmatprep.subr.mxu0 0.0
    %2405 = vmatpush1.msra.mxu0 %v2368
    %2406 = vmatprep.subr.mxu0 0.0
    %2407 = vmatpush1.msra.mxu0 %v2367
    %2408 = vmatprep.subr.mxu0 0.0
    %2409 = vmatpush1.msra.mxu0 %v2366
    %2410 = vmatprep.subr.mxu0 0.0
    %2411 = vmatpush1.msra.mxu0 %v2365
    %2412 = vmatprep.subr.mxu0 0.0
    %2413 = vmatpush2.msra.mxu0 0.0
    %2414 = vmatprep.subr.mxu0 0.0
    %2415 = vmatpush2.msra.mxu0 0.0
    %2416 = vmatprep.subr.mxu0 0.0
    %2417 = vmatpush2.msra.mxu0 0.0
    %2418 = vmatprep.subr.mxu0 0.0
    %2419 = vmatpush2.msra.mxu0 0.0
    %2420 = vmatprep.subr.mxu0 0.0
    %2421 = vmatpush2.msra.mxu0 0.0
    %2422 = vmatprep.subr.mxu0 0.0
    %2423 = vmatpush2.msra.mxu0 0.0
    %2424 = vmatprep.subr.mxu0 0.0
    %2425 = vmatpush2.msra.mxu0 0.0
    %2426 = vmatprep.subr.mxu0 0.0
    %2427 = vmatpush2.msra.mxu0 0.0
    %2428 = vmatprep.subr.mxu0 0.0
    %2429 = vmatpush2.msra.mxu0 0.0
    %2430 = vmatprep.subr.mxu0 0.0
    %2431 = vmatpush2.msra.mxu0 0.0
    %2432 = vmatprep.subr.mxu0 0.0
    %2433 = vmatpush2.msra.mxu0 0.0
    %2434 = vmatprep.subr.mxu0 0.0
    %2435 = vmatpush2.msra.mxu0 0.0
    %2436 = vmatprep.subr.mxu0 0.0
    %2437 = vmatpush2.msra.mxu0 0.0
    %2438 = vmatprep.subr.mxu0 0.0
    %2439 = vmatpush2.msra.mxu0 0.0
    %2440 = vmatprep.subr.mxu0 0.0
    %2441 = vmatpush2.msra.mxu0 0.0
    %2442 = vmatprep.subr.mxu0 0.0
    %2443 = vmatpush2.msra.mxu0 0.0
    %2444 = vmatprep.mubr.f32.mxu0 0.0
    %2445 = vmatmul.mubr.f32.gmra.mxu0 %v2375
    %v2446 = vpop.f32.mrf.mxu0
    %v2447 = vadd.f32 %v2373, %v2446
    %v2448 = vpop.f32.mrf.mxu0
    %2449 = vmatprep.mubr.f32.mxu0 0.0
    %2450 = vmatmul.mubr.f32.gmra.mxu0 %v2378
    %v2451 = vpop.f32.mrf.mxu0
    %v2452 = vadd.f32 %v2373, %v2451
    %v2453 = vpop.f32.mrf.mxu0
    %2454 = vdwg.mxu0
    %2455 = vst [vmem:[%s3] sm:$0xff] %v2447
    %2456 = vst [vmem:[%s3 + $0x8] sm:$0xff] %v2452
    // Predicated region
    $region18: #{forward.1} parent=1 // pred_check
      _
    $region19: #{forward.1} parent=1 // pred_check_branch
      %2458 = sbr.rel (0) target = $region21
    $region20: #{forward.1} parent=1 // pred_region
      _
    $region21: #{forward.1} parent=1 // pred_fallthru
      _
    // Predicated region
    $region22: #{forward.1} parent=1 // pred_check
      _
    $region23: #{forward.1} parent=1 // pred_check_branch
      %2460 = sbr.rel (0) target = $region25
    $region24: #{forward.1} parent=1 // pred_region
      _
    $region25: #{forward.1} parent=1 // pred_fallthru
      _
    // Predicated region
    $region26: #{forward.1} parent=1 // pred_check
      _
    $region27: #{forward.1} parent=1 // pred_check_branch
      %2462 = sbr.rel (0) target = $region29
    $region28: #{forward.1} parent=1 // pred_region
      _
    $region29: #{forward.1} parent=1 // pred_fallthru
      _
    // Predicated region
    $region30: #{forward.1} parent=1 // pred_check
      _
    $region31: #{forward.1} parent=1 // pred_check_branch
      %2464 = sbr.rel (0) target = $region33
    $region32: #{forward.1} parent=1 // pred_region
      _
    $region33: #{forward.1} parent=1 // pred_fallthru
      _
    %2465 = vsyncpa [#allocation5], 1

</llo_original>
